<compile_context>
chip_gen: v7x
topology: tpu7x:2x2x1
jax: 0.10.0
libtpu: 0.0.40
codegen_flags: <defaults>
</compile_context>

<pallas_src>
import math
from functools import partial

import jax
import jax.numpy as jnp
from jax.experimental import pallas as pl
from jax.experimental.pallas import tpu as pltpu


_VMEM_LIMIT = 32 * 1024 * 1024   # safe on v5e (raises 16MiB default) / v6e / v7x
_BLOCK_ROWS = 256                # row tile for M-tiled kernels (multiple of 8)


def _row_block(m):
    # full array if it fits in one tile, else an (8-aligned) 256-row tile
    return m if m <= _BLOCK_ROWS else _BLOCK_ROWS


def _cparams(n_axes=1):
    return pltpu.CompilerParams(
        dimension_semantics=("parallel",) * n_axes,
        vmem_limit_bytes=_VMEM_LIMIT)


# ---------------------------------------------------------------------------
# Row-tiled linear (+ optional ReLU)  — used for the two subsampling convs
# ---------------------------------------------------------------------------
def _linear_kernel(x_ref, w_ref, b_ref, o_ref, *, activation):
    y = jnp.dot(x_ref[...], w_ref[...], preferred_element_type=jnp.float32)
    y = y + b_ref[...]
    if activation == "relu":
        y = jnp.maximum(y, 0.0)
    o_ref[...] = y


def linear(x, w, b, activation=None):
    M, K = x.shape
    N = w.shape[1]
    bm = _row_block(M)
    return pl.pallas_call(
        partial(_linear_kernel, activation=activation),
        grid=(pl.cdiv(M, bm),),
        in_specs=[pl.BlockSpec((bm, K), lambda i: (i, 0)),
                  pl.BlockSpec((K, N), lambda i: (0, 0)),
                  pl.BlockSpec((1, N), lambda i: (0, 0))],
        out_specs=pl.BlockSpec((bm, N), lambda i: (i, 0)),
        out_shape=jax.ShapeDtypeStruct((M, N), jnp.float32),
        compiler_params=_cparams(1),
    )(x, w, b.reshape(1, N))


# ---------------------------------------------------------------------------
# Fully fused transformer encoder layer (normalize_before, eval mode)
#   LN1 -> QKV matmul -> per-head softmax(QK^T/sqrt(dh)+mask)V -> out-proj
#   -> +residual -> LN2 -> FFN(w1, ReLU, w2) -> +residual
# One grid step per batch element; every intermediate lives in VMEM.
# ---------------------------------------------------------------------------
def _encoder_layer_kernel(x_ref, bias_ref, g1_ref, be1_ref, wqkv_ref, bqkv_ref,
                          wo_ref, bo_ref, g2_ref, be2_ref, w1_ref, bf1_ref,
                          w2_ref, bf2_ref, o_ref, *, n_heads, dh, scale, eps):
    d_model = n_heads * dh
    x = x_ref[...]                                   # (T, D)
    bias = bias_ref[...]                             # (1, T) additive key-pad bias

    # ---- LN1 + fused QKV projection (single MXU matmul) ----
    mu = jnp.mean(x, axis=-1, keepdims=True)
    xc = x - mu
    var = jnp.mean(xc * xc, axis=-1, keepdims=True)
    xn = xc * jax.lax.rsqrt(var + eps) * g1_ref[...] + be1_ref[...]
    qkv = jnp.dot(xn, wqkv_ref[...],
                  preferred_element_type=jnp.float32) + bqkv_ref[...]

    # ---- all heads, statically unrolled; head merge via per-head Wo slices ----
    wo = wo_ref[...]
    acc = jnp.zeros_like(x)
    for h in range(n_heads):
        lo = h * dh
        qh = qkv[:, lo:lo + dh]
        kh = qkv[:, d_model + lo:d_model + lo + dh]
        vh = qkv[:, 2 * d_model + lo:2 * d_model + lo + dh]
        s = jnp.dot(qh, kh.T, preferred_element_type=jnp.float32) * scale + bias
        m = jnp.max(s, axis=-1, keepdims=True)
        p = jnp.exp(s - m)
        inv = pl.reciprocal(jnp.sum(p, axis=-1, keepdims=True), approx=True)
        ctx = jnp.dot(p * inv, vh, preferred_element_type=jnp.float32)   # (T, dh)
        # concat-free merge: ctx @ Wo == sum_h ctx_h @ Wo[h*dh:(h+1)*dh, :]
        acc = acc + jnp.dot(ctx, wo[lo:lo + dh, :],
                            preferred_element_type=jnp.float32)
    x = x + acc + bo_ref[...]                        # residual 1 (stays in VMEM)

    # ---- LN2 + FFN(w1 + ReLU + w2) + residual ----
    mu2 = jnp.mean(x, axis=-1, keepdims=True)
    xc2 = x - mu2
    var2 = jnp.mean(xc2 * xc2, axis=-1, keepdims=True)
    xn2 = xc2 * jax.lax.rsqrt(var2 + eps) * g2_ref[...] + be2_ref[...]
    hmid = jnp.dot(xn2, w1_ref[...],
                   preferred_element_type=jnp.float32) + bf1_ref[...]
    hmid = jnp.maximum(hmid, 0.0)
    o_ref[...] = x + jnp.dot(hmid, w2_ref[...],
                             preferred_element_type=jnp.float32) + bf2_ref[...]


def encoder_layer(x, mask_bias, lp, n_heads, eps=1e-5):
    N, T, D = x.shape
    dh = D // n_heads
    F = lp["w1"].shape[1]
    return pl.pallas_call(
        partial(_encoder_layer_kernel, n_heads=n_heads, dh=dh,
                scale=1.0 / math.sqrt(dh), eps=eps),
        grid=(N,),
        in_specs=[pl.BlockSpec((None, T, D), lambda i: (i, 0, 0)),
                  pl.BlockSpec((None, 1, T), lambda i: (i, 0, 0)),
                  pl.BlockSpec((1, D), lambda i: (0, 0)),
                  pl.BlockSpec((1, D), lambda i: (0, 0)),
                  pl.BlockSpec((D, 3 * D), lambda i: (0, 0)),
                  pl.BlockSpec((1, 3 * D), lambda i: (0, 0)),
                  pl.BlockSpec((D, D), lambda i: (0, 0)),
                  pl.BlockSpec((1, D), lambda i: (0, 0)),
                  pl.BlockSpec((1, D), lambda i: (0, 0)),
                  pl.BlockSpec((1, D), lambda i: (0, 0)),
                  pl.BlockSpec((D, F), lambda i: (0, 0)),
                  pl.BlockSpec((1, F), lambda i: (0, 0)),
                  pl.BlockSpec((F, D), lambda i: (0, 0)),
                  pl.BlockSpec((1, D), lambda i: (0, 0))],
        out_specs=pl.BlockSpec((None, T, D), lambda i: (i, 0, 0)),
        out_shape=jax.ShapeDtypeStruct((N, T, D), jnp.float32),
        compiler_params=_cparams(1),
    )(x, mask_bias,
      lp["norm1_g"].reshape(1, D), lp["norm1_b"].reshape(1, D),
      lp["wqkv"], lp["bqkv"].reshape(1, 3 * D),
      lp["wo"], lp["bo"].reshape(1, D),
      lp["norm2_g"].reshape(1, D), lp["norm2_b"].reshape(1, D),
      lp["w1"], lp["b1"].reshape(1, F),
      lp["w2"], lp["b2"].reshape(1, D))


# ---------------------------------------------------------------------------
# Fused sub_out linear + x*sqrt(d_model) + positional encoding  (grid over N)
# ---------------------------------------------------------------------------
def _subout_pe_kernel(x_ref, w_ref, b_ref, pe_ref, o_ref, *, scale):
    y = jnp.dot(x_ref[...], w_ref[...], preferred_element_type=jnp.float32)
    y = y + b_ref[...]
    o_ref[...] = y * scale + pe_ref[...]


def subout_with_pe(x, w, b, pe, scale):
    """x: (N, T2, K); pe: (T2, D) -> (N, T2, D)."""
    N, T2, K = x.shape
    D = w.shape[1]
    return pl.pallas_call(
        partial(_subout_pe_kernel, scale=scale),
        grid=(N,),
        in_specs=[pl.BlockSpec((None, T2, K), lambda i: (i, 0, 0)),
                  pl.BlockSpec((K, D), lambda i: (0, 0)),
                  pl.BlockSpec((1, D), lambda i: (0, 0)),
                  pl.BlockSpec((T2, D), lambda i: (0, 0))],
        out_specs=pl.BlockSpec((None, T2, D), lambda i: (i, 0, 0)),
        out_shape=jax.ShapeDtypeStruct((N, T2, D), jnp.float32),
        compiler_params=_cparams(1),
    )(x, w, b.reshape(1, D), pe)


# ---------------------------------------------------------------------------
# Fused after_norm + ctc_lo + log_softmax
# ---------------------------------------------------------------------------
def _norm_ctc_kernel(x_ref, g_ref, be_ref, w_ref, b_ref, o_ref, *, eps):
    x = x_ref[...]
    mu = jnp.mean(x, axis=-1, keepdims=True)
    xc = x - mu
    var = jnp.mean(xc * xc, axis=-1, keepdims=True)
    xn = xc * jax.lax.rsqrt(var + eps) * g_ref[...] + be_ref[...]
    logits = jnp.dot(xn, w_ref[...], preferred_element_type=jnp.float32) + b_ref[...]
    m = jnp.max(logits, axis=-1, keepdims=True)
    z = logits - m
    lse = jnp.log(jnp.sum(jnp.exp(z), axis=-1, keepdims=True))
    o_ref[...] = z - lse


def norm_ctc_log_softmax(x, g, be, w, b, eps=1e-5):
    M, D = x.shape
    V = w.shape[1]
    bm = _row_block(M)
    return pl.pallas_call(
        partial(_norm_ctc_kernel, eps=eps),
        grid=(pl.cdiv(M, bm),),
        in_specs=[pl.BlockSpec((bm, D), lambda i: (i, 0)),
                  pl.BlockSpec((1, D), lambda i: (0, 0)),
                  pl.BlockSpec((1, D), lambda i: (0, 0)),
                  pl.BlockSpec((D, V), lambda i: (0, 0)),
                  pl.BlockSpec((1, V), lambda i: (0, 0))],
        out_specs=pl.BlockSpec((bm, V), lambda i: (i, 0)),
        out_shape=jax.ShapeDtypeStruct((M, V), jnp.float32),
        compiler_params=_cparams(1),
    )(x, g.reshape(1, D), be.reshape(1, D), w, b.reshape(1, V))


# ---------------------------------------------------------------------------
# JAX glue: im2col for Conv2dSubsampling4 (conv itself is the Pallas matmul)
# ---------------------------------------------------------------------------
# TODO(synk): the im2col gather + NCHW transposes stay in XLA; a strided-DMA
# Pallas gather feeding the conv matmul directly would remove these HBM relayouts.
def im2col(x, k, s):
    """x: (N, C, H, W) -> (N, Ho, Wo, C*k*k), patch flattened (C, kh, kw) order."""
    N, C, H, W = x.shape
    Ho = (H - k) // s + 1
    Wo = (W - k) // s + 1
    ih = s * jnp.arange(Ho)[:, None] + jnp.arange(k)[None, :]   # (Ho, k)
    iw = s * jnp.arange(Wo)[:, None] + jnp.arange(k)[None, :]   # (Wo, k)
    p = x[:, :, ih, :]            # (N, C, Ho, k, W)
    p = p[:, :, :, :, iw]         # (N, C, Ho, k, Wo, k)
    p = p.transpose(0, 2, 4, 1, 3, 5)  # (N, Ho, Wo, C, kh, kw)
    return p.reshape(N, Ho, Wo, C * k * k)


# ---------------------------------------------------------------------------
# Parameters (deterministic synthetic init; this is not a checkpoint load)
# ---------------------------------------------------------------------------
def init_params(key, *, feat_dim, d_model, n_heads, d_ff, n_layers, vocab, max_len):
    keys = iter(jax.random.split(key, 8 + 16 * n_layers))

    def rnd(shape, fan_in):
        return jax.random.normal(next(keys), shape, jnp.float32) / math.sqrt(fan_in)

    f1 = (feat_dim - 3) // 2 + 1
    f2 = (f1 - 3) // 2 + 1

    pos = jnp.arange(max_len, dtype=jnp.float32)[:, None]
    div = jnp.exp(jnp.arange(0, d_model, 2, dtype=jnp.float32)
                  * -(math.log(10000.0) / d_model))
    pe = jnp.zeros((max_len, d_model), jnp.float32)
    pe = pe.at[:, 0::2].set(jnp.sin(pos * div))
    pe = pe.at[:, 1::2].set(jnp.cos(pos * div))

    p = {
        "conv1_w": rnd((1 * 3 * 3, d_model), 9),
        "conv1_b": jnp.zeros((d_model,), jnp.float32),
        "conv2_w": rnd((d_model * 3 * 3, d_model), d_model * 9),
        "conv2_b": jnp.zeros((d_model,), jnp.float32),
        "sub_out_w": rnd((d_model * f2, d_model), d_model * f2),
        "sub_out_b": jnp.zeros((d_model,), jnp.float32),
        "pe": pe,
        "after_norm_g": jnp.ones((d_model,), jnp.float32),
        "after_norm_b": jnp.zeros((d_model,), jnp.float32),
        "ctc_w": rnd((d_model, vocab), d_model),
        "ctc_b": jnp.zeros((vocab,), jnp.float32),
        "layers": [],
    }
    for _ in range(n_layers):
        wq = rnd((d_model, d_model), d_model)
        wk = rnd((d_model, d_model), d_model)
        wv = rnd((d_model, d_model), d_model)
        lp = {
            "norm1_g": jnp.ones((d_model,), jnp.float32),
            "norm1_b": jnp.zeros((d_model,), jnp.float32),
            # fused QKV: one (d_model, 3*d_model) weight -> single MXU matmul
            "wqkv": jnp.concatenate([wq, wk, wv], axis=1),
            "bqkv": jnp.zeros((3 * d_model,), jnp.float32),
            "wo": rnd((d_model, d_model), d_model),
            "bo": jnp.zeros((d_model,), jnp.float32),
            "norm2_g": jnp.ones((d_model,), jnp.float32),
            "norm2_b": jnp.zeros((d_model,), jnp.float32),
            "w1": rnd((d_model, d_ff), d_model), "b1": jnp.zeros((d_ff,), jnp.float32),
            "w2": rnd((d_ff, d_model), d_ff), "b2": jnp.zeros((d_model,), jnp.float32),
        }
        p["layers"].append(lp)
    return p


# ---------------------------------------------------------------------------
# Forward pass == OnnxModel.forward semantics
# ---------------------------------------------------------------------------
@partial(jax.jit, static_argnames=("n_heads",))
def onnx_model_forward(params, x, x_lens, *, n_heads):
    N, T, F = x.shape
    d_model = params["after_norm_g"].shape[0]

    # make_pad_mask -> (N, T); Conv2dSubsampling4 mask slicing [:, 2::2][:, 2::2]
    full_mask = (jnp.arange(T)[None, :] < x_lens[:, None]).astype(jnp.float32)
    mask_sub = full_mask[:, 2::2][:, 2::2]                       # (N, T')
    # log_probs_lens = encoder_out_mask.int().squeeze(1).sum(1) — trivial, plain JAX
    log_probs_lens = jnp.sum(mask_sub.astype(jnp.int32), axis=1)
    # additive key-padding bias, computed once and reused by every layer
    mask_bias = ((mask_sub - 1.0) * 1e9)[:, None, :]             # (N, 1, T')

    # ---- Conv2dSubsampling4 (two 3x3 stride-2 convs + ReLU, then Linear) ----
    xc = x[:, None, :, :]                                        # NCHW, C_in = 1
    p1 = im2col(xc, 3, 2)                                        # (N, T1, F1, 9)
    _, T1, F1, K1 = p1.shape
    h1 = linear(p1.reshape(-1, K1), params["conv1_w"], params["conv1_b"],
                activation="relu")
    h1 = h1.reshape(N, T1, F1, d_model).transpose(0, 3, 1, 2)    # (N, D, T1, F1)
    p2 = im2col(h1, 3, 2)                                        # (N, T2, F2, D*9)
    _, T2, F2, K2 = p2.shape
    h2 = linear(p2.reshape(-1, K2), params["conv2_w"], params["conv2_b"],
                activation="relu")
    # torch: x.transpose(1, 2).contiguous().view(b, t, c*f)  -> (channel, freq) order
    h2 = h2.reshape(N, T2, F2, d_model).transpose(0, 1, 3, 2).reshape(
        N, T2, d_model * F2)

    # fused: Linear(sub_out) -> x*sqrt(d_model) + positional encoding
    h = subout_with_pe(h2, params["sub_out_w"], params["sub_out_b"],
                       params["pe"][:T2], math.sqrt(d_model))    # (N, T2, D)

    # ---- transformer encoder layers (full context, chunk_size = -1) ----
    # one fused Pallas kernel per layer: LN1+QKV+attn+proj+res + LN2+FFN+res
    for lp in params["layers"]:
        h = encoder_layer(h, mask_bias, lp, n_heads)

    # ---- after_norm + CTC linear + log_softmax fused ----
    V = params["ctc_w"].shape[1]
    log_probs = norm_ctc_log_softmax(
        h.reshape(N * T2, d_model), params["after_norm_g"], params["after_norm_b"],
        params["ctc_w"], params["ctc_b"]).reshape(N, T2, V)

    return log_probs, log_probs_lens


# ---------------------------------------------------------------------------
if __name__ == "__main__":
    N, T, F = 2, 32, 16
    d_model, n_heads, d_ff, n_layers, vocab = 32, 4, 64, 2, 48

    key = jax.random.PRNGKey(0)
    kx, kp = jax.random.split(key)
    x = jax.random.normal(kx, (N, T, F), jnp.float32)
    # TODO(synk): torch uses int64 for x_lens; JAX x64 is off by default so int32 is used.
    x_lens = jnp.array([32, 25], dtype=jnp.int32)

    params = init_params(kp, feat_dim=F, d_model=d_model, n_heads=n_heads,
                         d_ff=d_ff, n_layers=n_layers, vocab=vocab, max_len=256)

    log_probs, log_probs_lens = onnx_model_forward(params, x, x_lens,
                                                   n_heads=n_heads)
    jax.block_until_ready(log_probs)
    jax.block_until_ready(log_probs_lens)

    assert log_probs.shape == (N, 7, vocab)
    assert log_probs_lens.shape == (N,)
    print("KERNEL_OK")
</pallas_src>

<mosaic_0001>
module attributes {stable_mosaic.version = 11 : i64} {
  func.func @_linear_kernel(%arg0: i32, %arg1: memref<210x9xf32, #tpu.memory_space<vmem>>, %arg2: memref<9x32xf32, #tpu.memory_space<vmem>>, %arg3: memref<1x32xf32, #tpu.memory_space<vmem>>, %arg4: memref<210x32xf32, #tpu.memory_space<vmem>>) attributes {dimension_semantics = [#tpu.dimension_semantics<parallel>], iteration_bounds = array<i64: 1>, scalar_prefetch = 0 : i64, scratch_operands = 0 : i64, tpu.core_type = #tpu.core_type<tc>, window_params = [{transform_indices = @transform_0, window_bounds = array<i64: 210, 9>}, {pipeline_mode = #tpu.pipeline_mode<synchronous>, transform_indices = @transform_1, window_bounds = array<i64: 9, 32>}, {pipeline_mode = #tpu.pipeline_mode<synchronous>, transform_indices = @transform_2, window_bounds = array<i64: 1, 32>}, {transform_indices = @transform_3, window_bounds = array<i64: 210, 32>}]} {
    %c0 = arith.constant 0 : index
    %c0_0 = arith.constant 0 : index
    %0 = vector.load %arg1[%c0, %c0_0] : memref<210x9xf32, #tpu.memory_space<vmem>>, vector<210x9xf32>
    %c0_1 = arith.constant 0 : index
    %c0_2 = arith.constant 0 : index
    %1 = vector.load %arg2[%c0_1, %c0_2] : memref<9x32xf32, #tpu.memory_space<vmem>>, vector<9x32xf32>
    %cst = arith.constant dense<0.000000e+00> : vector<210x32xf32>
    %2 = tpu.matmul %0, %1, %cst {dimension_numbers = #tpu.dot_dimension_numbers<[1], [0], [0], [1], [0, 0, 1, 1], [], []>} : vector<210x9xf32>, vector<9x32xf32>, vector<210x32xf32> -> vector<210x32xf32>
    %c0_3 = arith.constant 0 : index
    %c0_4 = arith.constant 0 : index
    %3 = vector.load %arg3[%c0_3, %c0_4] : memref<1x32xf32, #tpu.memory_space<vmem>>, vector<1x32xf32>
    %4 = vector.broadcast %3 : vector<1x32xf32> to vector<210x32xf32>
    %5 = arith.addf %2, %4 : vector<210x32xf32>
    %cst_5 = arith.constant 0.000000e+00 : f32
    %6 = vector.broadcast %cst_5 : f32 to vector<210x32xf32>
    %7 = arith.maximumf %5, %6 : vector<210x32xf32>
    %c0_6 = arith.constant 0 : index
    %c0_7 = arith.constant 0 : index
    %8 = vector.load %arg4[%c0_6, %c0_7] : memref<210x32xf32, #tpu.memory_space<vmem>>, vector<210x32xf32>
    tpu.vector_store %arg4[%c0_6, %c0_7], %7 {strides = array<i32>} : memref<210x32xf32, #tpu.memory_space<vmem>>, vector<210x32xf32>,
    return
  }
  func.func @transform_0(%arg0: i32) -> (i32, i32) {
    %c0_i32 = arith.constant 0 : i32
    %c0_i32_0 = arith.constant 0 : i32
    return %arg0, %c0_i32 : i32, i32
  }
  func.func @transform_1(%arg0: i32) -> (i32, i32) {
    %c0_i32 = arith.constant 0 : i32
    %c0_i32_0 = arith.constant 0 : i32
    %c0_i32_1 = arith.constant 0 : i32
    return %c0_i32, %c0_i32_0 : i32, i32
  }
  func.func @transform_2(%arg0: i32) -> (i32, i32) {
    %c0_i32 = arith.constant 0 : i32
    %c0_i32_0 = arith.constant 0 : i32
    %c0_i32_1 = arith.constant 0 : i32
    return %c0_i32, %c0_i32_0 : i32, i32
  }
  func.func @transform_3(%arg0: i32) -> (i32, i32) {
    %c0_i32 = arith.constant 0 : i32
    %c0_i32_0 = arith.constant 0 : i32
    return %arg0, %c0_i32 : i32, i32
  }
}

module attributes {stable_mosaic.version = 11 : i64} {
  func.func @_linear_kernel(%arg0: i32, %arg1: memref<42x288xf32, #tpu.memory_space<vmem>>, %arg2: memref<288x32xf32, #tpu.memory_space<vmem>>, %arg3: memref<1x32xf32, #tpu.memory_space<vmem>>, %arg4: memref<42x32xf32, #tpu.memory_space<vmem>>) attributes {dimension_semantics = [#tpu.dimension_semantics<parallel>], iteration_bounds = array<i64: 1>, scalar_prefetch = 0 : i64, scratch_operands = 0 : i64, tpu.core_type = #tpu.core_type<tc>, window_params = [{transform_indices = @transform_0, window_bounds = array<i64: 42, 288>}, {pipeline_mode = #tpu.pipeline_mode<synchronous>, transform_indices = @transform_1, window_bounds = array<i64: 288, 32>}, {pipeline_mode = #tpu.pipeline_mode<synchronous>, transform_indices = @transform_2, window_bounds = array<i64: 1, 32>}, {transform_indices = @transform_3, window_bounds = array<i64: 42, 32>}]} {
    %c0 = arith.constant 0 : index
    %c0_0 = arith.constant 0 : index
    %0 = vector.load %arg1[%c0, %c0_0] : memref<42x288xf32, #tpu.memory_space<vmem>>, vector<42x288xf32>
    %c0_1 = arith.constant 0 : index
    %c0_2 = arith.constant 0 : index
    %1 = vector.load %arg2[%c0_1, %c0_2] : memref<288x32xf32, #tpu.memory_space<vmem>>, vector<288x32xf32>
    %cst = arith.constant dense<0.000000e+00> : vector<42x32xf32>
    %2 = tpu.matmul %0, %1, %cst {dimension_numbers = #tpu.dot_dimension_numbers<[1], [0], [0], [1], [0, 0, 1, 1], [], []>} : vector<42x288xf32>, vector<288x32xf32>, vector<42x32xf32> -> vector<42x32xf32>
    %c0_3 = arith.constant 0 : index
    %c0_4 = arith.constant 0 : index
    %3 = vector.load %arg3[%c0_3, %c0_4] : memref<1x32xf32, #tpu.memory_space<vmem>>, vector<1x32xf32>
    %4 = vector.broadcast %3 : vector<1x32xf32> to vector<42x32xf32>
    %5 = arith.addf %2, %4 : vector<42x32xf32>
    %cst_5 = arith.constant 0.000000e+00 : f32
    %6 = vector.broadcast %cst_5 : f32 to vector<42x32xf32>
    %7 = arith.maximumf %5, %6 : vector<42x32xf32>
    %c0_6 = arith.constant 0 : index
    %c0_7 = arith.constant 0 : index
    %8 = vector.load %arg4[%c0_6, %c0_7] : memref<42x32xf32, #tpu.memory_space<vmem>>, vector<42x32xf32>
    tpu.vector_store %arg4[%c0_6, %c0_7], %7 {strides = array<i32>} : memref<42x32xf32, #tpu.memory_space<vmem>>, vector<42x32xf32>,
    return
  }
  func.func @transform_0(%arg0: i32) -> (i32, i32) {
    %c0_i32 = arith.constant 0 : i32
    %c0_i32_0 = arith.constant 0 : i32
    return %arg0, %c0_i32 : i32, i32
  }
  func.func @transform_1(%arg0: i32) -> (i32, i32) {
    %c0_i32 = arith.constant 0 : i32
    %c0_i32_0 = arith.constant 0 : i32
    %c0_i32_1 = arith.constant 0 : i32
    return %c0_i32, %c0_i32_0 : i32, i32
  }
  func.func @transform_2(%arg0: i32) -> (i32, i32) {
    %c0_i32 = arith.constant 0 : i32
    %c0_i32_0 = arith.constant 0 : i32
    %c0_i32_1 = arith.constant 0 : i32
    return %c0_i32, %c0_i32_0 : i32, i32
  }
  func.func @transform_3(%arg0: i32) -> (i32, i32) {
    %c0_i32 = arith.constant 0 : i32
    %c0_i32_0 = arith.constant 0 : i32
    return %arg0, %c0_i32 : i32, i32
  }
}

module attributes {stable_mosaic.version = 11 : i64} {
  func.func @_subout_pe_kernel(%arg0: i32, %arg1: memref<1x7x96xf32, #tpu.memory_space<vmem>>, %arg2: memref<96x32xf32, #tpu.memory_space<vmem>>, %arg3: memref<1x32xf32, #tpu.memory_space<vmem>>, %arg4: memref<7x32xf32, #tpu.memory_space<vmem>>, %arg5: memref<1x7x32xf32, #tpu.memory_space<vmem>>) attributes {dimension_semantics = [#tpu.dimension_semantics<parallel>], iteration_bounds = array<i64: 2>, scalar_prefetch = 0 : i64, scratch_operands = 0 : i64, tpu.core_type = #tpu.core_type<tc>, window_params = [{transform_indices = @transform_0, window_bounds = array<i64: 1, 7, 96>}, {pipeline_mode = #tpu.pipeline_mode<synchronous>, transform_indices = @transform_1, window_bounds = array<i64: 96, 32>}, {pipeline_mode = #tpu.pipeline_mode<synchronous>, transform_indices = @transform_2, window_bounds = array<i64: 1, 32>}, {pipeline_mode = #tpu.pipeline_mode<synchronous>, transform_indices = @transform_3, window_bounds = array<i64: 7, 32>}, {transform_indices = @transform_4, window_bounds = array<i64: 1, 7, 32>}]} {
    %c0 = arith.constant 0 : index
    %c0_0 = arith.constant 0 : index
    %c0_1 = arith.constant 0 : index
    %0 = vector.load %arg1[%c0, %c0_0, %c0_1] : memref<1x7x96xf32, #tpu.memory_space<vmem>>, vector<1x7x96xf32>
    %1 = vector.shape_cast %0 : vector<1x7x96xf32> to vector<7x96xf32>
    %c0_2 = arith.constant 0 : index
    %c0_3 = arith.constant 0 : index
    %2 = vector.load %arg2[%c0_2, %c0_3] : memref<96x32xf32, #tpu.memory_space<vmem>>, vector<96x32xf32>
    %cst = arith.constant dense<0.000000e+00> : vector<7x32xf32>
    %3 = tpu.matmul %1, %2, %cst {dimension_numbers = #tpu.dot_dimension_numbers<[1], [0], [0], [1], [0, 0, 1, 1], [], []>} : vector<7x96xf32>, vector<96x32xf32>, vector<7x32xf32> -> vector<7x32xf32>
    %c0_4 = arith.constant 0 : index
    %c0_5 = arith.constant 0 : index
    %4 = vector.load %arg3[%c0_4, %c0_5] : memref<1x32xf32, #tpu.memory_space<vmem>>, vector<1x32xf32>
    %5 = vector.broadcast %4 : vector<1x32xf32> to vector<7x32xf32>
    %6 = arith.addf %3, %5 : vector<7x32xf32>
    %cst_6 = arith.constant 5.65685415 : f32
    %7 = vector.broadcast %cst_6 : f32 to vector<7x32xf32>
    %8 = arith.mulf %6, %7 : vector<7x32xf32>
    %c0_7 = arith.constant 0 : index
    %c0_8 = arith.constant 0 : index
    %9 = vector.load %arg4[%c0_7, %c0_8] : memref<7x32xf32, #tpu.memory_space<vmem>>, vector<7x32xf32>
    %10 = arith.addf %8, %9 : vector<7x32xf32>
    %c0_9 = arith.constant 0 : index
    %c0_10 = arith.constant 0 : index
    %c0_11 = arith.constant 0 : index
    %11 = vector.load %arg5[%c0_9, %c0_10, %c0_11] : memref<1x7x32xf32, #tpu.memory_space<vmem>>, vector<1x7x32xf32>
    %12 = vector.shape_cast %11 : vector<1x7x32xf32> to vector<7x32xf32>
    %13 = vector.shape_cast %10 : vector<7x32xf32> to vector<1x7x32xf32>
    tpu.vector_store %arg5[%c0_9, %c0_10, %c0_11], %13 {strides = array<i32>} : memref<1x7x32xf32, #tpu.memory_space<vmem>>, vector<1x7x32xf32>,
    return
  }
  func.func @transform_0(%arg0: i32) -> (i32, i32, i32) {
    %c0_i32 = arith.constant 0 : i32
    %c0_i32_0 = arith.constant 0 : i32
    %c0_i32_1 = arith.constant 0 : i32
    return %arg0, %c0_i32, %c0_i32_0 : i32, i32, i32
  }
  func.func @transform_1(%arg0: i32) -> (i32, i32) {
    %c0_i32 = arith.constant 0 : i32
    %c0_i32_0 = arith.constant 0 : i32
    %c0_i32_1 = arith.constant 0 : i32
    return %c0_i32, %c0_i32_0 : i32, i32
  }
  func.func @transform_2(%arg0: i32) -> (i32, i32) {
    %c0_i32 = arith.constant 0 : i32
    %c0_i32_0 = arith.constant 0 : i32
    %c0_i32_1 = arith.constant 0 : i32
    return %c0_i32, %c0_i32_0 : i32, i32
  }
  func.func @transform_3(%arg0: i32) -> (i32, i32) {
    %c0_i32 = arith.constant 0 : i32
    %c0_i32_0 = arith.constant 0 : i32
    %c0_i32_1 = arith.constant 0 : i32
    return %c0_i32, %c0_i32_0 : i32, i32
  }
  func.func @transform_4(%arg0: i32) -> (i32, i32, i32) {
    %c0_i32 = arith.constant 0 : i32
    %c0_i32_0 = arith.constant 0 : i32
    %c0_i32_1 = arith.constant 0 : i32
    return %arg0, %c0_i32, %c0_i32_0 : i32, i32, i32
  }
}

module attributes {stable_mosaic.version = 11 : i64} {
  func.func @_norm_ctc_kernel(%arg0: i32, %arg1: memref<14x32xf32, #tpu.memory_space<vmem>>, %arg2: memref<1x32xf32, #tpu.memory_space<vmem>>, %arg3: memref<1x32xf32, #tpu.memory_space<vmem>>, %arg4: memref<32x48xf32, #tpu.memory_space<vmem>>, %arg5: memref<1x48xf32, #tpu.memory_space<vmem>>, %arg6: memref<14x48xf32, #tpu.memory_space<vmem>>) attributes {dimension_semantics = [#tpu.dimension_semantics<parallel>], iteration_bounds = array<i64: 1>, scalar_prefetch = 0 : i64, scratch_operands = 0 : i64, tpu.core_type = #tpu.core_type<tc>, window_params = [{transform_indices = @transform_0, window_bounds = array<i64: 14, 32>}, {pipeline_mode = #tpu.pipeline_mode<synchronous>, transform_indices = @transform_1, window_bounds = array<i64: 1, 32>}, {pipeline_mode = #tpu.pipeline_mode<synchronous>, transform_indices = @transform_2, window_bounds = array<i64: 1, 32>}, {pipeline_mode = #tpu.pipeline_mode<synchronous>, transform_indices = @transform_3, window_bounds = array<i64: 32, 48>}, {pipeline_mode = #tpu.pipeline_mode<synchronous>, transform_indices = @transform_4, window_bounds = array<i64: 1, 48>}, {transform_indices = @transform_5, window_bounds = array<i64: 14, 48>}]} {
    %c0 = arith.constant 0 : index
    %c0_0 = arith.constant 0 : index
    %0 = vector.load %arg1[%c0, %c0_0] : memref<14x32xf32, #tpu.memory_space<vmem>>, vector<14x32xf32>
    %cst = arith.constant dense<0.000000e+00> : vector<14xf32>
    %1 = vector.multi_reduction <add>, %0, %cst [1] : vector<14x32xf32> to vector<14xf32>
    %2 = vector.shape_cast %1 : vector<14xf32> to vector<14x1xf32>
    %cst_1 = arith.constant 3.200000e+01 : f32
    %3 = vector.broadcast %cst_1 : f32 to vector<14x1xf32>
    %4 = arith.divf %2, %3 : vector<14x1xf32>
    %5 = vector.broadcast %4 : vector<14x1xf32> to vector<14x32xf32>
    %6 = arith.subf %0, %5 : vector<14x32xf32>
    %7 = arith.mulf %6, %6 : vector<14x32xf32>
    %cst_2 = arith.constant dense<0.000000e+00> : vector<14xf32>
    %8 = vector.multi_reduction <add>, %7, %cst_2 [1] : vector<14x32xf32> to vector<14xf32>
    %9 = vector.shape_cast %8 : vector<14xf32> to vector<14x1xf32>
    %cst_3 = arith.constant 3.200000e+01 : f32
    %10 = vector.broadcast %cst_3 : f32 to vector<14x1xf32>
    %11 = arith.divf %9, %10 : vector<14x1xf32>
    %cst_4 = arith.constant 9.99999974E-6 : f32
    %12 = vector.broadcast %cst_4 : f32 to vector<14x1xf32>
    %13 = arith.addf %11, %12 : vector<14x1xf32>
    %14 = math.rsqrt %13 : vector<14x1xf32>
    %15 = vector.broadcast %14 : vector<14x1xf32> to vector<14x32xf32>
    %16 = arith.mulf %6, %15 : vector<14x32xf32>
    %c0_5 = arith.constant 0 : index
    %c0_6 = arith.constant 0 : index
    %17 = vector.load %arg2[%c0_5, %c0_6] : memref<1x32xf32, #tpu.memory_space<vmem>>, vector<1x32xf32>
    %18 = vector.broadcast %17 : vector<1x32xf32> to vector<14x32xf32>
    %19 = arith.mulf %16, %18 : vector<14x32xf32>
    %c0_7 = arith.constant 0 : index
    %c0_8 = arith.constant 0 : index
    %20 = vector.load %arg3[%c0_7, %c0_8] : memref<1x32xf32, #tpu.memory_space<vmem>>, vector<1x32xf32>
    %21 = vector.broadcast %20 : vector<1x32xf32> to vector<14x32xf32>
    %22 = arith.addf %19, %21 : vector<14x32xf32>
    %c0_9 = arith.constant 0 : index
    %c0_10 = arith.constant 0 : index
    %23 = vector.load %arg4[%c0_9, %c0_10] : memref<32x48xf32, #tpu.memory_space<vmem>>, vector<32x48xf32>
    %cst_11 = arith.constant dense<0.000000e+00> : vector<14x48xf32>
    %24 = tpu.matmul %22, %23, %cst_11 {dimension_numbers = #tpu.dot_dimension_numbers<[1], [0], [0], [1], [0, 0, 1, 1], [], []>} : vector<14x32xf32>, vector<32x48xf32>, vector<14x48xf32> -> vector<14x48xf32>
    %c0_12 = arith.constant 0 : index
    %c0_13 = arith.constant 0 : index
    %25 = vector.load %arg5[%c0_12, %c0_13] : memref<1x48xf32, #tpu.memory_space<vmem>>, vector<1x48xf32>
    %26 = vector.broadcast %25 : vector<1x48xf32> to vector<14x48xf32>
    %27 = arith.addf %24, %26 : vector<14x48xf32>
    %cst_14 = arith.constant dense<0xFF800000> : vector<14xf32>
    %28 = vector.multi_reduction <maximumf>, %27, %cst_14 [1] : vector<14x48xf32> to vector<14xf32>
    %29 = vector.shape_cast %28 : vector<14xf32> to vector<14x1xf32>
    %30 = vector.broadcast %29 : vector<14x1xf32> to vector<14x48xf32>
    %31 = arith.subf %27, %30 : vector<14x48xf32>
    %32 = math.exp %31 : vector<14x48xf32>
    %cst_15 = arith.constant dense<0.000000e+00> : vector<14xf32>
    %33 = vector.multi_reduction <add>, %32, %cst_15 [1] : vector<14x48xf32> to vector<14xf32>
    %34 = vector.shape_cast %33 : vector<14xf32> to vector<14x1xf32>
    %35 = math.log %34 : vector<14x1xf32>
    %36 = vector.broadcast %35 : vector<14x1xf32> to vector<14x48xf32>
    %37 = arith.subf %31, %36 : vector<14x48xf32>
    %c0_16 = arith.constant 0 : index
    %c0_17 = arith.constant 0 : index
    %38 = vector.load %arg6[%c0_16, %c0_17] : memref<14x48xf32, #tpu.memory_space<vmem>>, vector<14x48xf32>
    tpu.vector_store %arg6[%c0_16, %c0_17], %37 {strides = array<i32>} : memref<14x48xf32, #tpu.memory_space<vmem>>, vector<14x48xf32>,
    return
  }
  func.func @transform_0(%arg0: i32) -> (i32, i32) {
    %c0_i32 = arith.constant 0 : i32
    %c0_i32_0 = arith.constant 0 : i32
    return %arg0, %c0_i32 : i32, i32
  }
  func.func @transform_1(%arg0: i32) -> (i32, i32) {
    %c0_i32 = arith.constant 0 : i32
    %c0_i32_0 = arith.constant 0 : i32
    %c0_i32_1 = arith.constant 0 : i32
    return %c0_i32, %c0_i32_0 : i32, i32
  }
  func.func @transform_2(%arg0: i32) -> (i32, i32) {
    %c0_i32 = arith.constant 0 : i32
    %c0_i32_0 = arith.constant 0 : i32
    %c0_i32_1 = arith.constant 0 : i32
    return %c0_i32, %c0_i32_0 : i32, i32
  }
  func.func @transform_3(%arg0: i32) -> (i32, i32) {
    %c0_i32 = arith.constant 0 : i32
    %c0_i32_0 = arith.constant 0 : i32
    %c0_i32_1 = arith.constant 0 : i32
    return %c0_i32, %c0_i32_0 : i32, i32
  }
  func.func @transform_4(%arg0: i32) -> (i32, i32) {
    %c0_i32 = arith.constant 0 : i32
    %c0_i32_0 = arith.constant 0 : i32
    %c0_i32_1 = arith.constant 0 : i32
    return %c0_i32, %c0_i32_0 : i32, i32
  }
  func.func @transform_5(%arg0: i32) -> (i32, i32) {
    %c0_i32 = arith.constant 0 : i32
    %c0_i32_0 = arith.constant 0 : i32
    return %arg0, %c0_i32 : i32, i32
  }
}

module attributes {stable_mosaic.version = 11 : i64} {
  func.func @_encoder_layer_kernel(%arg0: i32, %arg1: memref<1x7x32xf32, #tpu.memory_space<vmem>>, %arg2: memref<1x1x7xf32, #tpu.memory_space<vmem>>, %arg3: memref<1x32xf32, #tpu.memory_space<vmem>>, %arg4: memref<1x32xf32, #tpu.memory_space<vmem>>, %arg5: memref<32x96xf32, #tpu.memory_space<vmem>>, %arg6: memref<1x96xf32, #tpu.memory_space<vmem>>, %arg7: memref<32x32xf32, #tpu.memory_space<vmem>>, %arg8: memref<1x32xf32, #tpu.memory_space<vmem>>, %arg9: memref<1x32xf32, #tpu.memory_space<vmem>>, %arg10: memref<1x32xf32, #tpu.memory_space<vmem>>, %arg11: memref<32x64xf32, #tpu.memory_space<vmem>>, %arg12: memref<1x64xf32, #tpu.memory_space<vmem>>, %arg13: memref<64x32xf32, #tpu.memory_space<vmem>>, %arg14: memref<1x32xf32, #tpu.memory_space<vmem>>, %arg15: memref<1x7x32xf32, #tpu.memory_space<vmem>>) attributes {dimension_semantics = [#tpu.dimension_semantics<parallel>], iteration_bounds = array<i64: 2>, scalar_prefetch = 0 : i64, scratch_operands = 0 : i64, tpu.core_type = #tpu.core_type<tc>, window_params = [{transform_indices = @transform_0, window_bounds = array<i64: 1, 7, 32>}, {transform_indices = @transform_1, window_bounds = array<i64: 1, 1, 7>}, {pipeline_mode = #tpu.pipeline_mode<synchronous>, transform_indices = @transform_2, window_bounds = array<i64: 1, 32>}, {pipeline_mode = #tpu.pipeline_mode<synchronous>, transform_indices = @transform_3, window_bounds = array<i64: 1, 32>}, {pipeline_mode = #tpu.pipeline_mode<synchronous>, transform_indices = @transform_4, window_bounds = array<i64: 32, 96>}, {pipeline_mode = #tpu.pipeline_mode<synchronous>, transform_indices = @transform_5, window_bounds = array<i64: 1, 96>}, {pipeline_mode = #tpu.pipeline_mode<synchronous>, transform_indices = @transform_6, window_bounds = array<i64: 32, 32>}, {pipeline_mode = #tpu.pipeline_mode<synchronous>, transform_indices = @transform_7, window_bounds = array<i64: 1, 32>}, {pipeline_mode = #tpu.pipeline_mode<synchronous>, transform_indices = @transform_8, window_bounds = array<i64: 1, 32>}, {pipeline_mode = #tpu.pipeline_mode<synchronous>, transform_indices = @transform_9, window_bounds = array<i64: 1, 32>}, {pipeline_mode = #tpu.pipeline_mode<synchronous>, transform_indices = @transform_10, window_bounds = array<i64: 32, 64>}, {pipeline_mode = #tpu.pipeline_mode<synchronous>, transform_indices = @transform_11, window_bounds = array<i64: 1, 64>}, {pipeline_mode = #tpu.pipeline_mode<synchronous>, transform_indices = @transform_12, window_bounds = array<i64: 64, 32>}, {pipeline_mode = #tpu.pipeline_mode<synchronous>, transform_indices = @transform_13, window_bounds = array<i64: 1, 32>}, {transform_indices = @transform_14, window_bounds = array<i64: 1, 7, 32>}]} {
    %c0 = arith.constant 0 : index
    %c0_0 = arith.constant 0 : index
    %c0_1 = arith.constant 0 : index
    %0 = vector.load %arg1[%c0, %c0_0, %c0_1] : memref<1x7x32xf32, #tpu.memory_space<vmem>>, vector<1x7x32xf32>
    %1 = vector.shape_cast %0 : vector<1x7x32xf32> to vector<7x32xf32>
    %c0_2 = arith.constant 0 : index
    %c0_3 = arith.constant 0 : index
    %c0_4 = arith.constant 0 : index
    %2 = vector.load %arg2[%c0_2, %c0_3, %c0_4] : memref<1x1x7xf32, #tpu.memory_space<vmem>>, vector<1x1x7xf32>
    %3 = vector.shape_cast %2 : vector<1x1x7xf32> to vector<1x7xf32>
    %cst = arith.constant dense<0.000000e+00> : vector<7xf32>
    %4 = vector.multi_reduction <add>, %1, %cst [1] : vector<7x32xf32> to vector<7xf32>
    %5 = vector.shape_cast %4 : vector<7xf32> to vector<7x1xf32>
    %cst_5 = arith.constant 3.200000e+01 : f32
    %6 = vector.broadcast %cst_5 : f32 to vector<7x1xf32>
    %7 = arith.divf %5, %6 : vector<7x1xf32>
    %8 = vector.broadcast %7 : vector<7x1xf32> to vector<7x32xf32>
    %9 = arith.subf %1, %8 : vector<7x32xf32>
    %10 = arith.mulf %9, %9 : vector<7x32xf32>
    %cst_6 = arith.constant dense<0.000000e+00> : vector<7xf32>
    %11 = vector.multi_reduction <add>, %10, %cst_6 [1] : vector<7x32xf32> to vector<7xf32>
    %12 = vector.shape_cast %11 : vector<7xf32> to vector<7x1xf32>
    %cst_7 = arith.constant 3.200000e+01 : f32
    %13 = vector.broadcast %cst_7 : f32 to vector<7x1xf32>
    %14 = arith.divf %12, %13 : vector<7x1xf32>
    %cst_8 = arith.constant 9.99999974E-6 : f32
    %15 = vector.broadcast %cst_8 : f32 to vector<7x1xf32>
    %16 = arith.addf %14, %15 : vector<7x1xf32>
    %17 = math.rsqrt %16 : vector<7x1xf32>
    %18 = vector.broadcast %17 : vector<7x1xf32> to vector<7x32xf32>
    %19 = arith.mulf %9, %18 : vector<7x32xf32>
    %c0_9 = arith.constant 0 : index
    %c0_10 = arith.constant 0 : index
    %20 = vector.load %arg3[%c0_9, %c0_10] : memref<1x32xf32, #tpu.memory_space<vmem>>, vector<1x32xf32>
    %21 = vector.broadcast %20 : vector<1x32xf32> to vector<7x32xf32>
    %22 = arith.mulf %19, %21 : vector<7x32xf32>
    %c0_11 = arith.constant 0 : index
    %c0_12 = arith.constant 0 : index
    %23 = vector.load %arg4[%c0_11, %c0_12] : memref<1x32xf32, #tpu.memory_space<vmem>>, vector<1x32xf32>
    %24 = vector.broadcast %23 : vector<1x32xf32> to vector<7x32xf32>
    %25 = arith.addf %22, %24 : vector<7x32xf32>
    %c0_13 = arith.constant 0 : index
    %c0_14 = arith.constant 0 : index
    %26 = vector.load %arg5[%c0_13, %c0_14] : memref<32x96xf32, #tpu.memory_space<vmem>>, vector<32x96xf32>
    %cst_15 = arith.constant dense<0.000000e+00> : vector<7x96xf32>
    %27 = tpu.matmul %25, %26, %cst_15 {dimension_numbers = #tpu.dot_dimension_numbers<[1], [0], [0], [1], [0, 0, 1, 1], [], []>} : vector<7x32xf32>, vector<32x96xf32>, vector<7x96xf32> -> vector<7x96xf32>
    %c0_16 = arith.constant 0 : index
    %c0_17 = arith.constant 0 : index
    %28 = vector.load %arg6[%c0_16, %c0_17] : memref<1x96xf32, #tpu.memory_space<vmem>>, vector<1x96xf32>
    %29 = vector.broadcast %28 : vector<1x96xf32> to vector<7x96xf32>
    %30 = arith.addf %27, %29 : vector<7x96xf32>
    %c0_18 = arith.constant 0 : index
    %c0_19 = arith.constant 0 : index
    %31 = vector.load %arg7[%c0_18, %c0_19] : memref<32x32xf32, #tpu.memory_space<vmem>>, vector<32x32xf32>
    %cst_20 = arith.constant 0.000000e+00 : f32
    %32 = vector.broadcast %cst_20 : f32 to vector<7x32xf32>
    %33 = vector.extract_strided_slice %30 {offsets = [0, 0], sizes = [7, 8], strides = [1, 1]} : vector<7x96xf32> to vector<7x8xf32>
    %34 = vector.extract_strided_slice %30 {offsets = [0, 32], sizes = [7, 8], strides = [1, 1]} : vector<7x96xf32> to vector<7x8xf32>
    %35 = vector.extract_strided_slice %30 {offsets = [0, 64], sizes = [7, 8], strides = [1, 1]} : vector<7x96xf32> to vector<7x8xf32>
    %36 = tpu.transpose %34, [1, 0] : vector<7x8xf32> -> vector<8x7xf32>
    %cst_21 = arith.constant dense<0.000000e+00> : vector<7x7xf32>
    %37 = tpu.matmul %33, %36, %cst_21 {dimension_numbers = #tpu.dot_dimension_numbers<[1], [0], [0], [1], [0, 0, 1, 1], [], []>} : vector<7x8xf32>, vector<8x7xf32>, vector<7x7xf32> -> vector<7x7xf32>
    %cst_22 = arith.constant 0.353553385 : f32
    %38 = vector.broadcast %cst_22 : f32 to vector<7x7xf32>
    %39 = arith.mulf %37, %38 : vector<7x7xf32>
    %40 = vector.broadcast %3 : vector<1x7xf32> to vector<7x7xf32>
    %41 = arith.addf %39, %40 : vector<7x7xf32>
    %cst_23 = arith.constant dense<0xFF800000> : vector<7xf32>
    %42 = vector.multi_reduction <maximumf>, %41, %cst_23 [1] : vector<7x7xf32> to vector<7xf32>
    %43 = vector.shape_cast %42 : vector<7xf32> to vector<7x1xf32>
    %44 = vector.broadcast %43 : vector<7x1xf32> to vector<7x7xf32>
    %45 = arith.subf %41, %44 : vector<7x7xf32>
    %46 = math.exp %45 : vector<7x7xf32>
    %cst_24 = arith.constant dense<0.000000e+00> : vector<7xf32>
    %47 = vector.multi_reduction <add>, %46, %cst_24 [1] : vector<7x7xf32> to vector<7xf32>
    %48 = vector.shape_cast %47 : vector<7xf32> to vector<7x1xf32>
    %49 = tpu.reciprocal %48 {approx = true} : vector<7x1xf32> -> vector<7x1xf32>
    %50 = vector.broadcast %49 : vector<7x1xf32> to vector<7x7xf32>
    %51 = arith.mulf %46, %50 : vector<7x7xf32>
    %cst_25 = arith.constant dense<0.000000e+00> : vector<7x8xf32>
    %52 = tpu.matmul %51, %35, %cst_25 {dimension_numbers = #tpu.dot_dimension_numbers<[1], [0], [0], [1], [0, 0, 1, 1], [], []>} : vector<7x7xf32>, vector<7x8xf32>, vector<7x8xf32> -> vector<7x8xf32>
    %53 = vector.extract_strided_slice %31 {offsets = [0, 0], sizes = [8, 32], strides = [1, 1]} : vector<32x32xf32> to vector<8x32xf32>
    %cst_26 = arith.constant dense<0.000000e+00> : vector<7x32xf32>
    %54 = tpu.matmul %52, %53, %cst_26 {dimension_numbers = #tpu.dot_dimension_numbers<[1], [0], [0], [1], [0, 0, 1, 1], [], []>} : vector<7x8xf32>, vector<8x32xf32>, vector<7x32xf32> -> vector<7x32xf32>
    %55 = arith.addf %32, %54 : vector<7x32xf32>
    %56 = vector.extract_strided_slice %30 {offsets = [0, 8], sizes = [7, 8], strides = [1, 1]} : vector<7x96xf32> to vector<7x8xf32>
    %57 = vector.extract_strided_slice %30 {offsets = [0, 40], sizes = [7, 8], strides = [1, 1]} : vector<7x96xf32> to vector<7x8xf32>
    %58 = vector.extract_strided_slice %30 {offsets = [0, 72], sizes = [7, 8], strides = [1, 1]} : vector<7x96xf32> to vector<7x8xf32>
    %59 = tpu.transpose %57, [1, 0] : vector<7x8xf32> -> vector<8x7xf32>
    %cst_27 = arith.constant dense<0.000000e+00> : vector<7x7xf32>
    %60 = tpu.matmul %56, %59, %cst_27 {dimension_numbers = #tpu.dot_dimension_numbers<[1], [0], [0], [1], [0, 0, 1, 1], [], []>} : vector<7x8xf32>, vector<8x7xf32>, vector<7x7xf32> -> vector<7x7xf32>
    %cst_28 = arith.constant 0.353553385 : f32
    %61 = vector.broadcast %cst_28 : f32 to vector<7x7xf32>
    %62 = arith.mulf %60, %61 : vector<7x7xf32>
    %63 = vector.broadcast %3 : vector<1x7xf32> to vector<7x7xf32>
    %64 = arith.addf %62, %63 : vector<7x7xf32>
    %cst_29 = arith.constant dense<0xFF800000> : vector<7xf32>
    %65 = vector.multi_reduction <maximumf>, %64, %cst_29 [1] : vector<7x7xf32> to vector<7xf32>
    %66 = vector.shape_cast %65 : vector<7xf32> to vector<7x1xf32>
    %67 = vector.broadcast %66 : vector<7x1xf32> to vector<7x7xf32>
    %68 = arith.subf %64, %67 : vector<7x7xf32>
    %69 = math.exp %68 : vector<7x7xf32>
    %cst_30 = arith.constant dense<0.000000e+00> : vector<7xf32>
    %70 = vector.multi_reduction <add>, %69, %cst_30 [1] : vector<7x7xf32> to vector<7xf32>
    %71 = vector.shape_cast %70 : vector<7xf32> to vector<7x1xf32>
    %72 = tpu.reciprocal %71 {approx = true} : vector<7x1xf32> -> vector<7x1xf32>
    %73 = vector.broadcast %72 : vector<7x1xf32> to vector<7x7xf32>
    %74 = arith.mulf %69, %73 : vector<7x7xf32>
    %cst_31 = arith.constant dense<0.000000e+00> : vector<7x8xf32>
    %75 = tpu.matmul %74, %58, %cst_31 {dimension_numbers = #tpu.dot_dimension_numbers<[1], [0], [0], [1], [0, 0, 1, 1], [], []>} : vector<7x7xf32>, vector<7x8xf32>, vector<7x8xf32> -> vector<7x8xf32>
    %76 = vector.extract_strided_slice %31 {offsets = [8, 0], sizes = [8, 32], strides = [1, 1]} : vector<32x32xf32> to vector<8x32xf32>
    %cst_32 = arith.constant dense<0.000000e+00> : vector<7x32xf32>
    %77 = tpu.matmul %75, %76, %cst_32 {dimension_numbers = #tpu.dot_dimension_numbers<[1], [0], [0], [1], [0, 0, 1, 1], [], []>} : vector<7x8xf32>, vector<8x32xf32>, vector<7x32xf32> -> vector<7x32xf32>
    %78 = arith.addf %55, %77 : vector<7x32xf32>
    %79 = vector.extract_strided_slice %30 {offsets = [0, 16], sizes = [7, 8], strides = [1, 1]} : vector<7x96xf32> to vector<7x8xf32>
    %80 = vector.extract_strided_slice %30 {offsets = [0, 48], sizes = [7, 8], strides = [1, 1]} : vector<7x96xf32> to vector<7x8xf32>
    %81 = vector.extract_strided_slice %30 {offsets = [0, 80], sizes = [7, 8], strides = [1, 1]} : vector<7x96xf32> to vector<7x8xf32>
    %82 = tpu.transpose %80, [1, 0] : vector<7x8xf32> -> vector<8x7xf32>
    %cst_33 = arith.constant dense<0.000000e+00> : vector<7x7xf32>
    %83 = tpu.matmul %79, %82, %cst_33 {dimension_numbers = #tpu.dot_dimension_numbers<[1], [0], [0], [1], [0, 0, 1, 1], [], []>} : vector<7x8xf32>, vector<8x7xf32>, vector<7x7xf32> -> vector<7x7xf32>
    %cst_34 = arith.constant 0.353553385 : f32
    %84 = vector.broadcast %cst_34 : f32 to vector<7x7xf32>
    %85 = arith.mulf %83, %84 : vector<7x7xf32>
    %86 = vector.broadcast %3 : vector<1x7xf32> to vector<7x7xf32>
    %87 = arith.addf %85, %86 : vector<7x7xf32>
    %cst_35 = arith.constant dense<0xFF800000> : vector<7xf32>
    %88 = vector.multi_reduction <maximumf>, %87, %cst_35 [1] : vector<7x7xf32> to vector<7xf32>
    %89 = vector.shape_cast %88 : vector<7xf32> to vector<7x1xf32>
    %90 = vector.broadcast %89 : vector<7x1xf32> to vector<7x7xf32>
    %91 = arith.subf %87, %90 : vector<7x7xf32>
    %92 = math.exp %91 : vector<7x7xf32>
    %cst_36 = arith.constant dense<0.000000e+00> : vector<7xf32>
    %93 = vector.multi_reduction <add>, %92, %cst_36 [1] : vector<7x7xf32> to vector<7xf32>
    %94 = vector.shape_cast %93 : vector<7xf32> to vector<7x1xf32>
    %95 = tpu.reciprocal %94 {approx = true} : vector<7x1xf32> -> vector<7x1xf32>
    %96 = vector.broadcast %95 : vector<7x1xf32> to vector<7x7xf32>
    %97 = arith.mulf %92, %96 : vector<7x7xf32>
    %cst_37 = arith.constant dense<0.000000e+00> : vector<7x8xf32>
    %98 = tpu.matmul %97, %81, %cst_37 {dimension_numbers = #tpu.dot_dimension_numbers<[1], [0], [0], [1], [0, 0, 1, 1], [], []>} : vector<7x7xf32>, vector<7x8xf32>, vector<7x8xf32> -> vector<7x8xf32>
    %99 = vector.extract_strided_slice %31 {offsets = [16, 0], sizes = [8, 32], strides = [1, 1]} : vector<32x32xf32> to vector<8x32xf32>
    %cst_38 = arith.constant dense<0.000000e+00> : vector<7x32xf32>
    %100 = tpu.matmul %98, %99, %cst_38 {dimension_numbers = #tpu.dot_dimension_numbers<[1], [0], [0], [1], [0, 0, 1, 1], [], []>} : vector<7x8xf32>, vector<8x32xf32>, vector<7x32xf32> -> vector<7x32xf32>
    %101 = arith.addf %78, %100 : vector<7x32xf32>
    %102 = vector.extract_strided_slice %30 {offsets = [0, 24], sizes = [7, 8], strides = [1, 1]} : vector<7x96xf32> to vector<7x8xf32>
    %103 = vector.extract_strided_slice %30 {offsets = [0, 56], sizes = [7, 8], strides = [1, 1]} : vector<7x96xf32> to vector<7x8xf32>
    %104 = vector.extract_strided_slice %30 {offsets = [0, 88], sizes = [7, 8], strides = [1, 1]} : vector<7x96xf32> to vector<7x8xf32>
    %105 = tpu.transpose %103, [1, 0] : vector<7x8xf32> -> vector<8x7xf32>
    %cst_39 = arith.constant dense<0.000000e+00> : vector<7x7xf32>
    %106 = tpu.matmul %102, %105, %cst_39 {dimension_numbers = #tpu.dot_dimension_numbers<[1], [0], [0], [1], [0, 0, 1, 1], [], []>} : vector<7x8xf32>, vector<8x7xf32>, vector<7x7xf32> -> vector<7x7xf32>
    %cst_40 = arith.constant 0.353553385 : f32
    %107 = vector.broadcast %cst_40 : f32 to vector<7x7xf32>
    %108 = arith.mulf %106, %107 : vector<7x7xf32>
    %109 = vector.broadcast %3 : vector<1x7xf32> to vector<7x7xf32>
    %110 = arith.addf %108, %109 : vector<7x7xf32>
    %cst_41 = arith.constant dense<0xFF800000> : vector<7xf32>
    %111 = vector.multi_reduction <maximumf>, %110, %cst_41 [1] : vector<7x7xf32> to vector<7xf32>
    %112 = vector.shape_cast %111 : vector<7xf32> to vector<7x1xf32>
    %113 = vector.broadcast %112 : vector<7x1xf32> to vector<7x7xf32>
    %114 = arith.subf %110, %113 : vector<7x7xf32>
    %115 = math.exp %114 : vector<7x7xf32>
    %cst_42 = arith.constant dense<0.000000e+00> : vector<7xf32>
    %116 = vector.multi_reduction <add>, %115, %cst_42 [1] : vector<7x7xf32> to vector<7xf32>
    %117 = vector.shape_cast %116 : vector<7xf32> to vector<7x1xf32>
    %118 = tpu.reciprocal %117 {approx = true} : vector<7x1xf32> -> vector<7x1xf32>
    %119 = vector.broadcast %118 : vector<7x1xf32> to vector<7x7xf32>
    %120 = arith.mulf %115, %119 : vector<7x7xf32>
    %cst_43 = arith.constant dense<0.000000e+00> : vector<7x8xf32>
    %121 = tpu.matmul %120, %104, %cst_43 {dimension_numbers = #tpu.dot_dimension_numbers<[1], [0], [0], [1], [0, 0, 1, 1], [], []>} : vector<7x7xf32>, vector<7x8xf32>, vector<7x8xf32> -> vector<7x8xf32>
    %122 = vector.extract_strided_slice %31 {offsets = [24, 0], sizes = [8, 32], strides = [1, 1]} : vector<32x32xf32> to vector<8x32xf32>
    %cst_44 = arith.constant dense<0.000000e+00> : vector<7x32xf32>
    %123 = tpu.matmul %121, %122, %cst_44 {dimension_numbers = #tpu.dot_dimension_numbers<[1], [0], [0], [1], [0, 0, 1, 1], [], []>} : vector<7x8xf32>, vector<8x32xf32>, vector<7x32xf32> -> vector<7x32xf32>
    %124 = arith.addf %101, %123 : vector<7x32xf32>
    %125 = arith.addf %1, %124 : vector<7x32xf32>
    %c0_45 = arith.constant 0 : index
    %c0_46 = arith.constant 0 : index
    %126 = vector.load %arg8[%c0_45, %c0_46] : memref<1x32xf32, #tpu.memory_space<vmem>>, vector<1x32xf32>
    %127 = vector.broadcast %126 : vector<1x32xf32> to vector<7x32xf32>
    %128 = arith.addf %125, %127 : vector<7x32xf32>
    %cst_47 = arith.constant dense<0.000000e+00> : vector<7xf32>
    %129 = vector.multi_reduction <add>, %128, %cst_47 [1] : vector<7x32xf32> to vector<7xf32>
    %130 = vector.shape_cast %129 : vector<7xf32> to vector<7x1xf32>
    %cst_48 = arith.constant 3.200000e+01 : f32
    %131 = vector.broadcast %cst_48 : f32 to vector<7x1xf32>
    %132 = arith.divf %130, %131 : vector<7x1xf32>
    %133 = vector.broadcast %132 : vector<7x1xf32> to vector<7x32xf32>
    %134 = arith.subf %128, %133 : vector<7x32xf32>
    %135 = arith.mulf %134, %134 : vector<7x32xf32>
    %cst_49 = arith.constant dense<0.000000e+00> : vector<7xf32>
    %136 = vector.multi_reduction <add>, %135, %cst_49 [1] : vector<7x32xf32> to vector<7xf32>
    %137 = vector.shape_cast %136 : vector<7xf32> to vector<7x1xf32>
    %cst_50 = arith.constant 3.200000e+01 : f32
    %138 = vector.broadcast %cst_50 : f32 to vector<7x1xf32>
    %139 = arith.divf %137, %138 : vector<7x1xf32>
    %cst_51 = arith.constant 9.99999974E-6 : f32
    %140 = vector.broadcast %cst_51 : f32 to vector<7x1xf32>
    %141 = arith.addf %139, %140 : vector<7x1xf32>
    %142 = math.rsqrt %141 : vector<7x1xf32>
    %143 = vector.broadcast %142 : vector<7x1xf32> to vector<7x32xf32>
    %144 = arith.mulf %134, %143 : vector<7x32xf32>
    %c0_52 = arith.constant 0 : index
    %c0_53 = arith.constant 0 : index
    %145 = vector.load %arg9[%c0_52, %c0_53] : memref<1x32xf32, #tpu.memory_space<vmem>>, vector<1x32xf32>
    %146 = vector.broadcast %145 : vector<1x32xf32> to vector<7x32xf32>
    %147 = arith.mulf %144, %146 : vector<7x32xf32>
    %c0_54 = arith.constant 0 : index
    %c0_55 = arith.constant 0 : index
    %148 = vector.load %arg10[%c0_54, %c0_55] : memref<1x32xf32, #tpu.memory_space<vmem>>, vector<1x32xf32>
    %149 = vector.broadcast %148 : vector<1x32xf32> to vector<7x32xf32>
    %150 = arith.addf %147, %149 : vector<7x32xf32>
    %c0_56 = arith.constant 0 : index
    %c0_57 = arith.constant 0 : index
    %151 = vector.load %arg11[%c0_56, %c0_57] : memref<32x64xf32, #tpu.memory_space<vmem>>, vector<32x64xf32>
    %cst_58 = arith.constant dense<0.000000e+00> : vector<7x64xf32>
    %152 = tpu.matmul %150, %151, %cst_58 {dimension_numbers = #tpu.dot_dimension_numbers<[1], [0], [0], [1], [0, 0, 1, 1], [], []>} : vector<7x32xf32>, vector<32x64xf32>, vector<7x64xf32> -> vector<7x64xf32>
    %c0_59 = arith.constant 0 : index
    %c0_60 = arith.constant 0 : index
    %153 = vector.load %arg12[%c0_59, %c0_60] : memref<1x64xf32, #tpu.memory_space<vmem>>, vector<1x64xf32>
    %154 = vector.broadcast %153 : vector<1x64xf32> to vector<7x64xf32>
    %155 = arith.addf %152, %154 : vector<7x64xf32>
    %cst_61 = arith.constant 0.000000e+00 : f32
    %156 = vector.broadcast %cst_61 : f32 to vector<7x64xf32>
    %157 = arith.maximumf %155, %156 : vector<7x64xf32>
    %c0_62 = arith.constant 0 : index
    %c0_63 = arith.constant 0 : index
    %158 = vector.load %arg13[%c0_62, %c0_63] : memref<64x32xf32, #tpu.memory_space<vmem>>, vector<64x32xf32>
    %cst_64 = arith.constant dense<0.000000e+00> : vector<7x32xf32>
    %159 = tpu.matmul %157, %158, %cst_64 {dimension_numbers = #tpu.dot_dimension_numbers<[1], [0], [0], [1], [0, 0, 1, 1], [], []>} : vector<7x64xf32>, vector<64x32xf32>, vector<7x32xf32> -> vector<7x32xf32>
    %160 = arith.addf %128, %159 : vector<7x32xf32>
    %c0_65 = arith.constant 0 : index
    %c0_66 = arith.constant 0 : index
    %161 = vector.load %arg14[%c0_65, %c0_66] : memref<1x32xf32, #tpu.memory_space<vmem>>, vector<1x32xf32>
    %162 = vector.broadcast %161 : vector<1x32xf32> to vector<7x32xf32>
    %163 = arith.addf %160, %162 : vector<7x32xf32>
    %c0_67 = arith.constant 0 : index
    %c0_68 = arith.constant 0 : index
    %c0_69 = arith.constant 0 : index
    %164 = vector.load %arg15[%c0_67, %c0_68, %c0_69] : memref<1x7x32xf32, #tpu.memory_space<vmem>>, vector<1x7x32xf32>
    %165 = vector.shape_cast %164 : vector<1x7x32xf32> to vector<7x32xf32>
    %166 = vector.shape_cast %163 : vector<7x32xf32> to vector<1x7x32xf32>
    tpu.vector_store %arg15[%c0_67, %c0_68, %c0_69], %166 {strides = array<i32>} : memref<1x7x32xf32, #tpu.memory_space<vmem>>, vector<1x7x32xf32>,
    return
  }
  func.func @transform_0(%arg0: i32) -> (i32, i32, i32) {
    %c0_i32 = arith.constant 0 : i32
    %c0_i32_0 = arith.constant 0 : i32
    %c0_i32_1 = arith.constant 0 : i32
    return %arg0, %c0_i32, %c0_i32_0 : i32, i32, i32
  }
  func.func @transform_1(%arg0: i32) -> (i32, i32, i32) {
    %c0_i32 = arith.constant 0 : i32
    %c0_i32_0 = arith.constant 0 : i32
    %c0_i32_1 = arith.constant 0 : i32
    return %arg0, %c0_i32, %c0_i32_0 : i32, i32, i32
  }
  func.func @transform_2(%arg0: i32) -> (i32, i32) {
    %c0_i32 = arith.constant 0 : i32
    %c0_i32_0 = arith.constant 0 : i32
    %c0_i32_1 = arith.constant 0 : i32
    return %c0_i32, %c0_i32_0 : i32, i32
  }
  func.func @transform_3(%arg0: i32) -> (i32, i32) {
    %c0_i32 = arith.constant 0 : i32
    %c0_i32_0 = arith.constant 0 : i32
    %c0_i32_1 = arith.constant 0 : i32
    return %c0_i32, %c0_i32_0 : i32, i32
  }
  func.func @transform_4(%arg0: i32) -> (i32, i32) {
    %c0_i32 = arith.constant 0 : i32
    %c0_i32_0 = arith.constant 0 : i32
    %c0_i32_1 = arith.constant 0 : i32
    return %c0_i32, %c0_i32_0 : i32, i32
  }
  func.func @transform_5(%arg0: i32) -> (i32, i32) {
    %c0_i32 = arith.constant 0 : i32
    %c0_i32_0 = arith.constant 0 : i32
    %c0_i32_1 = arith.constant 0 : i32
    return %c0_i32, %c0_i32_0 : i32, i32
  }
  func.func @transform_6(%arg0: i32) -> (i32, i32) {
    %c0_i32 = arith.constant 0 : i32
    %c0_i32_0 = arith.constant 0 : i32
    %c0_i32_1 = arith.constant 0 : i32
    return %c0_i32, %c0_i32_0 : i32, i32
  }
  func.func @transform_7(%arg0: i32) -> (i32, i32) {
    %c0_i32 = arith.constant 0 : i32
    %c0_i32_0 = arith.constant 0 : i32
    %c0_i32_1 = arith.constant 0 : i32
    return %c0_i32, %c0_i32_0 : i32, i32
  }
  func.func @transform_8(%arg0: i32) -> (i32, i32) {
    %c0_i32 = arith.constant 0 : i32
    %c0_i32_0 = arith.constant 0 : i32
    %c0_i32_1 = arith.constant 0 : i32
    return %c0_i32, %c0_i32_0 : i32, i32
  }
  func.func @transform_9(%arg0: i32) -> (i32, i32) {
    %c0_i32 = arith.constant 0 : i32
    %c0_i32_0 = arith.constant 0 : i32
    %c0_i32_1 = arith.constant 0 : i32
    return %c0_i32, %c0_i32_0 : i32, i32
  }
  func.func @transform_10(%arg0: i32) -> (i32, i32) {
    %c0_i32 = arith.constant 0 : i32
    %c0_i32_0 = arith.constant 0 : i32
    %c0_i32_1 = arith.constant 0 : i32
    return %c0_i32, %c0_i32_0 : i32, i32
  }
  func.func @transform_11(%arg0: i32) -> (i32, i32) {
    %c0_i32 = arith.constant 0 : i32
    %c0_i32_0 = arith.constant 0 : i32
    %c0_i32_1 = arith.constant 0 : i32
    return %c0_i32, %c0_i32_0 : i32, i32
  }
  func.func @transform_12(%arg0: i32) -> (i32, i32) {
    %c0_i32 = arith.constant 0 : i32
    %c0_i32_0 = arith.constant 0 : i32
    %c0_i32_1 = arith.constant 0 : i32
    return %c0_i32, %c0_i32_0 : i32, i32
  }
  func.func @transform_13(%arg0: i32) -> (i32, i32) {
    %c0_i32 = arith.constant 0 : i32
    %c0_i32_0 = arith.constant 0 : i32
    %c0_i32_1 = arith.constant 0 : i32
    return %c0_i32, %c0_i32_0 : i32, i32
  }
  func.func @transform_14(%arg0: i32) -> (i32, i32, i32) {
    %c0_i32 = arith.constant 0 : i32
    %c0_i32_0 = arith.constant 0 : i32
    %c0_i32_1 = arith.constant 0 : i32
    return %arg0, %c0_i32, %c0_i32_0 : i32, i32, i32
  }
}

</mosaic_0001>

<llo_original>
// kernel: onnx_model_forward.6
$region0: #{onnx_model_forward.6}
  #allocation0 [shape = 'u32[]', space=smem, size = 0x4, offset = 0x4, fixed_abs, tag = 'smem constant byte address 0x4 - core index']
  #allocation1 [shape = 'u32[144,128]{1,0:T(1,128)}', space=vmem, size = 0x12000, scoped, tag = 'internal scratch']
  %s0 = inlined_call_operand.vmem [shape: f32[210,9], index: 0, kind: input, shape index: {}]
  %s1 = inlined_call_operand.hbm [shape: f32[9,32], index: 1, kind: input, shape index: {}]
  %s2 = inlined_call_operand.hbm [shape: f32[1,32], index: 2, kind: input, shape index: {}]
  %s3 = inlined_call_operand.vmem [shape: f32[210,32], index: 3, kind: output, shape index: {}]
  %s4 = sld [smem:[#allocation0]]
  $region30: #{onnx_model_forward.6} parent=0
    _
  %s6 = ssub.s32 1, %s4
  %s7 = scalar_select 0, %s6, %s4
  $region1: #{onnx_model_forward.6} parent=0
    #allocation2 [shape = 'u8[8192]{0}', space=vmem, size = 0x2000, scoped, tag = 'input window, operand 1, single buffered']
    #allocation3 [shape = 's32[1]{0}', space=sflag, size = 0x4, scoped, tag = 'scoped memory for onnx_model_forward.6']
    #allocation4 [shape = 'u8[512]{0}', space=vmem, size = 0x400, scoped, tag = 'input window, operand 2, single buffered']
    #allocation5 [shape = 's32[1]{0}', space=sflag, size = 0x4, scoped, tag = 'scoped memory for onnx_model_forward.6']
    %8 = vsyncpa [#allocation3], 0
    %9 = vsyncpa [#allocation5], 0
    // Predicated region
    $region2: #{onnx_model_forward.6} parent=1 // pred_check
      _
    $region3: #{onnx_model_forward.6} parent=1 // pred_check_branch
      %11 = sbr.rel (0) target = $region5
    $region4: #{onnx_model_forward.6} parent=1 // pred_region
      _
    $region5: #{onnx_model_forward.6} parent=1 // pred_fallthru
      _
    // Predicated region
    $region6: #{onnx_model_forward.6} parent=1 // pred_check
      _
    $region7: #{onnx_model_forward.6} parent=1 // pred_check_branch
      %13 = sbr.rel (0) target = $region9
    $region8: #{onnx_model_forward.6} parent=1 // pred_region
      %s15 = ssub.s32 256, 256
      %16 = vsyncadd [#allocation3], %s15
      %s17 = sshll.u32 [#allocation2], 4
      %s18 = int_to_ptr.vmem [resolvable:$true] %s17
      %23 = dma.hbm_to_vmem [thread:$0]  %s1, 256, %s18, [#allocation3], 128, 128, 8
    $region9: #{onnx_model_forward.6} parent=1 // pred_fallthru
      _
    // Predicated region
    $region10: #{onnx_model_forward.6} parent=1 // pred_check
      _
    $region11: #{onnx_model_forward.6} parent=1 // pred_check_branch
      %25 = sbr.rel (0) target = $region13
    $region12: #{onnx_model_forward.6} parent=1 // pred_region
      %s27 = ssub.s32 16, 16
      %28 = vsyncadd [#allocation5], %s27
      %s30 = sshll.u32 [#allocation4], 4
      %s31 = int_to_ptr.vmem [resolvable:$true] %s30
      %33 = dma.hbm_to_vmem [thread:$0]  %s2, 16, %s31, [#allocation5]
    $region13: #{onnx_model_forward.6} parent=1 // pred_fallthru
      _
    // Predicated region
    $region14: #{onnx_model_forward.6} parent=1 // pred_check
      _
    $region15: #{onnx_model_forward.6} parent=1 // pred_check_branch
      %35 = sbr.rel (0) target = $region17
    $region16: #{onnx_model_forward.6} parent=1 // pred_region
      %36 = dma.done [#allocation3], 256
    $region17: #{onnx_model_forward.6} parent=1 // pred_fallthru
      _
    // Predicated region
    $region18: #{onnx_model_forward.6} parent=1 // pred_check
      _
    $region19: #{onnx_model_forward.6} parent=1 // pred_check_branch
      %38 = sbr.rel (0) target = $region21
    $region20: #{onnx_model_forward.6} parent=1 // pred_region
      %39 = dma.done [#allocation5], 16
    $region21: #{onnx_model_forward.6} parent=1 // pred_fallthru
      _
    %v40 = vld [vmem:[%s0] sm:$0xff]
    %v41 = vld [vmem:[%s0 + $0x8] sm:$0xff]
    %v42 = vld [vmem:[%s0 + $0x10] sm:$0xff]
    %v43 = vld [vmem:[%s0 + $0x18] sm:$0xff]
    %v44 = vld [vmem:[%s0 + $0x20] sm:$0xff]
    %v45 = vld [vmem:[%s0 + $0x28] sm:$0xff]
    %v46 = vld [vmem:[%s0 + $0x30] sm:$0xff]
    %v47 = vld [vmem:[%s0 + $0x38] sm:$0xff]
    %v48 = vld [vmem:[%s0 + $0x40] sm:$0xff]
    %v49 = vld [vmem:[%s0 + $0x48] sm:$0xff]
    %v50 = vld [vmem:[%s0 + $0x50] sm:$0xff]
    %v51 = vld [vmem:[%s0 + $0x58] sm:$0xff]
    %v52 = vld [vmem:[%s0 + $0x60] sm:$0xff]
    %v53 = vld [vmem:[%s0 + $0x68] sm:$0xff]
    %v54 = vld [vmem:[%s0 + $0x70] sm:$0xff]
    %v55 = vld [vmem:[%s0 + $0x78] sm:$0xff]
    %v56 = vld [vmem:[%s0 + $0x80] sm:$0xff]
    %v57 = vld [vmem:[%s0 + $0x88] sm:$0xff]
    %v58 = vld [vmem:[%s0 + $0x90] sm:$0xff]
    %v59 = vld [vmem:[%s0 + $0x98] sm:$0xff]
    %v60 = vld [vmem:[%s0 + $0xa0] sm:$0xff]
    %v61 = vld [vmem:[%s0 + $0xa8] sm:$0xff]
    %v62 = vld [vmem:[%s0 + $0xb0] sm:$0xff]
    %v63 = vld [vmem:[%s0 + $0xb8] sm:$0xff]
    %v64 = vld [vmem:[%s0 + $0xc0] sm:$0xff]
    %v65 = vld [vmem:[%s0 + $0xc8] sm:$0xff]
    %v66 = vld [vmem:[%s0 + $0xd0] sm:$0x3]
    %v67 = vld [vmem:[#allocation2] sm:$0xff]
    %v68 = vld [vmem:[#allocation2 + $0x8] sm:$0x1]
    %v69 = vld [vmem:[#allocation4] sm:$0x1]
    %v71 = vlaneseq
    %v72 = vshrl.u32 %v71, 7
    %v73 = vsub.s32 0, %v72
    %v74 = vrot.slane %v69, %v73
    %vm76 = vcmask 72704
    %v78 = vsel %vm76, %v40, 0
    %v81 = vsel %vm76, %v41, 0
    %v84 = vsel %vm76, %v42, 0
    %v87 = vsel %vm76, %v43, 0
    %v90 = vsel %vm76, %v44, 0
    %v93 = vsel %vm76, %v45, 0
    %v96 = vsel %vm76, %v46, 0
    %v99 = vsel %vm76, %v47, 0
    %v102 = vsel %vm76, %v48, 0
    %v105 = vsel %vm76, %v49, 0
    %v108 = vsel %vm76, %v50, 0
    %v111 = vsel %vm76, %v51, 0
    %v114 = vsel %vm76, %v52, 0
    %v117 = vsel %vm76, %v53, 0
    %v120 = vsel %vm76, %v54, 0
    %v123 = vsel %vm76, %v55, 0
    %v126 = vsel %vm76, %v56, 0
    %v129 = vsel %vm76, %v57, 0
    %v132 = vsel %vm76, %v58, 0
    %v135 = vsel %vm76, %v59, 0
    %v138 = vsel %vm76, %v60, 0
    %v141 = vsel %vm76, %v61, 0
    %v144 = vsel %vm76, %v62, 0
    %v147 = vsel %vm76, %v63, 0
    %v150 = vsel %vm76, %v64, 0
    %v153 = vsel %vm76, %v65, 0
    %v156 = vsel %vm76, %v66, 0
    %vm158 = vcmask 1040384
    %v160 = vsel %vm158, %v68, 0
    %162 = vmatprep.subr.mxu0 0.0
    %163 = vmatpush1.msra.mxu0 %v67
    %164 = vmatprep.subr.mxu0 0.0
    %165 = vmatpush1.msra.mxu0 %v160
    %166 = vmatprep.subr.mxu0 0.0
    %167 = vmatpush1.msra.mxu0 0.0
    %168 = vmatprep.subr.mxu0 0.0
    %169 = vmatpush1.msra.mxu0 0.0
    %170 = vmatprep.subr.mxu0 0.0
    %171 = vmatpush1.msra.mxu0 0.0
    %172 = vmatprep.subr.mxu0 0.0
    %173 = vmatpush1.msra.mxu0 0.0
    %174 = vmatprep.subr.mxu0 0.0
    %175 = vmatpush1.msra.mxu0 0.0
    %176 = vmatprep.subr.mxu0 0.0
    %177 = vmatpush1.msra.mxu0 0.0
    %178 = vmatprep.subr.mxu0 0.0
    %179 = vmatpush1.msra.mxu0 0.0
    %180 = vmatprep.subr.mxu0 0.0
    %181 = vmatpush1.msra.mxu0 0.0
    %182 = vmatprep.subr.mxu0 0.0
    %183 = vmatpush1.msra.mxu0 0.0
    %184 = vmatprep.subr.mxu0 0.0
    %185 = vmatpush1.msra.mxu0 0.0
    %186 = vmatprep.subr.mxu0 0.0
    %187 = vmatpush1.msra.mxu0 0.0
    %188 = vmatprep.subr.mxu0 0.0
    %189 = vmatpush1.msra.mxu0 0.0
    %190 = vmatprep.subr.mxu0 0.0
    %191 = vmatpush1.msra.mxu0 0.0
    %192 = vmatprep.subr.mxu0 0.0
    %193 = vmatpush1.msra.mxu0 0.0
    %194 = vmatprep.subr.mxu0 0.0
    %195 = vmatpush1.msra.mxu0 0.0
    %196 = vmatprep.subr.mxu0 0.0
    %197 = vmatpush1.msra.mxu0 0.0
    %198 = vmatprep.subr.mxu0 0.0
    %199 = vmatpush1.msra.mxu0 0.0
    %200 = vmatprep.subr.mxu0 0.0
    %201 = vmatpush1.msra.mxu0 0.0
    %202 = vmatprep.subr.mxu0 0.0
    %203 = vmatpush1.msra.mxu0 0.0
    %204 = vmatprep.subr.mxu0 0.0
    %205 = vmatpush1.msra.mxu0 0.0
    %206 = vmatprep.subr.mxu0 0.0
    %207 = vmatpush1.msra.mxu0 0.0
    %208 = vmatprep.subr.mxu0 0.0
    %209 = vmatpush1.msra.mxu0 0.0
    %210 = vmatprep.subr.mxu0 0.0
    %211 = vmatpush1.msra.mxu0 0.0
    %212 = vmatprep.subr.mxu0 0.0
    %213 = vmatpush1.msra.mxu0 0.0
    %214 = vmatprep.subr.mxu0 0.0
    %215 = vmatpush1.msra.mxu0 0.0
    %216 = vmatprep.subr.mxu0 0.0
    %217 = vmatpush1.msra.mxu0 0.0
    %218 = vmatprep.subr.mxu0 0.0
    %219 = vmatpush1.msra.mxu0 0.0
    %220 = vmatprep.subr.mxu0 0.0
    %221 = vmatpush1.msra.mxu0 0.0
    %222 = vmatprep.subr.mxu0 0.0
    %223 = vmatpush1.msra.mxu0 0.0
    %224 = vmatprep.subr.mxu0 0.0
    %225 = vmatpush1.msra.mxu0 0.0
    %226 = vmatprep.mubr.f32.mxu0 0.0
    %227 = vmatmul.mubr.f32.gmra.mrb[0].mxu0 %v78
    %v228 = vpop.f32.mrb[0].mxu0
    %v229 = vadd.f32 %v74, %v228
    %v230 = vpop.f32.mrb[0].mxu0
    %231 = vmatprep.mubr.f32.mxu0 0.0
    %232 = vmatmul.mubr.f32.gmra.mrb[0].mxu0 %v81
    %v233 = vpop.f32.mrb[0].mxu0
    %v234 = vadd.f32 %v74, %v233
    %v235 = vpop.f32.mrb[0].mxu0
    %236 = vmatprep.mubr.f32.mxu0 0.0
    %237 = vmatmul.mubr.f32.gmra.mrb[0].mxu0 %v84
    %v238 = vpop.f32.mrb[0].mxu0
    %v239 = vadd.f32 %v74, %v238
    %v240 = vpop.f32.mrb[0].mxu0
    %241 = vmatprep.mubr.f32.mxu0 0.0
    %242 = vmatmul.mubr.f32.gmra.mrb[0].mxu0 %v87
    %v243 = vpop.f32.mrb[0].mxu0
    %v244 = vadd.f32 %v74, %v243
    %v245 = vpop.f32.mrb[0].mxu0
    %246 = vmatprep.mubr.f32.mxu0 0.0
    %247 = vmatmul.mubr.f32.gmra.mrb[0].mxu0 %v90
    %v248 = vpop.f32.mrb[0].mxu0
    %v249 = vadd.f32 %v74, %v248
    %v250 = vpop.f32.mrb[0].mxu0
    %251 = vmatprep.mubr.f32.mxu0 0.0
    %252 = vmatmul.mubr.f32.gmra.mrb[0].mxu0 %v93
    %v253 = vpop.f32.mrb[0].mxu0
    %v254 = vadd.f32 %v74, %v253
    %v255 = vpop.f32.mrb[0].mxu0
    %256 = vmatprep.mubr.f32.mxu0 0.0
    %257 = vmatmul.mubr.f32.gmra.mrb[0].mxu0 %v96
    %v258 = vpop.f32.mrb[0].mxu0
    %v259 = vadd.f32 %v74, %v258
    %v260 = vpop.f32.mrb[0].mxu0
    %261 = vmatprep.mubr.f32.mxu0 0.0
    %262 = vmatmul.mubr.f32.gmra.mrb[0].mxu0 %v99
    %v263 = vpop.f32.mrb[0].mxu0
    %v264 = vadd.f32 %v74, %v263
    %v265 = vpop.f32.mrb[0].mxu0
    %266 = vmatprep.mubr.f32.mxu0 0.0
    %267 = vmatmul.mubr.f32.gmra.mrb[0].mxu0 %v102
    %v268 = vpop.f32.mrb[0].mxu0
    %v269 = vadd.f32 %v74, %v268
    %v270 = vpop.f32.mrb[0].mxu0
    %271 = vmatprep.mubr.f32.mxu0 0.0
    %272 = vmatmul.mubr.f32.gmra.mrb[0].mxu0 %v105
    %v273 = vpop.f32.mrb[0].mxu0
    %v274 = vadd.f32 %v74, %v273
    %v275 = vpop.f32.mrb[0].mxu0
    %276 = vmatprep.mubr.f32.mxu0 0.0
    %277 = vmatmul.mubr.f32.gmra.mrb[0].mxu0 %v108
    %v278 = vpop.f32.mrb[0].mxu0
    %v279 = vadd.f32 %v74, %v278
    %v280 = vpop.f32.mrb[0].mxu0
    %281 = vmatprep.mubr.f32.mxu0 0.0
    %282 = vmatmul.mubr.f32.gmra.mrb[0].mxu0 %v111
    %v283 = vpop.f32.mrb[0].mxu0
    %v284 = vadd.f32 %v74, %v283
    %v285 = vpop.f32.mrb[0].mxu0
    %286 = vmatprep.mubr.f32.mxu0 0.0
    %287 = vmatmul.mubr.f32.gmra.mrb[0].mxu0 %v114
    %v288 = vpop.f32.mrb[0].mxu0
    %v289 = vadd.f32 %v74, %v288
    %v290 = vpop.f32.mrb[0].mxu0
    %291 = vmatprep.mubr.f32.mxu0 0.0
    %292 = vmatmul.mubr.f32.gmra.mrb[0].mxu0 %v117
    %v293 = vpop.f32.mrb[0].mxu0
    %v294 = vadd.f32 %v74, %v293
    %v295 = vpop.f32.mrb[0].mxu0
    %296 = vmatprep.mubr.f32.mxu0 0.0
    %297 = vmatmul.mubr.f32.gmra.mrb[0].mxu0 %v120
    %v298 = vpop.f32.mrb[0].mxu0
    %v299 = vadd.f32 %v74, %v298
    %v300 = vpop.f32.mrb[0].mxu0
    %301 = vmatprep.mubr.f32.mxu0 0.0
    %302 = vmatmul.mubr.f32.gmra.mrb[0].mxu0 %v123
    %v303 = vpop.f32.mrb[0].mxu0
    %v304 = vadd.f32 %v74, %v303
    %v305 = vpop.f32.mrb[0].mxu0
    %306 = vmatprep.mubr.f32.mxu0 0.0
    %307 = vmatmul.mubr.f32.gmra.mrb[0].mxu0 %v126
    %v308 = vpop.f32.mrb[0].mxu0
    %v309 = vadd.f32 %v74, %v308
    %v310 = vpop.f32.mrb[0].mxu0
    %311 = vmatprep.mubr.f32.mxu0 0.0
    %312 = vmatmul.mubr.f32.gmra.mrb[0].mxu0 %v129
    %v313 = vpop.f32.mrb[0].mxu0
    %v314 = vadd.f32 %v74, %v313
    %v315 = vpop.f32.mrb[0].mxu0
    %316 = vmatprep.mubr.f32.mxu0 0.0
    %317 = vmatmul.mubr.f32.gmra.mrb[0].mxu0 %v132
    %v318 = vpop.f32.mrb[0].mxu0
    %v319 = vadd.f32 %v74, %v318
    %v320 = vpop.f32.mrb[0].mxu0
    %321 = vmatprep.mubr.f32.mxu0 0.0
    %322 = vmatmul.mubr.f32.gmra.mrb[0].mxu0 %v135
    %v323 = vpop.f32.mrb[0].mxu0
    %v324 = vadd.f32 %v74, %v323
    %v325 = vpop.f32.mrb[0].mxu0
    %326 = vmatprep.mubr.f32.mxu0 0.0
    %327 = vmatmul.mubr.f32.gmra.mrb[0].mxu0 %v138
    %v328 = vpop.f32.mrb[0].mxu0
    %v329 = vadd.f32 %v74, %v328
    %v330 = vpop.f32.mrb[0].mxu0
    %331 = vmatprep.mubr.f32.mxu0 0.0
    %332 = vmatmul.mubr.f32.gmra.mrb[0].mxu0 %v141
    %v333 = vpop.f32.mrb[0].mxu0
    %v334 = vadd.f32 %v74, %v333
    %v335 = vpop.f32.mrb[0].mxu0
    %336 = vmatprep.mubr.f32.mxu0 0.0
    %337 = vmatmul.mubr.f32.gmra.mrb[0].mxu0 %v144
    %v338 = vpop.f32.mrb[0].mxu0
    %v339 = vadd.f32 %v74, %v338
    %v340 = vpop.f32.mrb[0].mxu0
    %341 = vmatprep.mubr.f32.mxu0 0.0
    %342 = vmatmul.mubr.f32.gmra.mrb[0].mxu0 %v147
    %v343 = vpop.f32.mrb[0].mxu0
    %v344 = vadd.f32 %v74, %v343
    %v345 = vpop.f32.mrb[0].mxu0
    %346 = vmatprep.mubr.f32.mxu0 0.0
    %347 = vmatmul.mubr.f32.gmra.mrb[0].mxu0 %v150
    %v348 = vpop.f32.mrb[0].mxu0
    %v349 = vadd.f32 %v74, %v348
    %v350 = vpop.f32.mrb[0].mxu0
    %351 = vmatprep.mubr.f32.mxu0 0.0
    %352 = vmatmul.mubr.f32.gmra.mrb[0].mxu0 %v153
    %v353 = vpop.f32.mrb[0].mxu0
    %v354 = vadd.f32 %v74, %v353
    %v355 = vpop.f32.mrb[0].mxu0
    %356 = vmatprep.mubr.f32.mxu0 0.0
    %357 = vmatmul.mubr.f32.gmra.mrb[0].mxu0 %v156
    %v358 = vpop.f32.mrb[0].mxu0
    %v359 = vadd.f32 %v74, %v358
    %v360 = vpop.f32.mrb[0].mxu0
    %361 = vdwg.mxu0
    %v362 = vmax.f32 %v229, 0.0
    %v363 = vmax.f32 %v234, 0.0
    %v364 = vmax.f32 %v239, 0.0
    %v365 = vmax.f32 %v244, 0.0
    %v366 = vmax.f32 %v249, 0.0
    %v367 = vmax.f32 %v254, 0.0
    %v368 = vmax.f32 %v259, 0.0
    %v369 = vmax.f32 %v264, 0.0
    %v370 = vmax.f32 %v269, 0.0
    %v371 = vmax.f32 %v274, 0.0
    %v372 = vmax.f32 %v279, 0.0
    %v373 = vmax.f32 %v284, 0.0
    %v374 = vmax.f32 %v289, 0.0
    %v375 = vmax.f32 %v294, 0.0
    %v376 = vmax.f32 %v299, 0.0
    %v377 = vmax.f32 %v304, 0.0
    %v378 = vmax.f32 %v309, 0.0
    %v379 = vmax.f32 %v314, 0.0
    %v380 = vmax.f32 %v319, 0.0
    %v381 = vmax.f32 %v324, 0.0
    %v382 = vmax.f32 %v329, 0.0
    %v383 = vmax.f32 %v334, 0.0
    %v384 = vmax.f32 %v339, 0.0
    %v385 = vmax.f32 %v344, 0.0
    %v386 = vmax.f32 %v349, 0.0
    %v387 = vmax.f32 %v354, 0.0
    %v388 = vmax.f32 %v359, 0.0
    %vm389 = vcmask 261120
    %390 = vst.msk [vmem:[%s3] sm:$0xff] %vm389, %v362
    %391 = vst.msk [vmem:[%s3 + $0x8] sm:$0xff] %vm389, %v363
    %392 = vst.msk [vmem:[%s3 + $0x10] sm:$0xff] %vm389, %v364
    %393 = vst.msk [vmem:[%s3 + $0x18] sm:$0xff] %vm389, %v365
    %394 = vst.msk [vmem:[%s3 + $0x20] sm:$0xff] %vm389, %v366
    %395 = vst.msk [vmem:[%s3 + $0x28] sm:$0xff] %vm389, %v367
    %396 = vst.msk [vmem:[%s3 + $0x30] sm:$0xff] %vm389, %v368
    %397 = vst.msk [vmem:[%s3 + $0x38] sm:$0xff] %vm389, %v369
    %398 = vst.msk [vmem:[%s3 + $0x40] sm:$0xff] %vm389, %v370
    %399 = vst.msk [vmem:[%s3 + $0x48] sm:$0xff] %vm389, %v371
    %400 = vst.msk [vmem:[%s3 + $0x50] sm:$0xff] %vm389, %v372
    %401 = vst.msk [vmem:[%s3 + $0x58] sm:$0xff] %vm389, %v373
    %402 = vst.msk [vmem:[%s3 + $0x60] sm:$0xff] %vm389, %v374
    %403 = vst.msk [vmem:[%s3 + $0x68] sm:$0xff] %vm389, %v375
    %404 = vst.msk [vmem:[%s3 + $0x70] sm:$0xff] %vm389, %v376
    %405 = vst.msk [vmem:[%s3 + $0x78] sm:$0xff] %vm389, %v377
    %406 = vst.msk [vmem:[%s3 + $0x80] sm:$0xff] %vm389, %v378
    %407 = vst.msk [vmem:[%s3 + $0x88] sm:$0xff] %vm389, %v379
    %408 = vst.msk [vmem:[%s3 + $0x90] sm:$0xff] %vm389, %v380
    %409 = vst.msk [vmem:[%s3 + $0x98] sm:$0xff] %vm389, %v381
    %410 = vst.msk [vmem:[%s3 + $0xa0] sm:$0xff] %vm389, %v382
    %411 = vst.msk [vmem:[%s3 + $0xa8] sm:$0xff] %vm389, %v383
    %412 = vst.msk [vmem:[%s3 + $0xb0] sm:$0xff] %vm389, %v384
    %413 = vst.msk [vmem:[%s3 + $0xb8] sm:$0xff] %vm389, %v385
    %414 = vst.msk [vmem:[%s3 + $0xc0] sm:$0xff] %vm389, %v386
    %415 = vst.msk [vmem:[%s3 + $0xc8] sm:$0xff] %vm389, %v387
    %vm416 = vcmask 254976
    %417 = vst.msk [vmem:[%s3 + $0xd0] sm:$0x3] %vm416, %v388
    // Predicated region
    $region22: #{onnx_model_forward.6} parent=1 // pred_check
      _
    $region23: #{onnx_model_forward.6} parent=1 // pred_check_branch
      %419 = sbr.rel (0) target = $region25
    $region24: #{onnx_model_forward.6} parent=1 // pred_region
      _
    $region25: #{onnx_model_forward.6} parent=1 // pred_fallthru
      _
    // Predicated region
    $region26: #{onnx_model_forward.6} parent=1 // pred_check
      _
    $region27: #{onnx_model_forward.6} parent=1 // pred_check_branch
      %421 = sbr.rel (0) target = $region29
    $region28: #{onnx_model_forward.6} parent=1 // pred_region
      _
    $region29: #{onnx_model_forward.6} parent=1 // pred_fallthru
      _
    %422 = vsyncpa [#allocation3], 1
    %423 = vsyncpa [#allocation5], 1

// kernel: onnx_model_forward.7
$region0: #{onnx_model_forward.7}
  #allocation0 [shape = 'u32[]', space=smem, size = 0x4, offset = 0x4, fixed_abs, tag = 'smem constant byte address 0x4 - core index']
  #allocation1 [shape = 'u32[144,128]{1,0:T(1,128)}', space=vmem, size = 0x12000, scoped, tag = 'internal scratch']
  %s0 = inlined_call_operand.vmem [shape: f32[42,288], index: 0, kind: input, shape index: {}]
  %s1 = inlined_call_operand.vmem [shape: f32[288,32], index: 1, kind: input, shape index: {}]
  %s2 = inlined_call_operand.vmem [shape: f32[1,32], index: 2, kind: input, shape index: {}]
  %s3 = inlined_call_operand.vmem [shape: f32[42,32], index: 3, kind: output, shape index: {}]
  %s4 = sld [smem:[#allocation0]]
  $region22: #{onnx_model_forward.7} parent=0
    _
  %s6 = ssub.s32 1, %s4
  %s7 = scalar_select 0, %s6, %s4
  // Predicated region
  $region2: #{onnx_model_forward.7} parent=0 // pred_check
    _
  $region3: #{onnx_model_forward.7} parent=0 // pred_check_branch
    %9 = sbr.rel (0) target = $region5
  $region4: #{onnx_model_forward.7} parent=0 // pred_region
    _
  $region5: #{onnx_model_forward.7} parent=0 // pred_fallthru
    _
  // Predicated region
  $region6: #{onnx_model_forward.7} parent=0 // pred_check
    _
  $region7: #{onnx_model_forward.7} parent=0 // pred_check_branch
    %11 = sbr.rel (0) target = $region9
  $region8: #{onnx_model_forward.7} parent=0 // pred_region
    _
  $region9: #{onnx_model_forward.7} parent=0 // pred_fallthru
    _
  // Predicated region
  $region10: #{onnx_model_forward.7} parent=0 // pred_check
    _
  $region11: #{onnx_model_forward.7} parent=0 // pred_check_branch
    %13 = sbr.rel (0) target = $region13
  $region12: #{onnx_model_forward.7} parent=0 // pred_region
    _
  $region13: #{onnx_model_forward.7} parent=0 // pred_fallthru
    _
  %v14 = vld [vmem:[%s0] sm:$0xff]
  %v15 = vld [vmem:[%s0 + $0x8] sm:$0xff]
  %v16 = vld [vmem:[%s0 + $0x10] sm:$0xff]
  %v17 = vld [vmem:[%s0 + $0x18] sm:$0xff]
  %v18 = vld [vmem:[%s0 + $0x20] sm:$0xff]
  %v19 = vld [vmem:[%s0 + $0x28] sm:$0xff]
  %v20 = vld [vmem:[%s0 + $0x30] sm:$0xff]
  %v21 = vld [vmem:[%s0 + $0x38] sm:$0xff]
  %v22 = vld [vmem:[%s0 + $0x40] sm:$0xff]
  %v23 = vld [vmem:[%s0 + $0x48] sm:$0xff]
  %v24 = vld [vmem:[%s0 + $0x50] sm:$0xff]
  %v25 = vld [vmem:[%s0 + $0x58] sm:$0xff]
  %v26 = vld [vmem:[%s0 + $0x60] sm:$0xff]
  %v27 = vld [vmem:[%s0 + $0x68] sm:$0xff]
  %v28 = vld [vmem:[%s0 + $0x70] sm:$0xff]
  %v29 = vld [vmem:[%s0 + $0x78] sm:$0x3]
  %v30 = vld [vmem:[%s0 + $0x80] sm:$0x3]
  %v31 = vld [vmem:[%s0 + $0x88] sm:$0x3]
  %v32 = vld [vmem:[%s1] sm:$0xff]
  %v33 = vld [vmem:[%s1 + $0x8] sm:$0xff]
  %v34 = vld [vmem:[%s1 + $0x10] sm:$0xff]
  %v35 = vld [vmem:[%s1 + $0x18] sm:$0xff]
  %v36 = vld [vmem:[%s1 + $0x20] sm:$0xff]
  %v37 = vld [vmem:[%s1 + $0x28] sm:$0xff]
  %v38 = vld [vmem:[%s1 + $0x30] sm:$0xff]
  %v39 = vld [vmem:[%s1 + $0x38] sm:$0xff]
  %v40 = vld [vmem:[%s1 + $0x40] sm:$0xff]
  %v41 = vld [vmem:[%s1 + $0x48] sm:$0xff]
  %v42 = vld [vmem:[%s1 + $0x50] sm:$0xff]
  %v43 = vld [vmem:[%s1 + $0x58] sm:$0xff]
  %v44 = vld [vmem:[%s1 + $0x60] sm:$0xff]
  %v45 = vld [vmem:[%s1 + $0x68] sm:$0xff]
  %v46 = vld [vmem:[%s1 + $0x70] sm:$0xff]
  %v47 = vld [vmem:[%s1 + $0x78] sm:$0xff]
  %v48 = vld [vmem:[%s1 + $0x80] sm:$0xff]
  %v49 = vld [vmem:[%s1 + $0x88] sm:$0xff]
  %v50 = vld [vmem:[%s1 + $0x90] sm:$0xff]
  %v51 = vld [vmem:[%s1 + $0x98] sm:$0xff]
  %v52 = vld [vmem:[%s1 + $0xa0] sm:$0xff]
  %v53 = vld [vmem:[%s1 + $0xa8] sm:$0xff]
  %v54 = vld [vmem:[%s1 + $0xb0] sm:$0xff]
  %v55 = vld [vmem:[%s1 + $0xb8] sm:$0xff]
  %v56 = vld [vmem:[%s1 + $0xc0] sm:$0xff]
  %v57 = vld [vmem:[%s1 + $0xc8] sm:$0xff]
  %v58 = vld [vmem:[%s1 + $0xd0] sm:$0xff]
  %v59 = vld [vmem:[%s1 + $0xd8] sm:$0xff]
  %v60 = vld [vmem:[%s1 + $0xe0] sm:$0xff]
  %v61 = vld [vmem:[%s1 + $0xe8] sm:$0xff]
  %v62 = vld [vmem:[%s1 + $0xf0] sm:$0xff]
  %v63 = vld [vmem:[%s1 + $0xf8] sm:$0xff]
  %v64 = vld [vmem:[%s1 + $0x100] sm:$0xff]
  %v65 = vld [vmem:[%s1 + $0x108] sm:$0xff]
  %v66 = vld [vmem:[%s1 + $0x110] sm:$0xff]
  %v67 = vld [vmem:[%s1 + $0x118] sm:$0xff]
  %v68 = vld [vmem:[%s2] sm:$0x1]
  %v70 = vlaneseq
  %v71 = vshrl.u32 %v70, 7
  %v72 = vsub.s32 0, %v71
  %v73 = vrot.slane %v68, %v72
  %vm75 = vcmask 261120
  %v77 = vsel %vm75, %v16, 0
  %v80 = vsel %vm75, %v19, 0
  %v83 = vsel %vm75, %v22, 0
  %v86 = vsel %vm75, %v25, 0
  %v89 = vsel %vm75, %v28, 0
  %v92 = vsel %vm75, %v31, 0
  %94 = vmatprep.subr.mxu0 0.0
  %95 = vmatpush1.msra.mxu0 %v32
  %96 = vmatprep.subr.mxu0 0.0
  %97 = vmatpush1.msra.mxu0 %v33
  %98 = vmatprep.subr.mxu0 0.0
  %99 = vmatpush1.msra.mxu0 %v34
  %100 = vmatprep.subr.mxu0 0.0
  %101 = vmatpush1.msra.mxu0 %v35
  %102 = vmatprep.subr.mxu0 0.0
  %103 = vmatpush1.msra.mxu0 %v36
  %104 = vmatprep.subr.mxu0 0.0
  %105 = vmatpush1.msra.mxu0 %v37
  %106 = vmatprep.subr.mxu0 0.0
  %107 = vmatpush1.msra.mxu0 %v38
  %108 = vmatprep.subr.mxu0 0.0
  %109 = vmatpush1.msra.mxu0 %v39
  %110 = vmatprep.subr.mxu0 0.0
  %111 = vmatpush1.msra.mxu0 %v40
  %112 = vmatprep.subr.mxu0 0.0
  %113 = vmatpush1.msra.mxu0 %v41
  %114 = vmatprep.subr.mxu0 0.0
  %115 = vmatpush1.msra.mxu0 %v42
  %116 = vmatprep.subr.mxu0 0.0
  %117 = vmatpush1.msra.mxu0 %v43
  %118 = vmatprep.subr.mxu0 0.0
  %119 = vmatpush1.msra.mxu0 %v44
  %120 = vmatprep.subr.mxu0 0.0
  %121 = vmatpush1.msra.mxu0 %v45
  %122 = vmatprep.subr.mxu0 0.0
  %123 = vmatpush1.msra.mxu0 %v46
  %124 = vmatprep.subr.mxu0 0.0
  %125 = vmatpush1.msra.mxu0 %v47
  %126 = vmatprep.subr.mxu0 0.0
  %127 = vmatpush1.msra.mxu0 %v48
  %128 = vmatprep.subr.mxu0 0.0
  %129 = vmatpush1.msra.mxu0 %v49
  %130 = vmatprep.subr.mxu0 0.0
  %131 = vmatpush1.msra.mxu0 %v50
  %132 = vmatprep.subr.mxu0 0.0
  %133 = vmatpush1.msra.mxu0 %v51
  %134 = vmatprep.subr.mxu0 0.0
  %135 = vmatpush1.msra.mxu0 %v52
  %136 = vmatprep.subr.mxu0 0.0
  %137 = vmatpush1.msra.mxu0 %v53
  %138 = vmatprep.subr.mxu0 0.0
  %139 = vmatpush1.msra.mxu0 %v54
  %140 = vmatprep.subr.mxu0 0.0
  %141 = vmatpush1.msra.mxu0 %v55
  %142 = vmatprep.subr.mxu0 0.0
  %143 = vmatpush1.msra.mxu0 %v56
  %144 = vmatprep.subr.mxu0 0.0
  %145 = vmatpush1.msra.mxu0 %v57
  %146 = vmatprep.subr.mxu0 0.0
  %147 = vmatpush1.msra.mxu0 %v58
  %148 = vmatprep.subr.mxu0 0.0
  %149 = vmatpush1.msra.mxu0 %v59
  %150 = vmatprep.subr.mxu0 0.0
  %151 = vmatpush1.msra.mxu0 %v60
  %152 = vmatprep.subr.mxu0 0.0
  %153 = vmatpush1.msra.mxu0 %v61
  %154 = vmatprep.subr.mxu0 0.0
  %155 = vmatpush1.msra.mxu0 %v62
  %156 = vmatprep.subr.mxu0 0.0
  %157 = vmatpush1.msra.mxu0 %v63
  %158 = vmatprep.mubr.f32.mxu0 %v15
  %159 = vmatmul.mubr.f32.gmra.mrb[0].mxu0 %v14
  %v160 = vpop.f32.mrb[0].mxu0
  %v161 = vadd.f32 %v73, %v160
  %v162 = vpop.f32.mrb[0].mxu0
  %163 = vmatprep.mubr.f32.mxu0 %v18
  %164 = vmatmul.mubr.f32.gmra.mrb[0].mxu0 %v17
  %v165 = vpop.f32.mrb[0].mxu0
  %v166 = vadd.f32 %v73, %v165
  %v167 = vpop.f32.mrb[0].mxu0
  %168 = vmatprep.mubr.f32.mxu0 %v21
  %169 = vmatmul.mubr.f32.gmra.mrb[0].mxu0 %v20
  %v170 = vpop.f32.mrb[0].mxu0
  %v171 = vadd.f32 %v73, %v170
  %v172 = vpop.f32.mrb[0].mxu0
  %173 = vmatprep.mubr.f32.mxu0 %v24
  %174 = vmatmul.mubr.f32.gmra.mrb[0].mxu0 %v23
  %v175 = vpop.f32.mrb[0].mxu0
  %v176 = vadd.f32 %v73, %v175
  %v177 = vpop.f32.mrb[0].mxu0
  %178 = vmatprep.mubr.f32.mxu0 %v27
  %179 = vmatmul.mubr.f32.gmra.mrb[0].mxu0 %v26
  %v180 = vpop.f32.mrb[0].mxu0
  %v181 = vadd.f32 %v73, %v180
  %v182 = vpop.f32.mrb[0].mxu0
  %183 = vmatprep.mubr.f32.mxu0 %v30
  %184 = vmatmul.mubr.f32.gmra.mrb[0].mxu0 %v29
  %v185 = vpop.f32.mrb[0].mxu0
  %v186 = vadd.f32 %v73, %v185
  %v187 = vpop.f32.mrb[0].mxu0
  %188 = vdwg.mxu0
  %189 = vmatprep.subr.mxu0 0.0
  %190 = vmatpush1.msra.mxu0 %v64
  %191 = vmatprep.subr.mxu0 0.0
  %192 = vmatpush1.msra.mxu0 %v65
  %193 = vmatprep.subr.mxu0 0.0
  %194 = vmatpush1.msra.mxu0 %v66
  %195 = vmatprep.subr.mxu0 0.0
  %196 = vmatpush1.msra.mxu0 %v67
  %197 = vmatprep.subr.mxu0 0.0
  %198 = vmatpush1.msra.mxu0 0.0
  %199 = vmatprep.subr.mxu0 0.0
  %200 = vmatpush1.msra.mxu0 0.0
  %201 = vmatprep.subr.mxu0 0.0
  %202 = vmatpush1.msra.mxu0 0.0
  %203 = vmatprep.subr.mxu0 0.0
  %204 = vmatpush1.msra.mxu0 0.0
  %205 = vmatprep.subr.mxu0 0.0
  %206 = vmatpush1.msra.mxu0 0.0
  %207 = vmatprep.subr.mxu0 0.0
  %208 = vmatpush1.msra.mxu0 0.0
  %209 = vmatprep.subr.mxu0 0.0
  %210 = vmatpush1.msra.mxu0 0.0
  %211 = vmatprep.subr.mxu0 0.0
  %212 = vmatpush1.msra.mxu0 0.0
  %213 = vmatprep.subr.mxu0 0.0
  %214 = vmatpush1.msra.mxu0 0.0
  %215 = vmatprep.subr.mxu0 0.0
  %216 = vmatpush1.msra.mxu0 0.0
  %217 = vmatprep.subr.mxu0 0.0
  %218 = vmatpush1.msra.mxu0 0.0
  %219 = vmatprep.subr.mxu0 0.0
  %220 = vmatpush1.msra.mxu0 0.0
  %221 = vmatprep.subr.mxu0 0.0
  %222 = vmatpush1.msra.mxu0 0.0
  %223 = vmatprep.subr.mxu0 0.0
  %224 = vmatpush1.msra.mxu0 0.0
  %225 = vmatprep.subr.mxu0 0.0
  %226 = vmatpush1.msra.mxu0 0.0
  %227 = vmatprep.subr.mxu0 0.0
  %228 = vmatpush1.msra.mxu0 0.0
  %229 = vmatprep.subr.mxu0 0.0
  %230 = vmatpush1.msra.mxu0 0.0
  %231 = vmatprep.subr.mxu0 0.0
  %232 = vmatpush1.msra.mxu0 0.0
  %233 = vmatprep.subr.mxu0 0.0
  %234 = vmatpush1.msra.mxu0 0.0
  %235 = vmatprep.subr.mxu0 0.0
  %236 = vmatpush1.msra.mxu0 0.0
  %237 = vmatprep.subr.mxu0 0.0
  %238 = vmatpush1.msra.mxu0 0.0
  %239 = vmatprep.subr.mxu0 0.0
  %240 = vmatpush1.msra.mxu0 0.0
  %241 = vmatprep.subr.mxu0 0.0
  %242 = vmatpush1.msra.mxu0 0.0
  %243 = vmatprep.subr.mxu0 0.0
  %244 = vmatpush1.msra.mxu0 0.0
  %245 = vmatprep.subr.mxu0 0.0
  %246 = vmatpush1.msra.mxu0 0.0
  %247 = vmatprep.subr.mxu0 0.0
  %248 = vmatpush1.msra.mxu0 0.0
  %249 = vmatprep.subr.mxu0 0.0
  %250 = vmatpush1.msra.mxu0 0.0
  %251 = vmatprep.subr.mxu0 0.0
  %252 = vmatpush1.msra.mxu0 0.0
  %253 = vmatprep.mubr.f32.mxu0 0.0
  %254 = vmatmul.mubr.f32.gmra.mrb[0].mxu0 %v77
  %v255 = vpop.f32.mrb[0].mxu0
  %v256 = vadd.f32 %v161, %v255
  %v257 = vpop.f32.mrb[0].mxu0
  %258 = vmatprep.mubr.f32.mxu0 0.0
  %259 = vmatmul.mubr.f32.gmra.mrb[0].mxu0 %v80
  %v260 = vpop.f32.mrb[0].mxu0
  %v261 = vadd.f32 %v166, %v260
  %v262 = vpop.f32.mrb[0].mxu0
  %263 = vmatprep.mubr.f32.mxu0 0.0
  %264 = vmatmul.mubr.f32.gmra.mrb[0].mxu0 %v83
  %v265 = vpop.f32.mrb[0].mxu0
  %v266 = vadd.f32 %v171, %v265
  %v267 = vpop.f32.mrb[0].mxu0
  %268 = vmatprep.mubr.f32.mxu0 0.0
  %269 = vmatmul.mubr.f32.gmra.mrb[0].mxu0 %v86
  %v270 = vpop.f32.mrb[0].mxu0
  %v271 = vadd.f32 %v176, %v270
  %v272 = vpop.f32.mrb[0].mxu0
  %273 = vmatprep.mubr.f32.mxu0 0.0
  %274 = vmatmul.mubr.f32.gmra.mrb[0].mxu0 %v89
  %v275 = vpop.f32.mrb[0].mxu0
  %v276 = vadd.f32 %v181, %v275
  %v277 = vpop.f32.mrb[0].mxu0
  %278 = vmatprep.mubr.f32.mxu0 0.0
  %279 = vmatmul.mubr.f32.gmra.mrb[0].mxu0 %v92
  %v280 = vpop.f32.mrb[0].mxu0
  %v281 = vadd.f32 %v186, %v280
  %v282 = vpop.f32.mrb[0].mxu0
  %283 = vdwg.mxu0
  %v284 = vmax.f32 %v256, 0.0
  %v285 = vmax.f32 %v261, 0.0
  %v286 = vmax.f32 %v266, 0.0
  %v287 = vmax.f32 %v271, 0.0
  %v288 = vmax.f32 %v276, 0.0
  %v289 = vmax.f32 %v281, 0.0
  %290 = vst.msk [vmem:[%s3] sm:$0xff] %vm75, %v284
  %291 = vst.msk [vmem:[%s3 + $0x8] sm:$0xff] %vm75, %v285
  %292 = vst.msk [vmem:[%s3 + $0x10] sm:$0xff] %vm75, %v286
  %293 = vst.msk [vmem:[%s3 + $0x18] sm:$0xff] %vm75, %v287
  %294 = vst.msk [vmem:[%s3 + $0x20] sm:$0xff] %vm75, %v288
  %vm295 = vcmask 254976
  %296 = vst.msk [vmem:[%s3 + $0x28] sm:$0x3] %vm295, %v289
  // Predicated region
  $region14: #{onnx_model_forward.7} parent=0 // pred_check
    _
  $region15: #{onnx_model_forward.7} parent=0 // pred_check_branch
    %298 = sbr.rel (0) target = $region17
  $region16: #{onnx_model_forward.7} parent=0 // pred_region
    _
  $region17: #{onnx_model_forward.7} parent=0 // pred_fallthru
    _
  // Predicated region
  $region18: #{onnx_model_forward.7} parent=0 // pred_check
    _
  $region19: #{onnx_model_forward.7} parent=0 // pred_check_branch
    %300 = sbr.rel (0) target = $region21
  $region20: #{onnx_model_forward.7} parent=0 // pred_region
    _
  $region21: #{onnx_model_forward.7} parent=0 // pred_fallthru
    _

// kernel: onnx_model_forward.8
$region0: #{onnx_model_forward.8}
  #allocation0 [shape = 'u32[]', space=smem, size = 0x4, offset = 0x4, fixed_abs, tag = 'smem constant byte address 0x4 - core index']
  #allocation1 [shape = 'u32[144,128]{1,0:T(1,128)}', space=vmem, size = 0x12000, scoped, tag = 'internal scratch']
  %s0 = inlined_call_operand.vmem [shape: f32[2,7,96], index: 0, kind: input, shape index: {}]
  %s1 = inlined_call_operand.vmem [shape: f32[96,32], index: 1, kind: input, shape index: {}]
  %s2 = inlined_call_operand.vmem [shape: f32[1,32], index: 2, kind: input, shape index: {}]
  %s3 = inlined_call_operand.vmem [shape: f32[7,32], index: 3, kind: input, shape index: {}]
  %s4 = inlined_call_operand.vmem [shape: f32[2,7,32], index: 4, kind: output, shape index: {}]
  %s5 = sld [smem:[#allocation0]]
  $region49: #{onnx_model_forward.8} parent=0
    _
  %s7 = ssub.s32 1, %s5
  %s8 = scalar_select 0, %s7, %s5
  loop: start=0, step=1, limit=4
  $region2: #{onnx_model_forward.8} parent=0 // loop_pre_header
    _
  $region3: #{onnx_model_forward.8} parent=0 // loop_header
    %s10 = sphi 0, %s14
    %p11 = scmp.ge.s32.totalorder %s10, 4
    %s20 = sphi 0, %s22
    %s23 = sphi 0, %s20
    %s24 = sphi 0, %s23
    %s40 = sphi 0, %s24
    %s44 = sphi 0, %s44
    %s46 = sphi 0, %s44
    %s47 = sphi 0, %s46
    %s61 = sphi 0, %s47
    %s65 = sphi 0, %s65
    %s67 = sphi 0, %s65
    %s68 = sphi 0, %s67
    %s82 = sphi 0, %s68
    %s86 = sphi 0, %s86
    %s88 = sphi 0, %s86
    %s89 = sphi 0, %s88
    %s103 = sphi 0, %s89
    %s109 = sphi 0, %s111
    %s112 = sphi 0, %s109
    %s113 = sphi 0, %s112
    %s129 = sphi 0, %s113
  $region4: #{onnx_model_forward.8} parent=0 // loop_header_branch
    %13 = sbr.rel (%p11) target = $region8
  $region5: #{onnx_model_forward.8} parent=0 // loop_body
    %s15 = ssub.s32 %s10, 1
    %s16 = ssub.s32 %s10, 2
    %s17 = sadd.s32 %s10, 1
    %s18 = ssub.s32 %s10, %s17
    %p19 = scmp.eq.s32.totalorder %s18, 0
    %s21 = sadd.s32 %s20, 1
    %s22 = scalar_select %p19, %s20, %s21
    %p25 = pneg %p19
    %p26 = scmp.eq.s32.totalorder %s10, 1
    %p27 = por %p25, %p26
    %p28 = scmp.ne.s32.totalorder %s20, %s23
    %p29 = scmp.eq.s32.totalorder %s10, 0
    %p30 = por %p28, %p29
    %p31 = scmp.ne.s32.totalorder %s20, %s23
    %p32 = scmp.eq.s32.totalorder %s15, 1
    %p33 = por %p31, %p32
    %p34 = scmp.ne.s32.totalorder %s23, %s24
    %p35 = scmp.eq.s32.totalorder %s15, 0
    %p36 = por %p34, %p35
    %p37 = scmp.ne.s32.totalorder %s23, %s24
    %p38 = scmp.eq.s32.totalorder %s16, 1
    %p39 = por %p37, %p38
    %p41 = scmp.ne.s32.totalorder %s24, %s40
    %p42 = scmp.eq.s32.totalorder %s16, 0
    %p43 = por %p41, %p42
    %s45 = sadd.s32 %s44, 1
    %p48 = scmp.eq.s32.totalorder %s10, 1
    %p49 = scmp.ne.s32.totalorder %s44, %s46
    %p50 = scmp.eq.s32.totalorder %s10, 0
    %p51 = por %p49, %p50
    %p52 = scmp.ne.s32.totalorder %s44, %s46
    %p53 = scmp.eq.s32.totalorder %s15, 1
    %p54 = por %p52, %p53
    %p55 = scmp.ne.s32.totalorder %s46, %s47
    %p56 = scmp.eq.s32.totalorder %s15, 0
    %p57 = por %p55, %p56
    %p58 = scmp.ne.s32.totalorder %s46, %s47
    %p59 = scmp.eq.s32.totalorder %s16, 1
    %p60 = por %p58, %p59
    %p62 = scmp.ne.s32.totalorder %s47, %s61
    %p63 = scmp.eq.s32.totalorder %s16, 0
    %p64 = por %p62, %p63
    %s66 = sadd.s32 %s65, 1
    %p69 = scmp.eq.s32.totalorder %s10, 1
    %p70 = scmp.ne.s32.totalorder %s65, %s67
    %p71 = scmp.eq.s32.totalorder %s10, 0
    %p72 = por %p70, %p71
    %p73 = scmp.ne.s32.totalorder %s65, %s67
    %p74 = scmp.eq.s32.totalorder %s15, 1
    %p75 = por %p73, %p74
    %p76 = scmp.ne.s32.totalorder %s67, %s68
    %p77 = scmp.eq.s32.totalorder %s15, 0
    %p78 = por %p76, %p77
    %p79 = scmp.ne.s32.totalorder %s67, %s68
    %p80 = scmp.eq.s32.totalorder %s16, 1
    %p81 = por %p79, %p80
    %p83 = scmp.ne.s32.totalorder %s68, %s82
    %p84 = scmp.eq.s32.totalorder %s16, 0
    %p85 = por %p83, %p84
    %s87 = sadd.s32 %s86, 1
    %p90 = scmp.eq.s32.totalorder %s10, 1
    %p91 = scmp.ne.s32.totalorder %s86, %s88
    %p92 = scmp.eq.s32.totalorder %s10, 0
    %p93 = por %p91, %p92
    %p94 = scmp.ne.s32.totalorder %s86, %s88
    %p95 = scmp.eq.s32.totalorder %s15, 1
    %p96 = por %p94, %p95
    %p97 = scmp.ne.s32.totalorder %s88, %s89
    %p98 = scmp.eq.s32.totalorder %s15, 0
    %p99 = por %p97, %p98
    %p100 = scmp.ne.s32.totalorder %s88, %s89
    %p101 = scmp.eq.s32.totalorder %s16, 1
    %p102 = por %p100, %p101
    %p104 = scmp.ne.s32.totalorder %s89, %s103
    %p105 = scmp.eq.s32.totalorder %s16, 0
    %p106 = por %p104, %p105
    %s107 = ssub.s32 %s10, %s17
    %p108 = scmp.eq.s32.totalorder %s107, 0
    %s110 = sadd.s32 %s109, 1
    %s111 = scalar_select %p108, %s109, %s110
    %p114 = pneg %p108
    %p115 = scmp.eq.s32.totalorder %s10, 1
    %p116 = por %p114, %p115
    %p117 = scmp.ne.s32.totalorder %s109, %s112
    %p118 = scmp.eq.s32.totalorder %s10, 0
    %p119 = por %p117, %p118
    %p120 = scmp.ne.s32.totalorder %s109, %s112
    %p121 = scmp.eq.s32.totalorder %s15, 1
    %p122 = por %p120, %p121
    %p123 = scmp.ne.s32.totalorder %s112, %s113
    %p124 = scmp.eq.s32.totalorder %s15, 0
    %p125 = por %p123, %p124
    %p126 = scmp.ne.s32.totalorder %s112, %s113
    %p127 = scmp.eq.s32.totalorder %s16, 1
    %p128 = por %p126, %p127
    %p130 = scmp.ne.s32.totalorder %s113, %s129
    %p131 = scmp.eq.s32.totalorder %s16, 0
    %p132 = por %p130, %p131
    %p133 = scmp.le.s32.totalorder 1, %s10
    %p134 = scmp.lt.s32.totalorder %s10, 3
    %p135 = pnand %p133, %p134
    %p136 = pneg %p135
    // Predicated region
    $region9: #{onnx_model_forward.8} parent=5 // pred_check
      _
    $region10: #{onnx_model_forward.8} parent=5 // pred_check_branch
      %138 = sbr.rel (%p135) target = $region12
    $region11: #{onnx_model_forward.8} parent=5 // pred_region
      %s139 = ssub.s32 %s10, 1
      // Predicated region
      $region13: #{onnx_model_forward.8} parent=11 // pred_check
        %p140 = pneg %p57
      $region14: #{onnx_model_forward.8} parent=11 // pred_check_branch
        %142 = sbr.rel (%p140) target = $region16
      $region15: #{onnx_model_forward.8} parent=11 // pred_region
        _
      $region16: #{onnx_model_forward.8} parent=11 // pred_fallthru
        _
      // Predicated region
      $region17: #{onnx_model_forward.8} parent=11 // pred_check
        %p143 = pneg %p78
      $region18: #{onnx_model_forward.8} parent=11 // pred_check_branch
        %145 = sbr.rel (%p143) target = $region20
      $region19: #{onnx_model_forward.8} parent=11 // pred_region
        _
      $region20: #{onnx_model_forward.8} parent=11 // pred_fallthru
        _
      // Predicated region
      $region21: #{onnx_model_forward.8} parent=11 // pred_check
        %p146 = pneg %p99
      $region22: #{onnx_model_forward.8} parent=11 // pred_check_branch
        %148 = sbr.rel (%p146) target = $region24
      $region23: #{onnx_model_forward.8} parent=11 // pred_region
        _
      $region24: #{onnx_model_forward.8} parent=11 // pred_fallthru
        _
    $region12: #{onnx_model_forward.8} parent=5 // pred_fallthru
      _
    %p149 = scmp.lt.s32.totalorder %s10, 2
    // Predicated region
    $region25: #{onnx_model_forward.8} parent=5 // pred_check
      %p150 = pneg %p149
    $region26: #{onnx_model_forward.8} parent=5 // pred_check_branch
      %152 = sbr.rel (%p150) target = $region28
    $region27: #{onnx_model_forward.8} parent=5 // pred_region
      // Predicated region
      $region29: #{onnx_model_forward.8} parent=27 // pred_check
        %p153 = pneg %p30
      $region30: #{onnx_model_forward.8} parent=27 // pred_check_branch
        %155 = sbr.rel (%p153) target = $region32
      $region31: #{onnx_model_forward.8} parent=27 // pred_region
        %p156 = scmp.lt.s32.totalorder %s10, 1
        %s157 = scalar_select %p156, %s10, 1
        %s158 = smul.addr %s157, 8
        %s159 = scalar_lea.vmem %s0, %s158
      $region32: #{onnx_model_forward.8} parent=27 // pred_fallthru
        _
    $region28: #{onnx_model_forward.8} parent=5 // pred_fallthru
      _
    %p160 = scmp.le.s32.totalorder 1, %s10
    %p161 = scmp.lt.s32.totalorder %s10, 3
    %p162 = pnand %p160, %p161
    %p163 = pneg %p162
    // Predicated region
    $region33: #{onnx_model_forward.8} parent=5 // pred_check
      _
    $region34: #{onnx_model_forward.8} parent=5 // pred_check_branch
      %165 = sbr.rel (%p162) target = $region36
    $region35: #{onnx_model_forward.8} parent=5 // pred_region
      %s166 = ssub.s32 %s10, 1
      %p167 = scmp.lt.s32.totalorder %s15, 1
      %s168 = scalar_select %p167, %s15, 1
      %s169 = smul.addr %s168, 8
      %s170 = scalar_lea.vmem %s0, %s169
      %p171 = pneg %p36
      %p172 = pneg %p33
      %p173 = pneg %p57
      %p174 = pneg %p54
      %p175 = pneg %p78
      %p176 = pneg %p75
      %p177 = pneg %p99
      %p178 = pneg %p96
      %p179 = pneg %p125
      %p180 = pneg %p122
      %p181 = scmp.lt.s32.totalorder %s15, 1
      %s182 = scalar_select %p181, %s15, 1
      %s183 = smul.addr %s182, 8
      %s184 = scalar_lea.vmem %s4, %s183
      %p185 = scmp.lt.s32.totalorder %s15, 1
      %s186 = scalar_select %p185, %s15, 1
      %s187 = smul.addr %s186, 8
      %s188 = scalar_lea.vmem %s0, %s187
      %p189 = scmp.lt.s32.totalorder %s15, 1
      %s190 = scalar_select %p189, %s15, 1
      %s191 = smul.addr %s190, 8
      %s192 = scalar_lea.vmem %s4, %s191
      %v193 = vld [vmem:[%s188] sm:$0x7f]
      %v194 = vld [vmem:[%s1] sm:$0xff]
      %v195 = vld [vmem:[%s1 + $0x8] sm:$0xff]
      %v196 = vld [vmem:[%s1 + $0x10] sm:$0xff]
      %v197 = vld [vmem:[%s1 + $0x18] sm:$0xff]
      %v198 = vld [vmem:[%s1 + $0x20] sm:$0xff]
      %v199 = vld [vmem:[%s1 + $0x28] sm:$0xff]
      %v200 = vld [vmem:[%s1 + $0x30] sm:$0xff]
      %v201 = vld [vmem:[%s1 + $0x38] sm:$0xff]
      %v202 = vld [vmem:[%s1 + $0x40] sm:$0xff]
      %v203 = vld [vmem:[%s1 + $0x48] sm:$0xff]
      %v204 = vld [vmem:[%s1 + $0x50] sm:$0xff]
      %v205 = vld [vmem:[%s1 + $0x58] sm:$0xff]
      %v206 = vld [vmem:[%s2] sm:$0x1]
      %v208 = vlaneseq
      %v209 = vshrl.u32 %v208, 7
      %v210 = vsub.s32 0, %v209
      %v211 = vrot.slane %v206, %v210
      %vm213 = vcmask 785408
      %v215 = vsel %vm213, %v193, 0
      %217 = vmatprep.subr.mxu0 0.0
      %218 = vmatpush1.msra.mxu0 %v194
      %219 = vmatprep.subr.mxu0 0.0
      %220 = vmatpush1.msra.mxu0 %v195
      %221 = vmatprep.subr.mxu0 0.0
      %222 = vmatpush1.msra.mxu0 %v196
      %223 = vmatprep.subr.mxu0 0.0
      %224 = vmatpush1.msra.mxu0 %v197
      %225 = vmatprep.subr.mxu0 0.0
      %226 = vmatpush1.msra.mxu0 %v198
      %227 = vmatprep.subr.mxu0 0.0
      %228 = vmatpush1.msra.mxu0 %v199
      %229 = vmatprep.subr.mxu0 0.0
      %230 = vmatpush1.msra.mxu0 %v200
      %231 = vmatprep.subr.mxu0 0.0
      %232 = vmatpush1.msra.mxu0 %v201
      %233 = vmatprep.subr.mxu0 0.0
      %234 = vmatpush1.msra.mxu0 %v202
      %235 = vmatprep.subr.mxu0 0.0
      %236 = vmatpush1.msra.mxu0 %v203
      %237 = vmatprep.subr.mxu0 0.0
      %238 = vmatpush1.msra.mxu0 %v204
      %239 = vmatprep.subr.mxu0 0.0
      %240 = vmatpush1.msra.mxu0 %v205
      %241 = vmatprep.subr.mxu0 0.0
      %242 = vmatpush1.msra.mxu0 0.0
      %243 = vmatprep.subr.mxu0 0.0
      %244 = vmatpush1.msra.mxu0 0.0
      %245 = vmatprep.subr.mxu0 0.0
      %246 = vmatpush1.msra.mxu0 0.0
      %247 = vmatprep.subr.mxu0 0.0
      %248 = vmatpush1.msra.mxu0 0.0
      %249 = vmatprep.subr.mxu0 0.0
      %250 = vmatpush1.msra.mxu0 0.0
      %251 = vmatprep.subr.mxu0 0.0
      %252 = vmatpush1.msra.mxu0 0.0
      %253 = vmatprep.subr.mxu0 0.0
      %254 = vmatpush1.msra.mxu0 0.0
      %255 = vmatprep.subr.mxu0 0.0
      %256 = vmatpush1.msra.mxu0 0.0
      %257 = vmatprep.subr.mxu0 0.0
      %258 = vmatpush1.msra.mxu0 0.0
      %259 = vmatprep.subr.mxu0 0.0
      %260 = vmatpush1.msra.mxu0 0.0
      %261 = vmatprep.subr.mxu0 0.0
      %262 = vmatpush1.msra.mxu0 0.0
      %263 = vmatprep.subr.mxu0 0.0
      %264 = vmatpush1.msra.mxu0 0.0
      %265 = vmatprep.subr.mxu0 0.0
      %266 = vmatpush1.msra.mxu0 0.0
      %267 = vmatprep.subr.mxu0 0.0
      %268 = vmatpush1.msra.mxu0 0.0
      %269 = vmatprep.subr.mxu0 0.0
      %270 = vmatpush1.msra.mxu0 0.0
      %271 = vmatprep.subr.mxu0 0.0
      %272 = vmatpush1.msra.mxu0 0.0
      %273 = vmatprep.subr.mxu0 0.0
      %274 = vmatpush1.msra.mxu0 0.0
      %275 = vmatprep.subr.mxu0 0.0
      %276 = vmatpush1.msra.mxu0 0.0
      %277 = vmatprep.subr.mxu0 0.0
      %278 = vmatpush1.msra.mxu0 0.0
      %279 = vmatprep.subr.mxu0 0.0
      %280 = vmatpush1.msra.mxu0 0.0
      %281 = vmatprep.mubr.f32.mxu0 0.0
      %282 = vmatmul.mubr.f32.gmra.mrb[0].mxu0 %v215
      %v283 = vpop.f32.mrb[0].mxu0
      %v284 = vadd.f32 %v211, %v283
      %v285 = vpop.f32.mrb[0].mxu0
      %286 = vdwg.mxu0
      %v287 = vmul.f32 %v284, 5.656854
      %v288 = vld [vmem:[%s3] sm:$0x7f]
      %v289 = vadd.f32 %v287, %v288
      %vm290 = vcmask 260096
      %291 = vst.msk [vmem:[%s192] sm:$0x7f] %vm290, %v289
      %p292 = scmp.lt.s32.totalorder %s15, 1
      %s293 = scalar_select %p292, %s15, 1
      %s294 = smul.addr %s293, 8
      %s295 = scalar_lea.vmem %s4, %s294
      // Predicated region
      $region37: #{onnx_model_forward.8} parent=35 // pred_check
        %p296 = pneg %p122
      $region38: #{onnx_model_forward.8} parent=35 // pred_check_branch
        %298 = sbr.rel (%p296) target = $region40
      $region39: #{onnx_model_forward.8} parent=35 // pred_region
        _
      $region40: #{onnx_model_forward.8} parent=35 // pred_fallthru
        _
    $region36: #{onnx_model_forward.8} parent=5 // pred_fallthru
      _
    %p299 = scmp.le.s32.totalorder 2, %s10
    // Predicated region
    $region41: #{onnx_model_forward.8} parent=5 // pred_check
      %p300 = pneg %p299
    $region42: #{onnx_model_forward.8} parent=5 // pred_check_branch
      %302 = sbr.rel (%p300) target = $region44
    $region43: #{onnx_model_forward.8} parent=5 // pred_region
      %s303 = ssub.s32 %s10, 2
      // Predicated region
      $region45: #{onnx_model_forward.8} parent=43 // pred_check
        %p304 = pneg %p128
      $region46: #{onnx_model_forward.8} parent=43 // pred_check_branch
        %306 = sbr.rel (%p304) target = $region48
      $region47: #{onnx_model_forward.8} parent=43 // pred_region
        %p307 = scmp.lt.s32.totalorder %s16, 1
        %s308 = scalar_select %p307, %s16, 1
        %s309 = smul.addr %s308, 8
        %s310 = scalar_lea.vmem %s4, %s309
      $region48: #{onnx_model_forward.8} parent=43 // pred_fallthru
        _
    $region44: #{onnx_model_forward.8} parent=5 // pred_fallthru
      _
  $region6: #{onnx_model_forward.8} parent=0 // loop_footer
    %s14 = sadd.s32 1, %s10
  $region7: #{onnx_model_forward.8} parent=0 // loop_footer_branch
    %9 = sbr.rel target = $region3
  $region8: #{onnx_model_forward.8} parent=0 // loop_exit
    _

// kernel: onnx_model_forward.11
$region0: #{onnx_model_forward.11}
  #allocation0 [shape = 'u32[]', space=smem, size = 0x4, offset = 0x4, fixed_abs, tag = 'smem constant byte address 0x4 - core index']
  #allocation1 [shape = 'u32[144,128]{1,0:T(1,128)}', space=vmem, size = 0x12000, scoped, tag = 'internal scratch']
  %s0 = inlined_call_operand.vmem [shape: f32[14,32], index: 0, kind: input, shape index: {}]
  %s1 = inlined_call_operand.vmem [shape: f32[1,32], index: 1, kind: input, shape index: {}]
  %s2 = inlined_call_operand.vmem [shape: f32[1,32], index: 2, kind: input, shape index: {}]
  %s3 = inlined_call_operand.vmem [shape: f32[32,48], index: 3, kind: input, shape index: {}]
  %s4 = inlined_call_operand.vmem [shape: f32[1,48], index: 4, kind: input, shape index: {}]
  %s5 = inlined_call_operand.vmem [shape: f32[14,48], index: 5, kind: output, shape index: {}]
  %s6 = sld [smem:[#allocation0]]
  $region30: #{onnx_model_forward.11} parent=0
    _
  %s8 = ssub.s32 1, %s6
  %s9 = scalar_select 0, %s8, %s6
  // Predicated region
  $region2: #{onnx_model_forward.11} parent=0 // pred_check
    _
  $region3: #{onnx_model_forward.11} parent=0 // pred_check_branch
    %11 = sbr.rel (0) target = $region5
  $region4: #{onnx_model_forward.11} parent=0 // pred_region
    _
  $region5: #{onnx_model_forward.11} parent=0 // pred_fallthru
    _
  // Predicated region
  $region6: #{onnx_model_forward.11} parent=0 // pred_check
    _
  $region7: #{onnx_model_forward.11} parent=0 // pred_check_branch
    %13 = sbr.rel (0) target = $region9
  $region8: #{onnx_model_forward.11} parent=0 // pred_region
    _
  $region9: #{onnx_model_forward.11} parent=0 // pred_fallthru
    _
  // Predicated region
  $region10: #{onnx_model_forward.11} parent=0 // pred_check
    _
  $region11: #{onnx_model_forward.11} parent=0 // pred_check_branch
    %15 = sbr.rel (0) target = $region13
  $region12: #{onnx_model_forward.11} parent=0 // pred_region
    _
  $region13: #{onnx_model_forward.11} parent=0 // pred_fallthru
    _
  // Predicated region
  $region14: #{onnx_model_forward.11} parent=0 // pred_check
    _
  $region15: #{onnx_model_forward.11} parent=0 // pred_check_branch
    %17 = sbr.rel (0) target = $region17
  $region16: #{onnx_model_forward.11} parent=0 // pred_region
    _
  $region17: #{onnx_model_forward.11} parent=0 // pred_fallthru
    _
  // Predicated region
  $region18: #{onnx_model_forward.11} parent=0 // pred_check
    _
  $region19: #{onnx_model_forward.11} parent=0 // pred_check_branch
    %19 = sbr.rel (0) target = $region21
  $region20: #{onnx_model_forward.11} parent=0 // pred_region
    _
  $region21: #{onnx_model_forward.11} parent=0 // pred_fallthru
    _
  %v20 = vld [vmem:[%s0] sm:$0xff]
  %v21 = vld [vmem:[%s0 + $0x8] sm:$0x3f]
  %vm22 = vcmask 261120
  %v23 = vsel %vm22, %v20, 0.0
  %24 = vadd.xlane.f32.xlu0 %v23
  %v25 = vpop.xlane.xlu0 %24
  %vm26 = vcmask 259072
  %v27 = vsel %vm26, %v21, 0.0
  %28 = vadd.xlane.f32.xlu0 %v27
  %v29 = vpop.xlane.xlu0 %28
  %v30 = vrcp.pop 32.0
  %v31 = vmul.f32 %v25, %v30
  %v32 = vmul.f32 %v29, %v30
  %v33 = vsub.f32 %v20, %v31
  %v34 = vsub.f32 %v21, %v32
  %v35 = vmul.f32 %v33, %v33
  %v36 = vmul.f32 %v34, %v34
  %v37 = vsel %vm22, %v35, 0.0
  %38 = vadd.xlane.f32.xlu0 %v37
  %v39 = vpop.xlane.xlu0 %38
  %v40 = vsel %vm26, %v36, 0.0
  %41 = vadd.xlane.f32.xlu0 %v40
  %v42 = vpop.xlane.xlu0 %41
  %v43 = vmul.f32 %v39, %v30
  %v44 = vmul.f32 %v42, %v30
  %v45 = vadd.f32 %v43, 1e-05
  %v46 = vadd.f32 %v44, 1e-05
  %v47 = vrsqrt.pop %v45
  %v48 = vrsqrt.pop %v46
  %v49 = vmul.f32 %v33, %v47
  %v50 = vmul.f32 %v34, %v48
  %v51 = vld [vmem:[%s1] sm:$0x1]
  %v53 = vlaneseq
  %v54 = vshrl.u32 %v53, 7
  %v55 = vsub.s32 0, %v54
  %v56 = vrot.slane %v51, %v55
  %v58 = vmul.f32 %v49, %v56
  %v59 = vmul.f32 %v50, %v56
  %v60 = vld [vmem:[%s2] sm:$0x1]
  %v62 = vlaneseq
  %v63 = vshrl.u32 %v62, 7
  %v64 = vsub.s32 0, %v63
  %v65 = vrot.slane %v60, %v64
  %v67 = vadd.f32 %v58, %v65
  %v68 = vadd.f32 %v59, %v65
  %v69 = vld [vmem:[%s3] sm:$0xff]
  %v70 = vld [vmem:[%s3 + $0x8] sm:$0xff]
  %v71 = vld [vmem:[%s3 + $0x10] sm:$0xff]
  %v72 = vld [vmem:[%s3 + $0x18] sm:$0xff]
  %v73 = vld [vmem:[%s4] sm:$0x1]
  %v75 = vlaneseq
  %v76 = vshrl.u32 %v75, 7
  %v77 = vsub.s32 0, %v76
  %v78 = vrot.slane %v73, %v77
  %v81 = vsel %vm22, %v67, 0
  %v84 = vsel %vm22, %v68, 0
  %86 = vmatprep.subr.mxu0 0.0
  %87 = vmatpush1.msra.mxu0 %v69
  %88 = vmatprep.subr.mxu0 0.0
  %89 = vmatpush1.msra.mxu0 %v70
  %90 = vmatprep.subr.mxu0 0.0
  %91 = vmatpush1.msra.mxu0 %v71
  %92 = vmatprep.subr.mxu0 0.0
  %93 = vmatpush1.msra.mxu0 %v72
  %94 = vmatprep.subr.mxu0 0.0
  %95 = vmatpush1.msra.mxu0 0.0
  %96 = vmatprep.subr.mxu0 0.0
  %97 = vmatpush1.msra.mxu0 0.0
  %98 = vmatprep.subr.mxu0 0.0
  %99 = vmatpush1.msra.mxu0 0.0
  %100 = vmatprep.subr.mxu0 0.0
  %101 = vmatpush1.msra.mxu0 0.0
  %102 = vmatprep.subr.mxu0 0.0
  %103 = vmatpush1.msra.mxu0 0.0
  %104 = vmatprep.subr.mxu0 0.0
  %105 = vmatpush1.msra.mxu0 0.0
  %106 = vmatprep.subr.mxu0 0.0
  %107 = vmatpush1.msra.mxu0 0.0
  %108 = vmatprep.subr.mxu0 0.0
  %109 = vmatpush1.msra.mxu0 0.0
  %110 = vmatprep.subr.mxu0 0.0
  %111 = vmatpush1.msra.mxu0 0.0
  %112 = vmatprep.subr.mxu0 0.0
  %113 = vmatpush1.msra.mxu0 0.0
  %114 = vmatprep.subr.mxu0 0.0
  %115 = vmatpush1.msra.mxu0 0.0
  %116 = vmatprep.subr.mxu0 0.0
  %117 = vmatpush1.msra.mxu0 0.0
  %118 = vmatprep.subr.mxu0 0.0
  %119 = vmatpush1.msra.mxu0 0.0
  %120 = vmatprep.subr.mxu0 0.0
  %121 = vmatpush1.msra.mxu0 0.0
  %122 = vmatprep.subr.mxu0 0.0
  %123 = vmatpush1.msra.mxu0 0.0
  %124 = vmatprep.subr.mxu0 0.0
  %125 = vmatpush1.msra.mxu0 0.0
  %126 = vmatprep.subr.mxu0 0.0
  %127 = vmatpush1.msra.mxu0 0.0
  %128 = vmatprep.subr.mxu0 0.0
  %129 = vmatpush1.msra.mxu0 0.0
  %130 = vmatprep.subr.mxu0 0.0
  %131 = vmatpush1.msra.mxu0 0.0
  %132 = vmatprep.subr.mxu0 0.0
  %133 = vmatpush1.msra.mxu0 0.0
  %134 = vmatprep.subr.mxu0 0.0
  %135 = vmatpush1.msra.mxu0 0.0
  %136 = vmatprep.subr.mxu0 0.0
  %137 = vmatpush1.msra.mxu0 0.0
  %138 = vmatprep.subr.mxu0 0.0
  %139 = vmatpush1.msra.mxu0 0.0
  %140 = vmatprep.subr.mxu0 0.0
  %141 = vmatpush1.msra.mxu0 0.0
  %142 = vmatprep.subr.mxu0 0.0
  %143 = vmatpush1.msra.mxu0 0.0
  %144 = vmatprep.subr.mxu0 0.0
  %145 = vmatpush1.msra.mxu0 0.0
  %146 = vmatprep.subr.mxu0 0.0
  %147 = vmatpush1.msra.mxu0 0.0
  %148 = vmatprep.subr.mxu0 0.0
  %149 = vmatpush1.msra.mxu0 0.0
  %150 = vmatprep.mubr.f32.mxu0 0.0
  %151 = vmatmul.mubr.f32.gmra.mrb[0].mxu0 %v81
  %v152 = vpop.f32.mrb[0].mxu0
  %v153 = vadd.f32 %v78, %v152
  %v154 = vpop.f32.mrb[0].mxu0
  %155 = vmatprep.mubr.f32.mxu0 0.0
  %156 = vmatmul.mubr.f32.gmra.mrb[0].mxu0 %v84
  %v157 = vpop.f32.mrb[0].mxu0
  %v158 = vadd.f32 %v78, %v157
  %v159 = vpop.f32.mrb[0].mxu0
  %160 = vdwg.mxu0
  %vm161 = vcmask 392192
  %v162 = vsel %vm161, %v153, -inf
  %163 = vmax.xlane.f32.xlu0 %v162
  %v164 = vpop.xlane.xlu0 %163
  %vm165 = vcmask 390144
  %v166 = vsel %vm165, %v158, -inf
  %167 = vmax.xlane.f32.xlu0 %v166
  %v168 = vpop.xlane.xlu0 %167
  %v169 = vsub.f32 %v153, %v164
  %v170 = vsub.f32 %v158, %v168
  %v171 = vmul.f32 %v169, 1.442695
  %v172 = vpow.pop %v171
  %v173 = vmul.f32 %v170, 1.442695
  %v174 = vpow.pop %v173
  %v175 = vsel %vm161, %v172, 0.0
  %176 = vadd.xlane.f32.xlu0 %v175
  %v177 = vpop.xlane.xlu0 %176
  %v178 = vsel %vm165, %v174, 0.0
  %179 = vadd.xlane.f32.xlu0 %v178
  %v180 = vpop.xlane.xlu0 %179
  %v181 = vlog2.pop %v177
  %v182 = vmul.f32 %v181, 0.6931472
  %v183 = vlog2.pop %v180
  %v184 = vmul.f32 %v183, 0.6931472
  %v185 = vsub.f32 %v169, %v182
  %v186 = vsub.f32 %v170, %v184
  %187 = vst.msk [vmem:[%s5] sm:$0xff] %vm161, %v185
  %188 = vst.msk [vmem:[%s5 + $0x8] sm:$0x3f] %vm165, %v186
  // Predicated region
  $region22: #{onnx_model_forward.11} parent=0 // pred_check
    _
  $region23: #{onnx_model_forward.11} parent=0 // pred_check_branch
    %190 = sbr.rel (0) target = $region25
  $region24: #{onnx_model_forward.11} parent=0 // pred_region
    _
  $region25: #{onnx_model_forward.11} parent=0 // pred_fallthru
    _
  // Predicated region
  $region26: #{onnx_model_forward.11} parent=0 // pred_check
    _
  $region27: #{onnx_model_forward.11} parent=0 // pred_check_branch
    %192 = sbr.rel (0) target = $region29
  $region28: #{onnx_model_forward.11} parent=0 // pred_region
    _
  $region29: #{onnx_model_forward.11} parent=0 // pred_fallthru
    _

// kernel: onnx_model_forward.9
$region0: #{onnx_model_forward.9}
  #allocation0 [shape = 'u32[]', space=smem, size = 0x4, offset = 0x4, fixed_abs, tag = 'smem constant byte address 0x4 - core index']
  #allocation1 [shape = 'u32[144,128]{1,0:T(1,128)}', space=vmem, size = 0x12000, scoped, tag = 'internal scratch']
  %s0 = inlined_call_operand.vmem [shape: f32[2,7,32], index: 0, kind: input, shape index: {}]
  %s1 = inlined_call_operand.vmem [shape: f32[2,1,7], index: 1, kind: input, shape index: {}]
  %s2 = inlined_call_operand.vmem [shape: f32[1,32], index: 2, kind: input, shape index: {}]
  %s3 = inlined_call_operand.vmem [shape: f32[1,32], index: 3, kind: input, shape index: {}]
  %s4 = inlined_call_operand.vmem [shape: f32[32,96], index: 4, kind: input, shape index: {}]
  %s5 = inlined_call_operand.vmem [shape: f32[1,96], index: 5, kind: input, shape index: {}]
  %s6 = inlined_call_operand.vmem [shape: f32[32,32], index: 6, kind: input, shape index: {}]
  %s7 = inlined_call_operand.vmem [shape: f32[1,32], index: 7, kind: input, shape index: {}]
  %s8 = inlined_call_operand.vmem [shape: f32[1,32], index: 8, kind: input, shape index: {}]
  %s9 = inlined_call_operand.vmem [shape: f32[1,32], index: 9, kind: input, shape index: {}]
  %s10 = inlined_call_operand.vmem [shape: f32[32,64], index: 10, kind: input, shape index: {}]
  %s11 = inlined_call_operand.vmem [shape: f32[1,64], index: 11, kind: input, shape index: {}]
  %s12 = inlined_call_operand.vmem [shape: f32[64,32], index: 12, kind: input, shape index: {}]
  %s13 = inlined_call_operand.vmem [shape: f32[1,32], index: 13, kind: input, shape index: {}]
  %s14 = inlined_call_operand.vmem [shape: f32[2,7,32], index: 14, kind: output, shape index: {}]
  %s15 = sld [smem:[#allocation0]]
  $region89: #{onnx_model_forward.9} parent=0
    _
  %s17 = ssub.s32 1, %s15
  %s18 = scalar_select 0, %s17, %s15
  loop: start=0, step=1, limit=4
  $region2: #{onnx_model_forward.9} parent=0 // loop_pre_header
    _
  $region3: #{onnx_model_forward.9} parent=0 // loop_header
    %s20 = sphi 0, %s24
    %p21 = scmp.ge.s32.totalorder %s20, 4
    %s30 = sphi 0, %s32
    %s33 = sphi 0, %s30
    %s34 = sphi 0, %s33
    %s50 = sphi 0, %s34
    %s56 = sphi 0, %s58
    %s59 = sphi 0, %s56
    %s60 = sphi 0, %s59
    %s76 = sphi 0, %s60
    %s80 = sphi 0, %s80
    %s82 = sphi 0, %s80
    %s83 = sphi 0, %s82
    %s97 = sphi 0, %s83
    %s101 = sphi 0, %s101
    %s103 = sphi 0, %s101
    %s104 = sphi 0, %s103
    %s118 = sphi 0, %s104
    %s122 = sphi 0, %s122
    %s124 = sphi 0, %s122
    %s125 = sphi 0, %s124
    %s139 = sphi 0, %s125
    %s143 = sphi 0, %s143
    %s145 = sphi 0, %s143
    %s146 = sphi 0, %s145
    %s160 = sphi 0, %s146
    %s164 = sphi 0, %s164
    %s166 = sphi 0, %s164
    %s167 = sphi 0, %s166
    %s181 = sphi 0, %s167
    %s185 = sphi 0, %s185
    %s187 = sphi 0, %s185
    %s188 = sphi 0, %s187
    %s202 = sphi 0, %s188
    %s206 = sphi 0, %s206
    %s208 = sphi 0, %s206
    %s209 = sphi 0, %s208
    %s223 = sphi 0, %s209
    %s227 = sphi 0, %s227
    %s229 = sphi 0, %s227
    %s230 = sphi 0, %s229
    %s244 = sphi 0, %s230
    %s248 = sphi 0, %s248
    %s250 = sphi 0, %s248
    %s251 = sphi 0, %s250
    %s265 = sphi 0, %s251
    %s269 = sphi 0, %s269
    %s271 = sphi 0, %s269
    %s272 = sphi 0, %s271
    %s286 = sphi 0, %s272
    %s290 = sphi 0, %s290
    %s292 = sphi 0, %s290
    %s293 = sphi 0, %s292
    %s307 = sphi 0, %s293
    %s311 = sphi 0, %s311
    %s313 = sphi 0, %s311
    %s314 = sphi 0, %s313
    %s328 = sphi 0, %s314
    %s334 = sphi 0, %s336
    %s337 = sphi 0, %s334
    %s338 = sphi 0, %s337
    %s354 = sphi 0, %s338
  $region4: #{onnx_model_forward.9} parent=0 // loop_header_branch
    %23 = sbr.rel (%p21) target = $region8
  $region5: #{onnx_model_forward.9} parent=0 // loop_body
    %s25 = ssub.s32 %s20, 1
    %s26 = ssub.s32 %s20, 2
    %s27 = sadd.s32 %s20, 1
    %s28 = ssub.s32 %s20, %s27
    %p29 = scmp.eq.s32.totalorder %s28, 0
    %s31 = sadd.s32 %s30, 1
    %s32 = scalar_select %p29, %s30, %s31
    %p35 = pneg %p29
    %p36 = scmp.eq.s32.totalorder %s20, 1
    %p37 = por %p35, %p36
    %p38 = scmp.ne.s32.totalorder %s30, %s33
    %p39 = scmp.eq.s32.totalorder %s20, 0
    %p40 = por %p38, %p39
    %p41 = scmp.ne.s32.totalorder %s30, %s33
    %p42 = scmp.eq.s32.totalorder %s25, 1
    %p43 = por %p41, %p42
    %p44 = scmp.ne.s32.totalorder %s33, %s34
    %p45 = scmp.eq.s32.totalorder %s25, 0
    %p46 = por %p44, %p45
    %p47 = scmp.ne.s32.totalorder %s33, %s34
    %p48 = scmp.eq.s32.totalorder %s26, 1
    %p49 = por %p47, %p48
    %p51 = scmp.ne.s32.totalorder %s34, %s50
    %p52 = scmp.eq.s32.totalorder %s26, 0
    %p53 = por %p51, %p52
    %s54 = ssub.s32 %s20, %s27
    %p55 = scmp.eq.s32.totalorder %s54, 0
    %s57 = sadd.s32 %s56, 1
    %s58 = scalar_select %p55, %s56, %s57
    %p61 = pneg %p55
    %p62 = scmp.eq.s32.totalorder %s20, 1
    %p63 = por %p61, %p62
    %p64 = scmp.ne.s32.totalorder %s56, %s59
    %p65 = scmp.eq.s32.totalorder %s20, 0
    %p66 = por %p64, %p65
    %p67 = scmp.ne.s32.totalorder %s56, %s59
    %p68 = scmp.eq.s32.totalorder %s25, 1
    %p69 = por %p67, %p68
    %p70 = scmp.ne.s32.totalorder %s59, %s60
    %p71 = scmp.eq.s32.totalorder %s25, 0
    %p72 = por %p70, %p71
    %p73 = scmp.ne.s32.totalorder %s59, %s60
    %p74 = scmp.eq.s32.totalorder %s26, 1
    %p75 = por %p73, %p74
    %p77 = scmp.ne.s32.totalorder %s60, %s76
    %p78 = scmp.eq.s32.totalorder %s26, 0
    %p79 = por %p77, %p78
    %s81 = sadd.s32 %s80, 1
    %p84 = scmp.eq.s32.totalorder %s20, 1
    %p85 = scmp.ne.s32.totalorder %s80, %s82
    %p86 = scmp.eq.s32.totalorder %s20, 0
    %p87 = por %p85, %p86
    %p88 = scmp.ne.s32.totalorder %s80, %s82
    %p89 = scmp.eq.s32.totalorder %s25, 1
    %p90 = por %p88, %p89
    %p91 = scmp.ne.s32.totalorder %s82, %s83
    %p92 = scmp.eq.s32.totalorder %s25, 0
    %p93 = por %p91, %p92
    %p94 = scmp.ne.s32.totalorder %s82, %s83
    %p95 = scmp.eq.s32.totalorder %s26, 1
    %p96 = por %p94, %p95
    %p98 = scmp.ne.s32.totalorder %s83, %s97
    %p99 = scmp.eq.s32.totalorder %s26, 0
    %p100 = por %p98, %p99
    %s102 = sadd.s32 %s101, 1
    %p105 = scmp.eq.s32.totalorder %s20, 1
    %p106 = scmp.ne.s32.totalorder %s101, %s103
    %p107 = scmp.eq.s32.totalorder %s20, 0
    %p108 = por %p106, %p107
    %p109 = scmp.ne.s32.totalorder %s101, %s103
    %p110 = scmp.eq.s32.totalorder %s25, 1
    %p111 = por %p109, %p110
    %p112 = scmp.ne.s32.totalorder %s103, %s104
    %p113 = scmp.eq.s32.totalorder %s25, 0
    %p114 = por %p112, %p113
    %p115 = scmp.ne.s32.totalorder %s103, %s104
    %p116 = scmp.eq.s32.totalorder %s26, 1
    %p117 = por %p115, %p116
    %p119 = scmp.ne.s32.totalorder %s104, %s118
    %p120 = scmp.eq.s32.totalorder %s26, 0
    %p121 = por %p119, %p120
    %s123 = sadd.s32 %s122, 1
    %p126 = scmp.eq.s32.totalorder %s20, 1
    %p127 = scmp.ne.s32.totalorder %s122, %s124
    %p128 = scmp.eq.s32.totalorder %s20, 0
    %p129 = por %p127, %p128
    %p130 = scmp.ne.s32.totalorder %s122, %s124
    %p131 = scmp.eq.s32.totalorder %s25, 1
    %p132 = por %p130, %p131
    %p133 = scmp.ne.s32.totalorder %s124, %s125
    %p134 = scmp.eq.s32.totalorder %s25, 0
    %p135 = por %p133, %p134
    %p136 = scmp.ne.s32.totalorder %s124, %s125
    %p137 = scmp.eq.s32.totalorder %s26, 1
    %p138 = por %p136, %p137
    %p140 = scmp.ne.s32.totalorder %s125, %s139
    %p141 = scmp.eq.s32.totalorder %s26, 0
    %p142 = por %p140, %p141
    %s144 = sadd.s32 %s143, 1
    %p147 = scmp.eq.s32.totalorder %s20, 1
    %p148 = scmp.ne.s32.totalorder %s143, %s145
    %p149 = scmp.eq.s32.totalorder %s20, 0
    %p150 = por %p148, %p149
    %p151 = scmp.ne.s32.totalorder %s143, %s145
    %p152 = scmp.eq.s32.totalorder %s25, 1
    %p153 = por %p151, %p152
    %p154 = scmp.ne.s32.totalorder %s145, %s146
    %p155 = scmp.eq.s32.totalorder %s25, 0
    %p156 = por %p154, %p155
    %p157 = scmp.ne.s32.totalorder %s145, %s146
    %p158 = scmp.eq.s32.totalorder %s26, 1
    %p159 = por %p157, %p158
    %p161 = scmp.ne.s32.totalorder %s146, %s160
    %p162 = scmp.eq.s32.totalorder %s26, 0
    %p163 = por %p161, %p162
    %s165 = sadd.s32 %s164, 1
    %p168 = scmp.eq.s32.totalorder %s20, 1
    %p169 = scmp.ne.s32.totalorder %s164, %s166
    %p170 = scmp.eq.s32.totalorder %s20, 0
    %p171 = por %p169, %p170
    %p172 = scmp.ne.s32.totalorder %s164, %s166
    %p173 = scmp.eq.s32.totalorder %s25, 1
    %p174 = por %p172, %p173
    %p175 = scmp.ne.s32.totalorder %s166, %s167
    %p176 = scmp.eq.s32.totalorder %s25, 0
    %p177 = por %p175, %p176
    %p178 = scmp.ne.s32.totalorder %s166, %s167
    %p179 = scmp.eq.s32.totalorder %s26, 1
    %p180 = por %p178, %p179
    %p182 = scmp.ne.s32.totalorder %s167, %s181
    %p183 = scmp.eq.s32.totalorder %s26, 0
    %p184 = por %p182, %p183
    %s186 = sadd.s32 %s185, 1
    %p189 = scmp.eq.s32.totalorder %s20, 1
    %p190 = scmp.ne.s32.totalorder %s185, %s187
    %p191 = scmp.eq.s32.totalorder %s20, 0
    %p192 = por %p190, %p191
    %p193 = scmp.ne.s32.totalorder %s185, %s187
    %p194 = scmp.eq.s32.totalorder %s25, 1
    %p195 = por %p193, %p194
    %p196 = scmp.ne.s32.totalorder %s187, %s188
    %p197 = scmp.eq.s32.totalorder %s25, 0
    %p198 = por %p196, %p197
    %p199 = scmp.ne.s32.totalorder %s187, %s188
    %p200 = scmp.eq.s32.totalorder %s26, 1
    %p201 = por %p199, %p200
    %p203 = scmp.ne.s32.totalorder %s188, %s202
    %p204 = scmp.eq.s32.totalorder %s26, 0
    %p205 = por %p203, %p204
    %s207 = sadd.s32 %s206, 1
    %p210 = scmp.eq.s32.totalorder %s20, 1
    %p211 = scmp.ne.s32.totalorder %s206, %s208
    %p212 = scmp.eq.s32.totalorder %s20, 0
    %p213 = por %p211, %p212
    %p214 = scmp.ne.s32.totalorder %s206, %s208
    %p215 = scmp.eq.s32.totalorder %s25, 1
    %p216 = por %p214, %p215
    %p217 = scmp.ne.s32.totalorder %s208, %s209
    %p218 = scmp.eq.s32.totalorder %s25, 0
    %p219 = por %p217, %p218
    %p220 = scmp.ne.s32.totalorder %s208, %s209
    %p221 = scmp.eq.s32.totalorder %s26, 1
    %p222 = por %p220, %p221
    %p224 = scmp.ne.s32.totalorder %s209, %s223
    %p225 = scmp.eq.s32.totalorder %s26, 0
    %p226 = por %p224, %p225
    %s228 = sadd.s32 %s227, 1
    %p231 = scmp.eq.s32.totalorder %s20, 1
    %p232 = scmp.ne.s32.totalorder %s227, %s229
    %p233 = scmp.eq.s32.totalorder %s20, 0
    %p234 = por %p232, %p233
    %p235 = scmp.ne.s32.totalorder %s227, %s229
    %p236 = scmp.eq.s32.totalorder %s25, 1
    %p237 = por %p235, %p236
    %p238 = scmp.ne.s32.totalorder %s229, %s230
    %p239 = scmp.eq.s32.totalorder %s25, 0
    %p240 = por %p238, %p239
    %p241 = scmp.ne.s32.totalorder %s229, %s230
    %p242 = scmp.eq.s32.totalorder %s26, 1
    %p243 = por %p241, %p242
    %p245 = scmp.ne.s32.totalorder %s230, %s244
    %p246 = scmp.eq.s32.totalorder %s26, 0
    %p247 = por %p245, %p246
    %s249 = sadd.s32 %s248, 1
    %p252 = scmp.eq.s32.totalorder %s20, 1
    %p253 = scmp.ne.s32.totalorder %s248, %s250
    %p254 = scmp.eq.s32.totalorder %s20, 0
    %p255 = por %p253, %p254
    %p256 = scmp.ne.s32.totalorder %s248, %s250
    %p257 = scmp.eq.s32.totalorder %s25, 1
    %p258 = por %p256, %p257
    %p259 = scmp.ne.s32.totalorder %s250, %s251
    %p260 = scmp.eq.s32.totalorder %s25, 0
    %p261 = por %p259, %p260
    %p262 = scmp.ne.s32.totalorder %s250, %s251
    %p263 = scmp.eq.s32.totalorder %s26, 1
    %p264 = por %p262, %p263
    %p266 = scmp.ne.s32.totalorder %s251, %s265
    %p267 = scmp.eq.s32.totalorder %s26, 0
    %p268 = por %p266, %p267
    %s270 = sadd.s32 %s269, 1
    %p273 = scmp.eq.s32.totalorder %s20, 1
    %p274 = scmp.ne.s32.totalorder %s269, %s271
    %p275 = scmp.eq.s32.totalorder %s20, 0
    %p276 = por %p274, %p275
    %p277 = scmp.ne.s32.totalorder %s269, %s271
    %p278 = scmp.eq.s32.totalorder %s25, 1
    %p279 = por %p277, %p278
    %p280 = scmp.ne.s32.totalorder %s271, %s272
    %p281 = scmp.eq.s32.totalorder %s25, 0
    %p282 = por %p280, %p281
    %p283 = scmp.ne.s32.totalorder %s271, %s272
    %p284 = scmp.eq.s32.totalorder %s26, 1
    %p285 = por %p283, %p284
    %p287 = scmp.ne.s32.totalorder %s272, %s286
    %p288 = scmp.eq.s32.totalorder %s26, 0
    %p289 = por %p287, %p288
    %s291 = sadd.s32 %s290, 1
    %p294 = scmp.eq.s32.totalorder %s20, 1
    %p295 = scmp.ne.s32.totalorder %s290, %s292
    %p296 = scmp.eq.s32.totalorder %s20, 0
    %p297 = por %p295, %p296
    %p298 = scmp.ne.s32.totalorder %s290, %s292
    %p299 = scmp.eq.s32.totalorder %s25, 1
    %p300 = por %p298, %p299
    %p301 = scmp.ne.s32.totalorder %s292, %s293
    %p302 = scmp.eq.s32.totalorder %s25, 0
    %p303 = por %p301, %p302
    %p304 = scmp.ne.s32.totalorder %s292, %s293
    %p305 = scmp.eq.s32.totalorder %s26, 1
    %p306 = por %p304, %p305
    %p308 = scmp.ne.s32.totalorder %s293, %s307
    %p309 = scmp.eq.s32.totalorder %s26, 0
    %p310 = por %p308, %p309
    %s312 = sadd.s32 %s311, 1
    %p315 = scmp.eq.s32.totalorder %s20, 1
    %p316 = scmp.ne.s32.totalorder %s311, %s313
    %p317 = scmp.eq.s32.totalorder %s20, 0
    %p318 = por %p316, %p317
    %p319 = scmp.ne.s32.totalorder %s311, %s313
    %p320 = scmp.eq.s32.totalorder %s25, 1
    %p321 = por %p319, %p320
    %p322 = scmp.ne.s32.totalorder %s313, %s314
    %p323 = scmp.eq.s32.totalorder %s25, 0
    %p324 = por %p322, %p323
    %p325 = scmp.ne.s32.totalorder %s313, %s314
    %p326 = scmp.eq.s32.totalorder %s26, 1
    %p327 = por %p325, %p326
    %p329 = scmp.ne.s32.totalorder %s314, %s328
    %p330 = scmp.eq.s32.totalorder %s26, 0
    %p331 = por %p329, %p330
    %s332 = ssub.s32 %s20, %s27
    %p333 = scmp.eq.s32.totalorder %s332, 0
    %s335 = sadd.s32 %s334, 1
    %s336 = scalar_select %p333, %s334, %s335
    %p339 = pneg %p333
    %p340 = scmp.eq.s32.totalorder %s20, 1
    %p341 = por %p339, %p340
    %p342 = scmp.ne.s32.totalorder %s334, %s337
    %p343 = scmp.eq.s32.totalorder %s20, 0
    %p344 = por %p342, %p343
    %p345 = scmp.ne.s32.totalorder %s334, %s337
    %p346 = scmp.eq.s32.totalorder %s25, 1
    %p347 = por %p345, %p346
    %p348 = scmp.ne.s32.totalorder %s337, %s338
    %p349 = scmp.eq.s32.totalorder %s25, 0
    %p350 = por %p348, %p349
    %p351 = scmp.ne.s32.totalorder %s337, %s338
    %p352 = scmp.eq.s32.totalorder %s26, 1
    %p353 = por %p351, %p352
    %p355 = scmp.ne.s32.totalorder %s338, %s354
    %p356 = scmp.eq.s32.totalorder %s26, 0
    %p357 = por %p355, %p356
    %p358 = scmp.le.s32.totalorder 1, %s20
    %p359 = scmp.lt.s32.totalorder %s20, 3
    %p360 = pnand %p358, %p359
    %p361 = pneg %p360
    // Predicated region
    $region9: #{onnx_model_forward.9} parent=5 // pred_check
      _
    $region10: #{onnx_model_forward.9} parent=5 // pred_check_branch
      %363 = sbr.rel (%p360) target = $region12
    $region11: #{onnx_model_forward.9} parent=5 // pred_region
      %s364 = ssub.s32 %s20, 1
      // Predicated region
      $region13: #{onnx_model_forward.9} parent=11 // pred_check
        %p365 = pneg %p93
      $region14: #{onnx_model_forward.9} parent=11 // pred_check_branch
        %367 = sbr.rel (%p365) target = $region16
      $region15: #{onnx_model_forward.9} parent=11 // pred_region
        _
      $region16: #{onnx_model_forward.9} parent=11 // pred_fallthru
        _
      // Predicated region
      $region17: #{onnx_model_forward.9} parent=11 // pred_check
        %p368 = pneg %p114
      $region18: #{onnx_model_forward.9} parent=11 // pred_check_branch
        %370 = sbr.rel (%p368) target = $region20
      $region19: #{onnx_model_forward.9} parent=11 // pred_region
        _
      $region20: #{onnx_model_forward.9} parent=11 // pred_fallthru
        _
      // Predicated region
      $region21: #{onnx_model_forward.9} parent=11 // pred_check
        %p371 = pneg %p135
      $region22: #{onnx_model_forward.9} parent=11 // pred_check_branch
        %373 = sbr.rel (%p371) target = $region24
      $region23: #{onnx_model_forward.9} parent=11 // pred_region
        _
      $region24: #{onnx_model_forward.9} parent=11 // pred_fallthru
        _
      // Predicated region
      $region25: #{onnx_model_forward.9} parent=11 // pred_check
        %p374 = pneg %p156
      $region26: #{onnx_model_forward.9} parent=11 // pred_check_branch
        %376 = sbr.rel (%p374) target = $region28
      $region27: #{onnx_model_forward.9} parent=11 // pred_region
        _
      $region28: #{onnx_model_forward.9} parent=11 // pred_fallthru
        _
      // Predicated region
      $region29: #{onnx_model_forward.9} parent=11 // pred_check
        %p377 = pneg %p177
      $region30: #{onnx_model_forward.9} parent=11 // pred_check_branch
        %379 = sbr.rel (%p377) target = $region32
      $region31: #{onnx_model_forward.9} parent=11 // pred_region
        _
      $region32: #{onnx_model_forward.9} parent=11 // pred_fallthru
        _
      // Predicated region
      $region33: #{onnx_model_forward.9} parent=11 // pred_check
        %p380 = pneg %p198
      $region34: #{onnx_model_forward.9} parent=11 // pred_check_branch
        %382 = sbr.rel (%p380) target = $region36
      $region35: #{onnx_model_forward.9} parent=11 // pred_region
        _
      $region36: #{onnx_model_forward.9} parent=11 // pred_fallthru
        _
      // Predicated region
      $region37: #{onnx_model_forward.9} parent=11 // pred_check
        %p383 = pneg %p219
      $region38: #{onnx_model_forward.9} parent=11 // pred_check_branch
        %385 = sbr.rel (%p383) target = $region40
      $region39: #{onnx_model_forward.9} parent=11 // pred_region
        _
      $region40: #{onnx_model_forward.9} parent=11 // pred_fallthru
        _
      // Predicated region
      $region41: #{onnx_model_forward.9} parent=11 // pred_check
        %p386 = pneg %p240
      $region42: #{onnx_model_forward.9} parent=11 // pred_check_branch
        %388 = sbr.rel (%p386) target = $region44
      $region43: #{onnx_model_forward.9} parent=11 // pred_region
        _
      $region44: #{onnx_model_forward.9} parent=11 // pred_fallthru
        _
      // Predicated region
      $region45: #{onnx_model_forward.9} parent=11 // pred_check
        %p389 = pneg %p261
      $region46: #{onnx_model_forward.9} parent=11 // pred_check_branch
        %391 = sbr.rel (%p389) target = $region48
      $region47: #{onnx_model_forward.9} parent=11 // pred_region
        _
      $region48: #{onnx_model_forward.9} parent=11 // pred_fallthru
        _
      // Predicated region
      $region49: #{onnx_model_forward.9} parent=11 // pred_check
        %p392 = pneg %p282
      $region50: #{onnx_model_forward.9} parent=11 // pred_check_branch
        %394 = sbr.rel (%p392) target = $region52
      $region51: #{onnx_model_forward.9} parent=11 // pred_region
        _
      $region52: #{onnx_model_forward.9} parent=11 // pred_fallthru
        _
      // Predicated region
      $region53: #{onnx_model_forward.9} parent=11 // pred_check
        %p395 = pneg %p303
      $region54: #{onnx_model_forward.9} parent=11 // pred_check_branch
        %397 = sbr.rel (%p395) target = $region56
      $region55: #{onnx_model_forward.9} parent=11 // pred_region
        _
      $region56: #{onnx_model_forward.9} parent=11 // pred_fallthru
        _
      // Predicated region
      $region57: #{onnx_model_forward.9} parent=11 // pred_check
        %p398 = pneg %p324
      $region58: #{onnx_model_forward.9} parent=11 // pred_check_branch
        %400 = sbr.rel (%p398) target = $region60
      $region59: #{onnx_model_forward.9} parent=11 // pred_region
        _
      $region60: #{onnx_model_forward.9} parent=11 // pred_fallthru
        _
    $region12: #{onnx_model_forward.9} parent=5 // pred_fallthru
      _
    %p401 = scmp.lt.s32.totalorder %s20, 2
    // Predicated region
    $region61: #{onnx_model_forward.9} parent=5 // pred_check
      %p402 = pneg %p401
    $region62: #{onnx_model_forward.9} parent=5 // pred_check_branch
      %404 = sbr.rel (%p402) target = $region64
    $region63: #{onnx_model_forward.9} parent=5 // pred_region
      // Predicated region
      $region65: #{onnx_model_forward.9} parent=63 // pred_check
        %p405 = pneg %p40
      $region66: #{onnx_model_forward.9} parent=63 // pred_check_branch
        %407 = sbr.rel (%p405) target = $region68
      $region67: #{onnx_model_forward.9} parent=63 // pred_region
        %p408 = scmp.lt.s32.totalorder %s20, 1
        %s409 = scalar_select %p408, %s20, 1
        %s410 = smul.addr %s409, 8
        %s411 = scalar_lea.vmem %s0, %s410
      $region68: #{onnx_model_forward.9} parent=63 // pred_fallthru
        _
      // Predicated region
      $region69: #{onnx_model_forward.9} parent=63 // pred_check
        %p412 = pneg %p66
      $region70: #{onnx_model_forward.9} parent=63 // pred_check_branch
        %414 = sbr.rel (%p412) target = $region72
      $region71: #{onnx_model_forward.9} parent=63 // pred_region
        %p415 = scmp.lt.s32.totalorder %s20, 1
        %s416 = scalar_select %p415, %s20, 1
        %s417 = scalar_lea.vmem %s1, %s416
      $region72: #{onnx_model_forward.9} parent=63 // pred_fallthru
        _
    $region64: #{onnx_model_forward.9} parent=5 // pred_fallthru
      _
    %p418 = scmp.le.s32.totalorder 1, %s20
    %p419 = scmp.lt.s32.totalorder %s20, 3
    %p420 = pnand %p418, %p419
    %p421 = pneg %p420
    // Predicated region
    $region73: #{onnx_model_forward.9} parent=5 // pred_check
      _
    $region74: #{onnx_model_forward.9} parent=5 // pred_check_branch
      %423 = sbr.rel (%p420) target = $region76
    $region75: #{onnx_model_forward.9} parent=5 // pred_region
      %s424 = ssub.s32 %s20, 1
      %p425 = scmp.lt.s32.totalorder %s25, 1
      %s426 = scalar_select %p425, %s25, 1
      %s427 = smul.addr %s426, 8
      %s428 = scalar_lea.vmem %s0, %s427
      %p429 = pneg %p46
      %p430 = pneg %p43
      %p431 = scmp.lt.s32.totalorder %s25, 1
      %s432 = scalar_select %p431, %s25, 1
      %s433 = scalar_lea.vmem %s1, %s432
      %p434 = pneg %p72
      %p435 = pneg %p69
      %p436 = pneg %p93
      %p437 = pneg %p90
      %p438 = pneg %p114
      %p439 = pneg %p111
      %p440 = pneg %p135
      %p441 = pneg %p132
      %p442 = pneg %p156
      %p443 = pneg %p153
      %p444 = pneg %p177
      %p445 = pneg %p174
      %p446 = pneg %p198
      %p447 = pneg %p195
      %p448 = pneg %p219
      %p449 = pneg %p216
      %p450 = pneg %p240
      %p451 = pneg %p237
      %p452 = pneg %p261
      %p453 = pneg %p258
      %p454 = pneg %p282
      %p455 = pneg %p279
      %p456 = pneg %p303
      %p457 = pneg %p300
      %p458 = pneg %p324
      %p459 = pneg %p321
      %p460 = pneg %p350
      %p461 = pneg %p347
      %p462 = scmp.lt.s32.totalorder %s25, 1
      %s463 = scalar_select %p462, %s25, 1
      %s464 = smul.addr %s463, 8
      %s465 = scalar_lea.vmem %s14, %s464
      %p466 = scmp.lt.s32.totalorder %s25, 1
      %s467 = scalar_select %p466, %s25, 1
      %s468 = smul.addr %s467, 8
      %s469 = scalar_lea.vmem %s0, %s468
      %p470 = scmp.lt.s32.totalorder %s25, 1
      %s471 = scalar_select %p470, %s25, 1
      %s472 = scalar_lea.vmem %s1, %s471
      %p473 = scmp.lt.s32.totalorder %s25, 1
      %s474 = scalar_select %p473, %s25, 1
      %s475 = smul.addr %s474, 8
      %s476 = scalar_lea.vmem %s14, %s475
      %v477 = vld [vmem:[%s469] sm:$0x7f]
      %v478 = vld [vmem:[%s472] sm:$0x1]
      %vm479 = vcmask 260096
      %v480 = vsel %vm479, %v477, 0.0
      %481 = vadd.xlane.f32.xlu0 %v480
      %v482 = vpop.xlane.xlu0 %481
      %v483 = vrcp.pop 32.0
      %v484 = vmul.f32 %v482, %v483
      %v485 = vsub.f32 %v477, %v484
      %v486 = vmul.f32 %v485, %v485
      %v487 = vsel %vm479, %v486, 0.0
      %488 = vadd.xlane.f32.xlu0 %v487
      %v489 = vpop.xlane.xlu0 %488
      %v490 = vmul.f32 %v489, %v483
      %v491 = vadd.f32 %v490, 1e-05
      %v492 = vrsqrt.pop %v491
      %v493 = vmul.f32 %v485, %v492
      %v494 = vld [vmem:[%s2] sm:$0x1]
      %v496 = vlaneseq
      %v497 = vshrl.u32 %v496, 7
      %v498 = vsub.s32 0, %v497
      %v499 = vrot.slane %v494, %v498
      %v501 = vmul.f32 %v493, %v499
      %v502 = vld [vmem:[%s3] sm:$0x1]
      %v504 = vlaneseq
      %v505 = vshrl.u32 %v504, 7
      %v506 = vsub.s32 0, %v505
      %v507 = vrot.slane %v502, %v506
      %v509 = vadd.f32 %v501, %v507
      %v510 = vld [vmem:[%s4] sm:$0xff]
      %v511 = vld [vmem:[%s4 + $0x8] sm:$0xff]
      %v512 = vld [vmem:[%s4 + $0x10] sm:$0xff]
      %v513 = vld [vmem:[%s4 + $0x18] sm:$0xff]
      %v514 = vld [vmem:[%s5] sm:$0x1]
      %v516 = vlaneseq
      %v517 = vshrl.u32 %v516, 7
      %v518 = vsub.s32 0, %v517
      %v519 = vrot.slane %v514, %v518
      %vm521 = vcmask 261120
      %v523 = vsel %vm521, %v509, 0
      %525 = vmatprep.subr.mxu0 0.0
      %526 = vmatpush1.msra.mxu0 %v510
      %527 = vmatprep.subr.mxu0 0.0
      %528 = vmatpush1.msra.mxu0 %v511
      %529 = vmatprep.subr.mxu0 0.0
      %530 = vmatpush1.msra.mxu0 %v512
      %531 = vmatprep.subr.mxu0 0.0
      %532 = vmatpush1.msra.mxu0 %v513
      %533 = vmatprep.subr.mxu0 0.0
      %534 = vmatpush1.msra.mxu0 0.0
      %535 = vmatprep.subr.mxu0 0.0
      %536 = vmatpush1.msra.mxu0 0.0
      %537 = vmatprep.subr.mxu0 0.0
      %538 = vmatpush1.msra.mxu0 0.0
      %539 = vmatprep.subr.mxu0 0.0
      %540 = vmatpush1.msra.mxu0 0.0
      %541 = vmatprep.subr.mxu0 0.0
      %542 = vmatpush1.msra.mxu0 0.0
      %543 = vmatprep.subr.mxu0 0.0
      %544 = vmatpush1.msra.mxu0 0.0
      %545 = vmatprep.subr.mxu0 0.0
      %546 = vmatpush1.msra.mxu0 0.0
      %547 = vmatprep.subr.mxu0 0.0
      %548 = vmatpush1.msra.mxu0 0.0
      %549 = vmatprep.subr.mxu0 0.0
      %550 = vmatpush1.msra.mxu0 0.0
      %551 = vmatprep.subr.mxu0 0.0
      %552 = vmatpush1.msra.mxu0 0.0
      %553 = vmatprep.subr.mxu0 0.0
      %554 = vmatpush1.msra.mxu0 0.0
      %555 = vmatprep.subr.mxu0 0.0
      %556 = vmatpush1.msra.mxu0 0.0
      %557 = vmatprep.subr.mxu0 0.0
      %558 = vmatpush1.msra.mxu0 0.0
      %559 = vmatprep.subr.mxu0 0.0
      %560 = vmatpush1.msra.mxu0 0.0
      %561 = vmatprep.subr.mxu0 0.0
      %562 = vmatpush1.msra.mxu0 0.0
      %563 = vmatprep.subr.mxu0 0.0
      %564 = vmatpush1.msra.mxu0 0.0
      %565 = vmatprep.subr.mxu0 0.0
      %566 = vmatpush1.msra.mxu0 0.0
      %567 = vmatprep.subr.mxu0 0.0
      %568 = vmatpush1.msra.mxu0 0.0
      %569 = vmatprep.subr.mxu0 0.0
      %570 = vmatpush1.msra.mxu0 0.0
      %571 = vmatprep.subr.mxu0 0.0
      %572 = vmatpush1.msra.mxu0 0.0
      %573 = vmatprep.subr.mxu0 0.0
      %574 = vmatpush1.msra.mxu0 0.0
      %575 = vmatprep.subr.mxu0 0.0
      %576 = vmatpush1.msra.mxu0 0.0
      %577 = vmatprep.subr.mxu0 0.0
      %578 = vmatpush1.msra.mxu0 0.0
      %579 = vmatprep.subr.mxu0 0.0
      %580 = vmatpush1.msra.mxu0 0.0
      %581 = vmatprep.subr.mxu0 0.0
      %582 = vmatpush1.msra.mxu0 0.0
      %583 = vmatprep.subr.mxu0 0.0
      %584 = vmatpush1.msra.mxu0 0.0
      %585 = vmatprep.subr.mxu0 0.0
      %586 = vmatpush1.msra.mxu0 0.0
      %587 = vmatprep.subr.mxu0 0.0
      %588 = vmatpush1.msra.mxu0 0.0
      %589 = vmatprep.mubr.f32.mxu0 0.0
      %590 = vmatmul.mubr.f32.gmra.mrb[0].mxu0 %v523
      %v591 = vpop.f32.mrb[0].mxu0
      %v592 = vadd.f32 %v519, %v591
      %v593 = vpop.f32.mrb[0].mxu0
      %594 = vdwg.mxu0
      %v595 = vld [vmem:[%s6] sm:$0xff]
      %v596 = vld [vmem:[%s6 + $0x8] sm:$0xff]
      %v597 = vld [vmem:[%s6 + $0x10] sm:$0xff]
      %v598 = vld [vmem:[%s6 + $0x18] sm:$0xff]
      %600 = vrot.lane.b32.xlu0 %v592, 96
      %v601 = vpop.permute.xlu0 %600
      %vm602 = vcmask 64512
      %v603 = vsel %vm602, %v592, 0
      %v605 = vsel %vm602, %v601, 0
      %607 = vmatprep.subr.mxu0 0.0
      %608 = vmatpush1.xpose.msra.mxu0 %v605
      %609 = vmatprep.subr.mxu0 0.0
      %610 = vmatpush1.xpose.msra.mxu0 0.0
      %611 = vmatprep.subr.mxu0 0.0
      %612 = vmatpush1.xpose.msra.mxu0 0.0
      %613 = vmatprep.subr.mxu0 0.0
      %614 = vmatpush1.xpose.msra.mxu0 0.0
      %615 = vmatprep.subr.mxu0 0.0
      %616 = vmatpush1.xpose.msra.mxu0 0.0
      %617 = vmatprep.subr.mxu0 0.0
      %618 = vmatpush1.xpose.msra.mxu0 0.0
      %619 = vmatprep.subr.mxu0 0.0
      %620 = vmatpush1.xpose.msra.mxu0 0.0
      %621 = vmatprep.subr.mxu0 0.0
      %622 = vmatpush1.xpose.msra.mxu0 0.0
      %623 = vmatprep.subr.mxu0 0.0
      %624 = vmatpush1.xpose.msra.mxu0 0.0
      %625 = vmatprep.subr.mxu0 0.0
      %626 = vmatpush1.xpose.msra.mxu0 0.0
      %627 = vmatprep.subr.mxu0 0.0
      %628 = vmatpush1.xpose.msra.mxu0 0.0
      %629 = vmatprep.subr.mxu0 0.0
      %630 = vmatpush1.xpose.msra.mxu0 0.0
      %631 = vmatprep.subr.mxu0 0.0
      %632 = vmatpush1.xpose.msra.mxu0 0.0
      %633 = vmatprep.subr.mxu0 0.0
      %634 = vmatpush1.xpose.msra.mxu0 0.0
      %635 = vmatprep.subr.mxu0 0.0
      %636 = vmatpush1.xpose.msra.mxu0 0.0
      %637 = vmatprep.subr.mxu0 0.0
      %638 = vmatpush1.xpose.msra.mxu0 0.0
      %639 = vmatprep.subr.mxu0 0.0
      %640 = vmatpush1.xpose.msra.mxu0 0.0
      %641 = vmatprep.subr.mxu0 0.0
      %642 = vmatpush1.xpose.msra.mxu0 0.0
      %643 = vmatprep.subr.mxu0 0.0
      %644 = vmatpush1.xpose.msra.mxu0 0.0
      %645 = vmatprep.subr.mxu0 0.0
      %646 = vmatpush1.xpose.msra.mxu0 0.0
      %647 = vmatprep.subr.mxu0 0.0
      %648 = vmatpush1.xpose.msra.mxu0 0.0
      %649 = vmatprep.subr.mxu0 0.0
      %650 = vmatpush1.xpose.msra.mxu0 0.0
      %651 = vmatprep.subr.mxu0 0.0
      %652 = vmatpush1.xpose.msra.mxu0 0.0
      %653 = vmatprep.subr.mxu0 0.0
      %654 = vmatpush1.xpose.msra.mxu0 0.0
      %655 = vmatprep.subr.mxu0 0.0
      %656 = vmatpush1.xpose.msra.mxu0 0.0
      %657 = vmatprep.subr.mxu0 0.0
      %658 = vmatpush1.xpose.msra.mxu0 0.0
      %659 = vmatprep.subr.mxu0 0.0
      %660 = vmatpush1.xpose.msra.mxu0 0.0
      %661 = vmatprep.subr.mxu0 0.0
      %662 = vmatpush1.xpose.msra.mxu0 0.0
      %663 = vmatprep.subr.mxu0 0.0
      %664 = vmatpush1.xpose.msra.mxu0 0.0
      %665 = vmatprep.subr.mxu0 0.0
      %666 = vmatpush1.xpose.msra.mxu0 0.0
      %667 = vmatprep.subr.mxu0 0.0
      %668 = vmatpush1.xpose.msra.mxu0 0.0
      %669 = vmatprep.subr.mxu0 0.0
      %670 = vmatpush1.xpose.msra.mxu0 0.0
      %671 = vmatprep.mubr.f32.mxu0 0.0
      %672 = vmatmul.mubr.f32.gmra.mrb[0].mxu0 %v603
      %v673 = vpop.f32.mrb[0].mxu0
      %v674 = vadd.f32 0.0, %v673
      %v675 = vpop.f32.mrb[0].mxu0
      %676 = vdwg.mxu0
      %v677 = vmul.f32 %v674, 0.35355338
      %v679 = vlaneseq
      %v680 = vshrl.u32 %v679, 7
      %v681 = vsub.s32 0, %v680
      %v682 = vrot.slane %v478, %v681
      %v684 = vadd.f32 %v677, %v682
      %vm685 = vcmask 55296
      %v686 = vsel %vm685, %v684, -inf
      %687 = vmax.xlane.f32.xlu0 %v686
      %v688 = vpop.xlane.xlu0 %687
      %v689 = vsub.f32 %v684, %v688
      %v690 = vmul.f32 %v689, 1.442695
      %v691 = vpow.pop %v690
      %v692 = vsel %vm685, %v691, 0.0
      %693 = vadd.xlane.f32.xlu0 %v692
      %v694 = vpop.xlane.xlu0 %693
      %v695 = vrcp.pop %v694
      %v696 = vmul.f32 %v691, %v695
      %697 = vrot.lane.b32.xlu0 %v592, 64
      %v698 = vpop.permute.xlu0 %697
      %vm699 = vcmask 56320
      %v701 = vsel %vm699, %v696, 0
      %vm703 = vcmask 1046528
      %v704 = vsel %vm703, %v698, 0
      %706 = vmatprep.subr.mxu0 0.0
      %707 = vmatpush1.msra.mxu0 %v704
      %708 = vmatprep.subr.mxu0 0.0
      %709 = vmatpush1.msra.mxu0 0.0
      %710 = vmatprep.subr.mxu0 0.0
      %711 = vmatpush1.msra.mxu0 0.0
      %712 = vmatprep.subr.mxu0 0.0
      %713 = vmatpush1.msra.mxu0 0.0
      %714 = vmatprep.subr.mxu0 0.0
      %715 = vmatpush1.msra.mxu0 0.0
      %716 = vmatprep.subr.mxu0 0.0
      %717 = vmatpush1.msra.mxu0 0.0
      %718 = vmatprep.subr.mxu0 0.0
      %719 = vmatpush1.msra.mxu0 0.0
      %720 = vmatprep.subr.mxu0 0.0
      %721 = vmatpush1.msra.mxu0 0.0
      %722 = vmatprep.subr.mxu0 0.0
      %723 = vmatpush1.msra.mxu0 0.0
      %724 = vmatprep.subr.mxu0 0.0
      %725 = vmatpush1.msra.mxu0 0.0
      %726 = vmatprep.subr.mxu0 0.0
      %727 = vmatpush1.msra.mxu0 0.0
      %728 = vmatprep.subr.mxu0 0.0
      %729 = vmatpush1.msra.mxu0 0.0
      %730 = vmatprep.subr.mxu0 0.0
      %731 = vmatpush1.msra.mxu0 0.0
      %732 = vmatprep.subr.mxu0 0.0
      %733 = vmatpush1.msra.mxu0 0.0
      %734 = vmatprep.subr.mxu0 0.0
      %735 = vmatpush1.msra.mxu0 0.0
      %736 = vmatprep.subr.mxu0 0.0
      %737 = vmatpush1.msra.mxu0 0.0
      %738 = vmatprep.subr.mxu0 0.0
      %739 = vmatpush1.msra.mxu0 0.0
      %740 = vmatprep.subr.mxu0 0.0
      %741 = vmatpush1.msra.mxu0 0.0
      %742 = vmatprep.subr.mxu0 0.0
      %743 = vmatpush1.msra.mxu0 0.0
      %744 = vmatprep.subr.mxu0 0.0
      %745 = vmatpush1.msra.mxu0 0.0
      %746 = vmatprep.subr.mxu0 0.0
      %747 = vmatpush1.msra.mxu0 0.0
      %748 = vmatprep.subr.mxu0 0.0
      %749 = vmatpush1.msra.mxu0 0.0
      %750 = vmatprep.subr.mxu0 0.0
      %751 = vmatpush1.msra.mxu0 0.0
      %752 = vmatprep.subr.mxu0 0.0
      %753 = vmatpush1.msra.mxu0 0.0
      %754 = vmatprep.subr.mxu0 0.0
      %755 = vmatpush1.msra.mxu0 0.0
      %756 = vmatprep.subr.mxu0 0.0
      %757 = vmatpush1.msra.mxu0 0.0
      %758 = vmatprep.subr.mxu0 0.0
      %759 = vmatpush1.msra.mxu0 0.0
      %760 = vmatprep.subr.mxu0 0.0
      %761 = vmatpush1.msra.mxu0 0.0
      %762 = vmatprep.subr.mxu0 0.0
      %763 = vmatpush1.msra.mxu0 0.0
      %764 = vmatprep.subr.mxu0 0.0
      %765 = vmatpush1.msra.mxu0 0.0
      %766 = vmatprep.subr.mxu0 0.0
      %767 = vmatpush1.msra.mxu0 0.0
      %768 = vmatprep.subr.mxu0 0.0
      %769 = vmatpush1.msra.mxu0 0.0
      %770 = vmatprep.mubr.f32.mxu0 0.0
      %771 = vmatmul.mubr.f32.gmra.mrb[0].mxu0 %v701
      %v772 = vpop.f32.mrb[0].mxu0
      %v773 = vadd.f32 0.0, %v772
      %v774 = vpop.f32.mrb[0].mxu0
      %775 = vdwg.mxu0
      %776 = vrot.lane.b32.xlu0 %v592, 120
      %v777 = vpop.permute.xlu0 %776
      %778 = vrot.lane.b32.xlu0 %v592, 88
      %v779 = vpop.permute.xlu0 %778
      %v780 = vsel %vm602, %v777, 0
      %v782 = vsel %vm602, %v779, 0
      %784 = vmatprep.subr.mxu0 0.0
      %785 = vmatpush1.xpose.msra.mxu0 %v782
      %786 = vmatprep.subr.mxu0 0.0
      %787 = vmatpush1.xpose.msra.mxu0 0.0
      %788 = vmatprep.subr.mxu0 0.0
      %789 = vmatpush1.xpose.msra.mxu0 0.0
      %790 = vmatprep.subr.mxu0 0.0
      %791 = vmatpush1.xpose.msra.mxu0 0.0
      %792 = vmatprep.subr.mxu0 0.0
      %793 = vmatpush1.xpose.msra.mxu0 0.0
      %794 = vmatprep.subr.mxu0 0.0
      %795 = vmatpush1.xpose.msra.mxu0 0.0
      %796 = vmatprep.subr.mxu0 0.0
      %797 = vmatpush1.xpose.msra.mxu0 0.0
      %798 = vmatprep.subr.mxu0 0.0
      %799 = vmatpush1.xpose.msra.mxu0 0.0
      %800 = vmatprep.subr.mxu0 0.0
      %801 = vmatpush1.xpose.msra.mxu0 0.0
      %802 = vmatprep.subr.mxu0 0.0
      %803 = vmatpush1.xpose.msra.mxu0 0.0
      %804 = vmatprep.subr.mxu0 0.0
      %805 = vmatpush1.xpose.msra.mxu0 0.0
      %806 = vmatprep.subr.mxu0 0.0
      %807 = vmatpush1.xpose.msra.mxu0 0.0
      %808 = vmatprep.subr.mxu0 0.0
      %809 = vmatpush1.xpose.msra.mxu0 0.0
      %810 = vmatprep.subr.mxu0 0.0
      %811 = vmatpush1.xpose.msra.mxu0 0.0
      %812 = vmatprep.subr.mxu0 0.0
      %813 = vmatpush1.xpose.msra.mxu0 0.0
      %814 = vmatprep.subr.mxu0 0.0
      %815 = vmatpush1.xpose.msra.mxu0 0.0
      %816 = vmatprep.subr.mxu0 0.0
      %817 = vmatpush1.xpose.msra.mxu0 0.0
      %818 = vmatprep.subr.mxu0 0.0
      %819 = vmatpush1.xpose.msra.mxu0 0.0
      %820 = vmatprep.subr.mxu0 0.0
      %821 = vmatpush1.xpose.msra.mxu0 0.0
      %822 = vmatprep.subr.mxu0 0.0
      %823 = vmatpush1.xpose.msra.mxu0 0.0
      %824 = vmatprep.subr.mxu0 0.0
      %825 = vmatpush1.xpose.msra.mxu0 0.0
      %826 = vmatprep.subr.mxu0 0.0
      %827 = vmatpush1.xpose.msra.mxu0 0.0
      %828 = vmatprep.subr.mxu0 0.0
      %829 = vmatpush1.xpose.msra.mxu0 0.0
      %830 = vmatprep.subr.mxu0 0.0
      %831 = vmatpush1.xpose.msra.mxu0 0.0
      %832 = vmatprep.subr.mxu0 0.0
      %833 = vmatpush1.xpose.msra.mxu0 0.0
      %834 = vmatprep.subr.mxu0 0.0
      %835 = vmatpush1.xpose.msra.mxu0 0.0
      %836 = vmatprep.subr.mxu0 0.0
      %837 = vmatpush1.xpose.msra.mxu0 0.0
      %838 = vmatprep.subr.mxu0 0.0
      %839 = vmatpush1.xpose.msra.mxu0 0.0
      %840 = vmatprep.subr.mxu0 0.0
      %841 = vmatpush1.xpose.msra.mxu0 0.0
      %842 = vmatprep.subr.mxu0 0.0
      %843 = vmatpush1.xpose.msra.mxu0 0.0
      %844 = vmatprep.subr.mxu0 0.0
      %845 = vmatpush1.xpose.msra.mxu0 0.0
      %846 = vmatprep.subr.mxu0 0.0
      %847 = vmatpush1.xpose.msra.mxu0 0.0
      %848 = vmatprep.mubr.f32.mxu0 0.0
      %849 = vmatmul.mubr.f32.gmra.mrb[0].mxu0 %v780
      %v850 = vpop.f32.mrb[0].mxu0
      %v851 = vadd.f32 0.0, %v850
      %v852 = vpop.f32.mrb[0].mxu0
      %853 = vdwg.mxu0
      %v854 = vmul.f32 %v851, 0.35355338
      %v855 = vadd.f32 %v854, %v682
      %v856 = vsel %vm685, %v855, -inf
      %857 = vmax.xlane.f32.xlu0 %v856
      %v858 = vpop.xlane.xlu0 %857
      %v859 = vsub.f32 %v855, %v858
      %v860 = vmul.f32 %v859, 1.442695
      %v861 = vpow.pop %v860
      %v862 = vsel %vm685, %v861, 0.0
      %863 = vadd.xlane.f32.xlu0 %v862
      %v864 = vpop.xlane.xlu0 %863
      %v865 = vrcp.pop %v864
      %v866 = vmul.f32 %v861, %v865
      %867 = vrot.lane.b32.xlu0 %v592, 56
      %v868 = vpop.permute.xlu0 %867
      %v870 = vsel %vm699, %v866, 0
      %v872 = vsel %vm703, %v868, 0
      %874 = vmatprep.subr.mxu0 0.0
      %875 = vmatpush1.msra.mxu0 %v872
      %876 = vmatprep.subr.mxu0 0.0
      %877 = vmatpush1.msra.mxu0 0.0
      %878 = vmatprep.subr.mxu0 0.0
      %879 = vmatpush1.msra.mxu0 0.0
      %880 = vmatprep.subr.mxu0 0.0
      %881 = vmatpush1.msra.mxu0 0.0
      %882 = vmatprep.subr.mxu0 0.0
      %883 = vmatpush1.msra.mxu0 0.0
      %884 = vmatprep.subr.mxu0 0.0
      %885 = vmatpush1.msra.mxu0 0.0
      %886 = vmatprep.subr.mxu0 0.0
      %887 = vmatpush1.msra.mxu0 0.0
      %888 = vmatprep.subr.mxu0 0.0
      %889 = vmatpush1.msra.mxu0 0.0
      %890 = vmatprep.subr.mxu0 0.0
      %891 = vmatpush1.msra.mxu0 0.0
      %892 = vmatprep.subr.mxu0 0.0
      %893 = vmatpush1.msra.mxu0 0.0
      %894 = vmatprep.subr.mxu0 0.0
      %895 = vmatpush1.msra.mxu0 0.0
      %896 = vmatprep.subr.mxu0 0.0
      %897 = vmatpush1.msra.mxu0 0.0
      %898 = vmatprep.subr.mxu0 0.0
      %899 = vmatpush1.msra.mxu0 0.0
      %900 = vmatprep.subr.mxu0 0.0
      %901 = vmatpush1.msra.mxu0 0.0
      %902 = vmatprep.subr.mxu0 0.0
      %903 = vmatpush1.msra.mxu0 0.0
      %904 = vmatprep.subr.mxu0 0.0
      %905 = vmatpush1.msra.mxu0 0.0
      %906 = vmatprep.subr.mxu0 0.0
      %907 = vmatpush1.msra.mxu0 0.0
      %908 = vmatprep.subr.mxu0 0.0
      %909 = vmatpush1.msra.mxu0 0.0
      %910 = vmatprep.subr.mxu0 0.0
      %911 = vmatpush1.msra.mxu0 0.0
      %912 = vmatprep.subr.mxu0 0.0
      %913 = vmatpush1.msra.mxu0 0.0
      %914 = vmatprep.subr.mxu0 0.0
      %915 = vmatpush1.msra.mxu0 0.0
      %916 = vmatprep.subr.mxu0 0.0
      %917 = vmatpush1.msra.mxu0 0.0
      %918 = vmatprep.subr.mxu0 0.0
      %919 = vmatpush1.msra.mxu0 0.0
      %920 = vmatprep.subr.mxu0 0.0
      %921 = vmatpush1.msra.mxu0 0.0
      %922 = vmatprep.subr.mxu0 0.0
      %923 = vmatpush1.msra.mxu0 0.0
      %924 = vmatprep.subr.mxu0 0.0
      %925 = vmatpush1.msra.mxu0 0.0
      %926 = vmatprep.subr.mxu0 0.0
      %927 = vmatpush1.msra.mxu0 0.0
      %928 = vmatprep.subr.mxu0 0.0
      %929 = vmatpush1.msra.mxu0 0.0
      %930 = vmatprep.subr.mxu0 0.0
      %931 = vmatpush1.msra.mxu0 0.0
      %932 = vmatprep.subr.mxu0 0.0
      %933 = vmatpush1.msra.mxu0 0.0
      %934 = vmatprep.subr.mxu0 0.0
      %935 = vmatpush1.msra.mxu0 0.0
      %936 = vmatprep.subr.mxu0 0.0
      %937 = vmatpush1.msra.mxu0 0.0
      %938 = vmatprep.mubr.f32.mxu0 0.0
      %939 = vmatmul.mubr.f32.gmra.mrb[0].mxu0 %v870
      %v940 = vpop.f32.mrb[0].mxu0
      %v941 = vadd.f32 0.0, %v940
      %v942 = vpop.f32.mrb[0].mxu0
      %943 = vdwg.mxu0
      %v945 = vsel %vm602, %v941, 0
      %947 = vmatprep.subr.mxu0 0.0
      %948 = vmatpush1.msra.mxu0 %v596
      %949 = vmatprep.subr.mxu0 0.0
      %950 = vmatpush1.msra.mxu0 0.0
      %951 = vmatprep.subr.mxu0 0.0
      %952 = vmatpush1.msra.mxu0 0.0
      %953 = vmatprep.subr.mxu0 0.0
      %954 = vmatpush1.msra.mxu0 0.0
      %955 = vmatprep.subr.mxu0 0.0
      %956 = vmatpush1.msra.mxu0 0.0
      %957 = vmatprep.subr.mxu0 0.0
      %958 = vmatpush1.msra.mxu0 0.0
      %959 = vmatprep.subr.mxu0 0.0
      %960 = vmatpush1.msra.mxu0 0.0
      %961 = vmatprep.subr.mxu0 0.0
      %962 = vmatpush1.msra.mxu0 0.0
      %963 = vmatprep.subr.mxu0 0.0
      %964 = vmatpush1.msra.mxu0 0.0
      %965 = vmatprep.subr.mxu0 0.0
      %966 = vmatpush1.msra.mxu0 0.0
      %967 = vmatprep.subr.mxu0 0.0
      %968 = vmatpush1.msra.mxu0 0.0
      %969 = vmatprep.subr.mxu0 0.0
      %970 = vmatpush1.msra.mxu0 0.0
      %971 = vmatprep.subr.mxu0 0.0
      %972 = vmatpush1.msra.mxu0 0.0
      %973 = vmatprep.subr.mxu0 0.0
      %974 = vmatpush1.msra.mxu0 0.0
      %975 = vmatprep.subr.mxu0 0.0
      %976 = vmatpush1.msra.mxu0 0.0
      %977 = vmatprep.subr.mxu0 0.0
      %978 = vmatpush1.msra.mxu0 0.0
      %979 = vmatprep.subr.mxu0 0.0
      %980 = vmatpush1.msra.mxu0 0.0
      %981 = vmatprep.subr.mxu0 0.0
      %982 = vmatpush1.msra.mxu0 0.0
      %983 = vmatprep.subr.mxu0 0.0
      %984 = vmatpush1.msra.mxu0 0.0
      %985 = vmatprep.subr.mxu0 0.0
      %986 = vmatpush1.msra.mxu0 0.0
      %987 = vmatprep.subr.mxu0 0.0
      %988 = vmatpush1.msra.mxu0 0.0
      %989 = vmatprep.subr.mxu0 0.0
      %990 = vmatpush1.msra.mxu0 0.0
      %991 = vmatprep.subr.mxu0 0.0
      %992 = vmatpush1.msra.mxu0 0.0
      %993 = vmatprep.subr.mxu0 0.0
      %994 = vmatpush1.msra.mxu0 0.0
      %995 = vmatprep.subr.mxu0 0.0
      %996 = vmatpush1.msra.mxu0 0.0
      %997 = vmatprep.subr.mxu0 0.0
      %998 = vmatpush1.msra.mxu0 0.0
      %999 = vmatprep.subr.mxu0 0.0
      %1000 = vmatpush1.msra.mxu0 0.0
      %1001 = vmatprep.subr.mxu0 0.0
      %1002 = vmatpush1.msra.mxu0 0.0
      %1003 = vmatprep.subr.mxu0 0.0
      %1004 = vmatpush1.msra.mxu0 0.0
      %1005 = vmatprep.subr.mxu0 0.0
      %1006 = vmatpush1.msra.mxu0 0.0
      %1007 = vmatprep.subr.mxu0 0.0
      %1008 = vmatpush1.msra.mxu0 0.0
      %1009 = vmatprep.subr.mxu0 0.0
      %1010 = vmatpush1.msra.mxu0 0.0
      %1011 = vmatprep.mubr.f32.mxu0 0.0
      %1012 = vmatmul.mubr.f32.gmra.mrb[0].mxu0 %v945
      %v1013 = vpop.f32.mrb[0].mxu0
      %v1014 = vadd.f32 0.0, %v1013
      %v1015 = vpop.f32.mrb[0].mxu0
      %1016 = vdwg.mxu0
      %v1018 = vsel %vm602, %v773, 0
      %1020 = vmatprep.subr.mxu0 0.0
      %1021 = vmatpush1.msra.mxu0 %v595
      %1022 = vmatprep.subr.mxu0 0.0
      %1023 = vmatpush1.msra.mxu0 0.0
      %1024 = vmatprep.subr.mxu0 0.0
      %1025 = vmatpush1.msra.mxu0 0.0
      %1026 = vmatprep.subr.mxu0 0.0
      %1027 = vmatpush1.msra.mxu0 0.0
      %1028 = vmatprep.subr.mxu0 0.0
      %1029 = vmatpush1.msra.mxu0 0.0
      %1030 = vmatprep.subr.mxu0 0.0
      %1031 = vmatpush1.msra.mxu0 0.0
      %1032 = vmatprep.subr.mxu0 0.0
      %1033 = vmatpush1.msra.mxu0 0.0
      %1034 = vmatprep.subr.mxu0 0.0
      %1035 = vmatpush1.msra.mxu0 0.0
      %1036 = vmatprep.subr.mxu0 0.0
      %1037 = vmatpush1.msra.mxu0 0.0
      %1038 = vmatprep.subr.mxu0 0.0
      %1039 = vmatpush1.msra.mxu0 0.0
      %1040 = vmatprep.subr.mxu0 0.0
      %1041 = vmatpush1.msra.mxu0 0.0
      %1042 = vmatprep.subr.mxu0 0.0
      %1043 = vmatpush1.msra.mxu0 0.0
      %1044 = vmatprep.subr.mxu0 0.0
      %1045 = vmatpush1.msra.mxu0 0.0
      %1046 = vmatprep.subr.mxu0 0.0
      %1047 = vmatpush1.msra.mxu0 0.0
      %1048 = vmatprep.subr.mxu0 0.0
      %1049 = vmatpush1.msra.mxu0 0.0
      %1050 = vmatprep.subr.mxu0 0.0
      %1051 = vmatpush1.msra.mxu0 0.0
      %1052 = vmatprep.subr.mxu0 0.0
      %1053 = vmatpush1.msra.mxu0 0.0
      %1054 = vmatprep.subr.mxu0 0.0
      %1055 = vmatpush1.msra.mxu0 0.0
      %1056 = vmatprep.subr.mxu0 0.0
      %1057 = vmatpush1.msra.mxu0 0.0
      %1058 = vmatprep.subr.mxu0 0.0
      %1059 = vmatpush1.msra.mxu0 0.0
      %1060 = vmatprep.subr.mxu0 0.0
      %1061 = vmatpush1.msra.mxu0 0.0
      %1062 = vmatprep.subr.mxu0 0.0
      %1063 = vmatpush1.msra.mxu0 0.0
      %1064 = vmatprep.subr.mxu0 0.0
      %1065 = vmatpush1.msra.mxu0 0.0
      %1066 = vmatprep.subr.mxu0 0.0
      %1067 = vmatpush1.msra.mxu0 0.0
      %1068 = vmatprep.subr.mxu0 0.0
      %1069 = vmatpush1.msra.mxu0 0.0
      %1070 = vmatprep.subr.mxu0 0.0
      %1071 = vmatpush1.msra.mxu0 0.0
      %1072 = vmatprep.subr.mxu0 0.0
      %1073 = vmatpush1.msra.mxu0 0.0
      %1074 = vmatprep.subr.mxu0 0.0
      %1075 = vmatpush1.msra.mxu0 0.0
      %1076 = vmatprep.subr.mxu0 0.0
      %1077 = vmatpush1.msra.mxu0 0.0
      %1078 = vmatprep.subr.mxu0 0.0
      %1079 = vmatpush1.msra.mxu0 0.0
      %1080 = vmatprep.subr.mxu0 0.0
      %1081 = vmatpush1.msra.mxu0 0.0
      %1082 = vmatprep.subr.mxu0 0.0
      %1083 = vmatpush1.msra.mxu0 0.0
      %1084 = vmatprep.mubr.f32.mxu0 0.0
      %1085 = vmatmul.mubr.f32.gmra.mrb[0].mxu0 %v1018
      %v1086 = vpop.f32.mrb[0].mxu0
      %v1087 = vadd.f32 %v1014, %v1086
      %v1088 = vpop.f32.mrb[0].mxu0
      %1089 = vdwg.mxu0
      %1090 = vrot.lane.b32.xlu0 %v592, 112
      %v1091 = vpop.permute.xlu0 %1090
      %1092 = vrot.lane.b32.xlu0 %v592, 80
      %v1093 = vpop.permute.xlu0 %1092
      %v1094 = vsel %vm602, %v1091, 0
      %v1096 = vsel %vm602, %v1093, 0
      %1098 = vmatprep.subr.mxu0 0.0
      %1099 = vmatpush1.xpose.msra.mxu0 %v1096
      %1100 = vmatprep.subr.mxu0 0.0
      %1101 = vmatpush1.xpose.msra.mxu0 0.0
      %1102 = vmatprep.subr.mxu0 0.0
      %1103 = vmatpush1.xpose.msra.mxu0 0.0
      %1104 = vmatprep.subr.mxu0 0.0
      %1105 = vmatpush1.xpose.msra.mxu0 0.0
      %1106 = vmatprep.subr.mxu0 0.0
      %1107 = vmatpush1.xpose.msra.mxu0 0.0
      %1108 = vmatprep.subr.mxu0 0.0
      %1109 = vmatpush1.xpose.msra.mxu0 0.0
      %1110 = vmatprep.subr.mxu0 0.0
      %1111 = vmatpush1.xpose.msra.mxu0 0.0
      %1112 = vmatprep.subr.mxu0 0.0
      %1113 = vmatpush1.xpose.msra.mxu0 0.0
      %1114 = vmatprep.subr.mxu0 0.0
      %1115 = vmatpush1.xpose.msra.mxu0 0.0
      %1116 = vmatprep.subr.mxu0 0.0
      %1117 = vmatpush1.xpose.msra.mxu0 0.0
      %1118 = vmatprep.subr.mxu0 0.0
      %1119 = vmatpush1.xpose.msra.mxu0 0.0
      %1120 = vmatprep.subr.mxu0 0.0
      %1121 = vmatpush1.xpose.msra.mxu0 0.0
      %1122 = vmatprep.subr.mxu0 0.0
      %1123 = vmatpush1.xpose.msra.mxu0 0.0
      %1124 = vmatprep.subr.mxu0 0.0
      %1125 = vmatpush1.xpose.msra.mxu0 0.0
      %1126 = vmatprep.subr.mxu0 0.0
      %1127 = vmatpush1.xpose.msra.mxu0 0.0
      %1128 = vmatprep.subr.mxu0 0.0
      %1129 = vmatpush1.xpose.msra.mxu0 0.0
      %1130 = vmatprep.subr.mxu0 0.0
      %1131 = vmatpush1.xpose.msra.mxu0 0.0
      %1132 = vmatprep.subr.mxu0 0.0
      %1133 = vmatpush1.xpose.msra.mxu0 0.0
      %1134 = vmatprep.subr.mxu0 0.0
      %1135 = vmatpush1.xpose.msra.mxu0 0.0
      %1136 = vmatprep.subr.mxu0 0.0
      %1137 = vmatpush1.xpose.msra.mxu0 0.0
      %1138 = vmatprep.subr.mxu0 0.0
      %1139 = vmatpush1.xpose.msra.mxu0 0.0
      %1140 = vmatprep.subr.mxu0 0.0
      %1141 = vmatpush1.xpose.msra.mxu0 0.0
      %1142 = vmatprep.subr.mxu0 0.0
      %1143 = vmatpush1.xpose.msra.mxu0 0.0
      %1144 = vmatprep.subr.mxu0 0.0
      %1145 = vmatpush1.xpose.msra.mxu0 0.0
      %1146 = vmatprep.subr.mxu0 0.0
      %1147 = vmatpush1.xpose.msra.mxu0 0.0
      %1148 = vmatprep.subr.mxu0 0.0
      %1149 = vmatpush1.xpose.msra.mxu0 0.0
      %1150 = vmatprep.subr.mxu0 0.0
      %1151 = vmatpush1.xpose.msra.mxu0 0.0
      %1152 = vmatprep.subr.mxu0 0.0
      %1153 = vmatpush1.xpose.msra.mxu0 0.0
      %1154 = vmatprep.subr.mxu0 0.0
      %1155 = vmatpush1.xpose.msra.mxu0 0.0
      %1156 = vmatprep.subr.mxu0 0.0
      %1157 = vmatpush1.xpose.msra.mxu0 0.0
      %1158 = vmatprep.subr.mxu0 0.0
      %1159 = vmatpush1.xpose.msra.mxu0 0.0
      %1160 = vmatprep.subr.mxu0 0.0
      %1161 = vmatpush1.xpose.msra.mxu0 0.0
      %1162 = vmatprep.mubr.f32.mxu0 0.0
      %1163 = vmatmul.mubr.f32.gmra.mrb[0].mxu0 %v1094
      %v1164 = vpop.f32.mrb[0].mxu0
      %v1165 = vadd.f32 0.0, %v1164
      %v1166 = vpop.f32.mrb[0].mxu0
      %1167 = vdwg.mxu0
      %v1168 = vmul.f32 %v1165, 0.35355338
      %v1169 = vadd.f32 %v1168, %v682
      %v1170 = vsel %vm685, %v1169, -inf
      %1171 = vmax.xlane.f32.xlu0 %v1170
      %v1172 = vpop.xlane.xlu0 %1171
      %v1173 = vsub.f32 %v1169, %v1172
      %v1174 = vmul.f32 %v1173, 1.442695
      %v1175 = vpow.pop %v1174
      %v1176 = vsel %vm685, %v1175, 0.0
      %1177 = vadd.xlane.f32.xlu0 %v1176
      %v1178 = vpop.xlane.xlu0 %1177
      %v1179 = vrcp.pop %v1178
      %v1180 = vmul.f32 %v1175, %v1179
      %1181 = vrot.lane.b32.xlu0 %v592, 48
      %v1182 = vpop.permute.xlu0 %1181
      %v1184 = vsel %vm699, %v1180, 0
      %v1186 = vsel %vm703, %v1182, 0
      %1188 = vmatprep.subr.mxu0 0.0
      %1189 = vmatpush1.msra.mxu0 %v1186
      %1190 = vmatprep.subr.mxu0 0.0
      %1191 = vmatpush1.msra.mxu0 0.0
      %1192 = vmatprep.subr.mxu0 0.0
      %1193 = vmatpush1.msra.mxu0 0.0
      %1194 = vmatprep.subr.mxu0 0.0
      %1195 = vmatpush1.msra.mxu0 0.0
      %1196 = vmatprep.subr.mxu0 0.0
      %1197 = vmatpush1.msra.mxu0 0.0
      %1198 = vmatprep.subr.mxu0 0.0
      %1199 = vmatpush1.msra.mxu0 0.0
      %1200 = vmatprep.subr.mxu0 0.0
      %1201 = vmatpush1.msra.mxu0 0.0
      %1202 = vmatprep.subr.mxu0 0.0
      %1203 = vmatpush1.msra.mxu0 0.0
      %1204 = vmatprep.subr.mxu0 0.0
      %1205 = vmatpush1.msra.mxu0 0.0
      %1206 = vmatprep.subr.mxu0 0.0
      %1207 = vmatpush1.msra.mxu0 0.0
      %1208 = vmatprep.subr.mxu0 0.0
      %1209 = vmatpush1.msra.mxu0 0.0
      %1210 = vmatprep.subr.mxu0 0.0
      %1211 = vmatpush1.msra.mxu0 0.0
      %1212 = vmatprep.subr.mxu0 0.0
      %1213 = vmatpush1.msra.mxu0 0.0
      %1214 = vmatprep.subr.mxu0 0.0
      %1215 = vmatpush1.msra.mxu0 0.0
      %1216 = vmatprep.subr.mxu0 0.0
      %1217 = vmatpush1.msra.mxu0 0.0
      %1218 = vmatprep.subr.mxu0 0.0
      %1219 = vmatpush1.msra.mxu0 0.0
      %1220 = vmatprep.subr.mxu0 0.0
      %1221 = vmatpush1.msra.mxu0 0.0
      %1222 = vmatprep.subr.mxu0 0.0
      %1223 = vmatpush1.msra.mxu0 0.0
      %1224 = vmatprep.subr.mxu0 0.0
      %1225 = vmatpush1.msra.mxu0 0.0
      %1226 = vmatprep.subr.mxu0 0.0
      %1227 = vmatpush1.msra.mxu0 0.0
      %1228 = vmatprep.subr.mxu0 0.0
      %1229 = vmatpush1.msra.mxu0 0.0
      %1230 = vmatprep.subr.mxu0 0.0
      %1231 = vmatpush1.msra.mxu0 0.0
      %1232 = vmatprep.subr.mxu0 0.0
      %1233 = vmatpush1.msra.mxu0 0.0
      %1234 = vmatprep.subr.mxu0 0.0
      %1235 = vmatpush1.msra.mxu0 0.0
      %1236 = vmatprep.subr.mxu0 0.0
      %1237 = vmatpush1.msra.mxu0 0.0
      %1238 = vmatprep.subr.mxu0 0.0
      %1239 = vmatpush1.msra.mxu0 0.0
      %1240 = vmatprep.subr.mxu0 0.0
      %1241 = vmatpush1.msra.mxu0 0.0
      %1242 = vmatprep.subr.mxu0 0.0
      %1243 = vmatpush1.msra.mxu0 0.0
      %1244 = vmatprep.subr.mxu0 0.0
      %1245 = vmatpush1.msra.mxu0 0.0
      %1246 = vmatprep.subr.mxu0 0.0
      %1247 = vmatpush1.msra.mxu0 0.0
      %1248 = vmatprep.subr.mxu0 0.0
      %1249 = vmatpush1.msra.mxu0 0.0
      %1250 = vmatprep.subr.mxu0 0.0
      %1251 = vmatpush1.msra.mxu0 0.0
      %1252 = vmatprep.mubr.f32.mxu0 0.0
      %1253 = vmatmul.mubr.f32.gmra.mrb[0].mxu0 %v1184
      %v1254 = vpop.f32.mrb[0].mxu0
      %v1255 = vadd.f32 0.0, %v1254
      %v1256 = vpop.f32.mrb[0].mxu0
      %1257 = vdwg.mxu0
      %v1259 = vsel %vm602, %v1255, 0
      %1261 = vmatprep.subr.mxu0 0.0
      %1262 = vmatpush1.msra.mxu0 %v597
      %1263 = vmatprep.subr.mxu0 0.0
      %1264 = vmatpush1.msra.mxu0 0.0
      %1265 = vmatprep.subr.mxu0 0.0
      %1266 = vmatpush1.msra.mxu0 0.0
      %1267 = vmatprep.subr.mxu0 0.0
      %1268 = vmatpush1.msra.mxu0 0.0
      %1269 = vmatprep.subr.mxu0 0.0
      %1270 = vmatpush1.msra.mxu0 0.0
      %1271 = vmatprep.subr.mxu0 0.0
      %1272 = vmatpush1.msra.mxu0 0.0
      %1273 = vmatprep.subr.mxu0 0.0
      %1274 = vmatpush1.msra.mxu0 0.0
      %1275 = vmatprep.subr.mxu0 0.0
      %1276 = vmatpush1.msra.mxu0 0.0
      %1277 = vmatprep.subr.mxu0 0.0
      %1278 = vmatpush1.msra.mxu0 0.0
      %1279 = vmatprep.subr.mxu0 0.0
      %1280 = vmatpush1.msra.mxu0 0.0
      %1281 = vmatprep.subr.mxu0 0.0
      %1282 = vmatpush1.msra.mxu0 0.0
      %1283 = vmatprep.subr.mxu0 0.0
      %1284 = vmatpush1.msra.mxu0 0.0
      %1285 = vmatprep.subr.mxu0 0.0
      %1286 = vmatpush1.msra.mxu0 0.0
      %1287 = vmatprep.subr.mxu0 0.0
      %1288 = vmatpush1.msra.mxu0 0.0
      %1289 = vmatprep.subr.mxu0 0.0
      %1290 = vmatpush1.msra.mxu0 0.0
      %1291 = vmatprep.subr.mxu0 0.0
      %1292 = vmatpush1.msra.mxu0 0.0
      %1293 = vmatprep.subr.mxu0 0.0
      %1294 = vmatpush1.msra.mxu0 0.0
      %1295 = vmatprep.subr.mxu0 0.0
      %1296 = vmatpush1.msra.mxu0 0.0
      %1297 = vmatprep.subr.mxu0 0.0
      %1298 = vmatpush1.msra.mxu0 0.0
      %1299 = vmatprep.subr.mxu0 0.0
      %1300 = vmatpush1.msra.mxu0 0.0
      %1301 = vmatprep.subr.mxu0 0.0
      %1302 = vmatpush1.msra.mxu0 0.0
      %1303 = vmatprep.subr.mxu0 0.0
      %1304 = vmatpush1.msra.mxu0 0.0
      %1305 = vmatprep.subr.mxu0 0.0
      %1306 = vmatpush1.msra.mxu0 0.0
      %1307 = vmatprep.subr.mxu0 0.0
      %1308 = vmatpush1.msra.mxu0 0.0
      %1309 = vmatprep.subr.mxu0 0.0
      %1310 = vmatpush1.msra.mxu0 0.0
      %1311 = vmatprep.subr.mxu0 0.0
      %1312 = vmatpush1.msra.mxu0 0.0
      %1313 = vmatprep.subr.mxu0 0.0
      %1314 = vmatpush1.msra.mxu0 0.0
      %1315 = vmatprep.subr.mxu0 0.0
      %1316 = vmatpush1.msra.mxu0 0.0
      %1317 = vmatprep.subr.mxu0 0.0
      %1318 = vmatpush1.msra.mxu0 0.0
      %1319 = vmatprep.subr.mxu0 0.0
      %1320 = vmatpush1.msra.mxu0 0.0
      %1321 = vmatprep.subr.mxu0 0.0
      %1322 = vmatpush1.msra.mxu0 0.0
      %1323 = vmatprep.subr.mxu0 0.0
      %1324 = vmatpush1.msra.mxu0 0.0
      %1325 = vmatprep.mubr.f32.mxu0 0.0
      %1326 = vmatmul.mubr.f32.gmra.mrb[0].mxu0 %v1259
      %v1327 = vpop.f32.mrb[0].mxu0
      %v1328 = vadd.f32 0.0, %v1327
      %v1329 = vpop.f32.mrb[0].mxu0
      %1330 = vdwg.mxu0
      %v1331 = vadd.f32 %v1087, %v1328
      %1332 = vrot.lane.b32.xlu0 %v592, 104
      %v1333 = vpop.permute.xlu0 %1332
      %1334 = vrot.lane.b32.xlu0 %v592, 72
      %v1335 = vpop.permute.xlu0 %1334
      %v1336 = vsel %vm602, %v1333, 0
      %v1338 = vsel %vm602, %v1335, 0
      %1340 = vmatprep.subr.mxu0 0.0
      %1341 = vmatpush1.xpose.msra.mxu0 %v1338
      %1342 = vmatprep.subr.mxu0 0.0
      %1343 = vmatpush1.xpose.msra.mxu0 0.0
      %1344 = vmatprep.subr.mxu0 0.0
      %1345 = vmatpush1.xpose.msra.mxu0 0.0
      %1346 = vmatprep.subr.mxu0 0.0
      %1347 = vmatpush1.xpose.msra.mxu0 0.0
      %1348 = vmatprep.subr.mxu0 0.0
      %1349 = vmatpush1.xpose.msra.mxu0 0.0
      %1350 = vmatprep.subr.mxu0 0.0
      %1351 = vmatpush1.xpose.msra.mxu0 0.0
      %1352 = vmatprep.subr.mxu0 0.0
      %1353 = vmatpush1.xpose.msra.mxu0 0.0
      %1354 = vmatprep.subr.mxu0 0.0
      %1355 = vmatpush1.xpose.msra.mxu0 0.0
      %1356 = vmatprep.subr.mxu0 0.0
      %1357 = vmatpush1.xpose.msra.mxu0 0.0
      %1358 = vmatprep.subr.mxu0 0.0
      %1359 = vmatpush1.xpose.msra.mxu0 0.0
      %1360 = vmatprep.subr.mxu0 0.0
      %1361 = vmatpush1.xpose.msra.mxu0 0.0
      %1362 = vmatprep.subr.mxu0 0.0
      %1363 = vmatpush1.xpose.msra.mxu0 0.0
      %1364 = vmatprep.subr.mxu0 0.0
      %1365 = vmatpush1.xpose.msra.mxu0 0.0
      %1366 = vmatprep.subr.mxu0 0.0
      %1367 = vmatpush1.xpose.msra.mxu0 0.0
      %1368 = vmatprep.subr.mxu0 0.0
      %1369 = vmatpush1.xpose.msra.mxu0 0.0
      %1370 = vmatprep.subr.mxu0 0.0
      %1371 = vmatpush1.xpose.msra.mxu0 0.0
      %1372 = vmatprep.subr.mxu0 0.0
      %1373 = vmatpush1.xpose.msra.mxu0 0.0
      %1374 = vmatprep.subr.mxu0 0.0
      %1375 = vmatpush1.xpose.msra.mxu0 0.0
      %1376 = vmatprep.subr.mxu0 0.0
      %1377 = vmatpush1.xpose.msra.mxu0 0.0
      %1378 = vmatprep.subr.mxu0 0.0
      %1379 = vmatpush1.xpose.msra.mxu0 0.0
      %1380 = vmatprep.subr.mxu0 0.0
      %1381 = vmatpush1.xpose.msra.mxu0 0.0
      %1382 = vmatprep.subr.mxu0 0.0
      %1383 = vmatpush1.xpose.msra.mxu0 0.0
      %1384 = vmatprep.subr.mxu0 0.0
      %1385 = vmatpush1.xpose.msra.mxu0 0.0
      %1386 = vmatprep.subr.mxu0 0.0
      %1387 = vmatpush1.xpose.msra.mxu0 0.0
      %1388 = vmatprep.subr.mxu0 0.0
      %1389 = vmatpush1.xpose.msra.mxu0 0.0
      %1390 = vmatprep.subr.mxu0 0.0
      %1391 = vmatpush1.xpose.msra.mxu0 0.0
      %1392 = vmatprep.subr.mxu0 0.0
      %1393 = vmatpush1.xpose.msra.mxu0 0.0
      %1394 = vmatprep.subr.mxu0 0.0
      %1395 = vmatpush1.xpose.msra.mxu0 0.0
      %1396 = vmatprep.subr.mxu0 0.0
      %1397 = vmatpush1.xpose.msra.mxu0 0.0
      %1398 = vmatprep.subr.mxu0 0.0
      %1399 = vmatpush1.xpose.msra.mxu0 0.0
      %1400 = vmatprep.subr.mxu0 0.0
      %1401 = vmatpush1.xpose.msra.mxu0 0.0
      %1402 = vmatprep.subr.mxu0 0.0
      %1403 = vmatpush1.xpose.msra.mxu0 0.0
      %1404 = vmatprep.mubr.f32.mxu0 0.0
      %1405 = vmatmul.mubr.f32.gmra.mrb[0].mxu0 %v1336
      %v1406 = vpop.f32.mrb[0].mxu0
      %v1407 = vadd.f32 0.0, %v1406
      %v1408 = vpop.f32.mrb[0].mxu0
      %1409 = vdwg.mxu0
      %v1410 = vmul.f32 %v1407, 0.35355338
      %v1411 = vadd.f32 %v1410, %v682
      %v1412 = vsel %vm685, %v1411, -inf
      %1413 = vmax.xlane.f32.xlu0 %v1412
      %v1414 = vpop.xlane.xlu0 %1413
      %v1415 = vsub.f32 %v1411, %v1414
      %v1416 = vmul.f32 %v1415, 1.442695
      %v1417 = vpow.pop %v1416
      %v1418 = vsel %vm685, %v1417, 0.0
      %1419 = vadd.xlane.f32.xlu0 %v1418
      %v1420 = vpop.xlane.xlu0 %1419
      %v1421 = vrcp.pop %v1420
      %v1422 = vmul.f32 %v1417, %v1421
      %1423 = vrot.lane.b32.xlu0 %v592, 40
      %v1424 = vpop.permute.xlu0 %1423
      %v1426 = vsel %vm699, %v1422, 0
      %v1428 = vsel %vm703, %v1424, 0
      %1430 = vmatprep.subr.mxu0 0.0
      %1431 = vmatpush1.msra.mxu0 %v1428
      %1432 = vmatprep.subr.mxu0 0.0
      %1433 = vmatpush1.msra.mxu0 0.0
      %1434 = vmatprep.subr.mxu0 0.0
      %1435 = vmatpush1.msra.mxu0 0.0
      %1436 = vmatprep.subr.mxu0 0.0
      %1437 = vmatpush1.msra.mxu0 0.0
      %1438 = vmatprep.subr.mxu0 0.0
      %1439 = vmatpush1.msra.mxu0 0.0
      %1440 = vmatprep.subr.mxu0 0.0
      %1441 = vmatpush1.msra.mxu0 0.0
      %1442 = vmatprep.subr.mxu0 0.0
      %1443 = vmatpush1.msra.mxu0 0.0
      %1444 = vmatprep.subr.mxu0 0.0
      %1445 = vmatpush1.msra.mxu0 0.0
      %1446 = vmatprep.subr.mxu0 0.0
      %1447 = vmatpush1.msra.mxu0 0.0
      %1448 = vmatprep.subr.mxu0 0.0
      %1449 = vmatpush1.msra.mxu0 0.0
      %1450 = vmatprep.subr.mxu0 0.0
      %1451 = vmatpush1.msra.mxu0 0.0
      %1452 = vmatprep.subr.mxu0 0.0
      %1453 = vmatpush1.msra.mxu0 0.0
      %1454 = vmatprep.subr.mxu0 0.0
      %1455 = vmatpush1.msra.mxu0 0.0
      %1456 = vmatprep.subr.mxu0 0.0
      %1457 = vmatpush1.msra.mxu0 0.0
      %1458 = vmatprep.subr.mxu0 0.0
      %1459 = vmatpush1.msra.mxu0 0.0
      %1460 = vmatprep.subr.mxu0 0.0
      %1461 = vmatpush1.msra.mxu0 0.0
      %1462 = vmatprep.subr.mxu0 0.0
      %1463 = vmatpush1.msra.mxu0 0.0
      %1464 = vmatprep.subr.mxu0 0.0
      %1465 = vmatpush1.msra.mxu0 0.0
      %1466 = vmatprep.subr.mxu0 0.0
      %1467 = vmatpush1.msra.mxu0 0.0
      %1468 = vmatprep.subr.mxu0 0.0
      %1469 = vmatpush1.msra.mxu0 0.0
      %1470 = vmatprep.subr.mxu0 0.0
      %1471 = vmatpush1.msra.mxu0 0.0
      %1472 = vmatprep.subr.mxu0 0.0
      %1473 = vmatpush1.msra.mxu0 0.0
      %1474 = vmatprep.subr.mxu0 0.0
      %1475 = vmatpush1.msra.mxu0 0.0
      %1476 = vmatprep.subr.mxu0 0.0
      %1477 = vmatpush1.msra.mxu0 0.0
      %1478 = vmatprep.subr.mxu0 0.0
      %1479 = vmatpush1.msra.mxu0 0.0
      %1480 = vmatprep.subr.mxu0 0.0
      %1481 = vmatpush1.msra.mxu0 0.0
      %1482 = vmatprep.subr.mxu0 0.0
      %1483 = vmatpush1.msra.mxu0 0.0
      %1484 = vmatprep.subr.mxu0 0.0
      %1485 = vmatpush1.msra.mxu0 0.0
      %1486 = vmatprep.subr.mxu0 0.0
      %1487 = vmatpush1.msra.mxu0 0.0
      %1488 = vmatprep.subr.mxu0 0.0
      %1489 = vmatpush1.msra.mxu0 0.0
      %1490 = vmatprep.subr.mxu0 0.0
      %1491 = vmatpush1.msra.mxu0 0.0
      %1492 = vmatprep.subr.mxu0 0.0
      %1493 = vmatpush1.msra.mxu0 0.0
      %1494 = vmatprep.mubr.f32.mxu0 0.0
      %1495 = vmatmul.mubr.f32.gmra.mrb[0].mxu0 %v1426
      %v1496 = vpop.f32.mrb[0].mxu0
      %v1497 = vadd.f32 0.0, %v1496
      %v1498 = vpop.f32.mrb[0].mxu0
      %1499 = vdwg.mxu0
      %v1501 = vsel %vm602, %v1497, 0
      %1503 = vmatprep.subr.mxu0 0.0
      %1504 = vmatpush1.msra.mxu0 %v598
      %1505 = vmatprep.subr.mxu0 0.0
      %1506 = vmatpush1.msra.mxu0 0.0
      %1507 = vmatprep.subr.mxu0 0.0
      %1508 = vmatpush1.msra.mxu0 0.0
      %1509 = vmatprep.subr.mxu0 0.0
      %1510 = vmatpush1.msra.mxu0 0.0
      %1511 = vmatprep.subr.mxu0 0.0
      %1512 = vmatpush1.msra.mxu0 0.0
      %1513 = vmatprep.subr.mxu0 0.0
      %1514 = vmatpush1.msra.mxu0 0.0
      %1515 = vmatprep.subr.mxu0 0.0
      %1516 = vmatpush1.msra.mxu0 0.0
      %1517 = vmatprep.subr.mxu0 0.0
      %1518 = vmatpush1.msra.mxu0 0.0
      %1519 = vmatprep.subr.mxu0 0.0
      %1520 = vmatpush1.msra.mxu0 0.0
      %1521 = vmatprep.subr.mxu0 0.0
      %1522 = vmatpush1.msra.mxu0 0.0
      %1523 = vmatprep.subr.mxu0 0.0
      %1524 = vmatpush1.msra.mxu0 0.0
      %1525 = vmatprep.subr.mxu0 0.0
      %1526 = vmatpush1.msra.mxu0 0.0
      %1527 = vmatprep.subr.mxu0 0.0
      %1528 = vmatpush1.msra.mxu0 0.0
      %1529 = vmatprep.subr.mxu0 0.0
      %1530 = vmatpush1.msra.mxu0 0.0
      %1531 = vmatprep.subr.mxu0 0.0
      %1532 = vmatpush1.msra.mxu0 0.0
      %1533 = vmatprep.subr.mxu0 0.0
      %1534 = vmatpush1.msra.mxu0 0.0
      %1535 = vmatprep.subr.mxu0 0.0
      %1536 = vmatpush1.msra.mxu0 0.0
      %1537 = vmatprep.subr.mxu0 0.0
      %1538 = vmatpush1.msra.mxu0 0.0
      %1539 = vmatprep.subr.mxu0 0.0
      %1540 = vmatpush1.msra.mxu0 0.0
      %1541 = vmatprep.subr.mxu0 0.0
      %1542 = vmatpush1.msra.mxu0 0.0
      %1543 = vmatprep.subr.mxu0 0.0
      %1544 = vmatpush1.msra.mxu0 0.0
      %1545 = vmatprep.subr.mxu0 0.0
      %1546 = vmatpush1.msra.mxu0 0.0
      %1547 = vmatprep.subr.mxu0 0.0
      %1548 = vmatpush1.msra.mxu0 0.0
      %1549 = vmatprep.subr.mxu0 0.0
      %1550 = vmatpush1.msra.mxu0 0.0
      %1551 = vmatprep.subr.mxu0 0.0
      %1552 = vmatpush1.msra.mxu0 0.0
      %1553 = vmatprep.subr.mxu0 0.0
      %1554 = vmatpush1.msra.mxu0 0.0
      %1555 = vmatprep.subr.mxu0 0.0
      %1556 = vmatpush1.msra.mxu0 0.0
      %1557 = vmatprep.subr.mxu0 0.0
      %1558 = vmatpush1.msra.mxu0 0.0
      %1559 = vmatprep.subr.mxu0 0.0
      %1560 = vmatpush1.msra.mxu0 0.0
      %1561 = vmatprep.subr.mxu0 0.0
      %1562 = vmatpush1.msra.mxu0 0.0
      %1563 = vmatprep.subr.mxu0 0.0
      %1564 = vmatpush1.msra.mxu0 0.0
      %1565 = vmatprep.subr.mxu0 0.0
      %1566 = vmatpush1.msra.mxu0 0.0
      %1567 = vmatprep.mubr.f32.mxu0 0.0
      %1568 = vmatmul.mubr.f32.gmra.mrb[0].mxu0 %v1501
      %v1569 = vpop.f32.mrb[0].mxu0
      %v1570 = vadd.f32 0.0, %v1569
      %v1571 = vpop.f32.mrb[0].mxu0
      %1572 = vdwg.mxu0
      %v1573 = vadd.f32 %v1331, %v1570
      %v1574 = vadd.f32 %v477, %v1573
      %v1575 = vld [vmem:[%s7] sm:$0x1]
      %v1577 = vlaneseq
      %v1578 = vshrl.u32 %v1577, 7
      %v1579 = vsub.s32 0, %v1578
      %v1580 = vrot.slane %v1575, %v1579
      %v1582 = vadd.f32 %v1574, %v1580
      %v1583 = vsel %vm479, %v1582, 0.0
      %1584 = vadd.xlane.f32.xlu0 %v1583
      %v1585 = vpop.xlane.xlu0 %1584
      %v1586 = vmul.f32 %v1585, %v483
      %v1587 = vsub.f32 %v1582, %v1586
      %v1588 = vmul.f32 %v1587, %v1587
      %v1589 = vsel %vm479, %v1588, 0.0
      %1590 = vadd.xlane.f32.xlu0 %v1589
      %v1591 = vpop.xlane.xlu0 %1590
      %v1592 = vmul.f32 %v1591, %v483
      %v1593 = vadd.f32 %v1592, 1e-05
      %v1594 = vrsqrt.pop %v1593
      %v1595 = vmul.f32 %v1587, %v1594
      %v1596 = vld [vmem:[%s8] sm:$0x1]
      %v1598 = vlaneseq
      %v1599 = vshrl.u32 %v1598, 7
      %v1600 = vsub.s32 0, %v1599
      %v1601 = vrot.slane %v1596, %v1600
      %v1603 = vmul.f32 %v1595, %v1601
      %v1604 = vld [vmem:[%s9] sm:$0x1]
      %v1606 = vlaneseq
      %v1607 = vshrl.u32 %v1606, 7
      %v1608 = vsub.s32 0, %v1607
      %v1609 = vrot.slane %v1604, %v1608
      %v1611 = vadd.f32 %v1603, %v1609
      %v1612 = vld [vmem:[%s10] sm:$0xff]
      %v1613 = vld [vmem:[%s10 + $0x8] sm:$0xff]
      %v1614 = vld [vmem:[%s10 + $0x10] sm:$0xff]
      %v1615 = vld [vmem:[%s10 + $0x18] sm:$0xff]
      %v1616 = vld [vmem:[%s11] sm:$0x1]
      %v1618 = vlaneseq
      %v1619 = vshrl.u32 %v1618, 7
      %v1620 = vsub.s32 0, %v1619
      %v1621 = vrot.slane %v1616, %v1620
      %v1624 = vsel %vm521, %v1611, 0
      %1626 = vmatprep.subr.mxu0 0.0
      %1627 = vmatpush1.msra.mxu0 %v1612
      %1628 = vmatprep.subr.mxu0 0.0
      %1629 = vmatpush1.msra.mxu0 %v1613
      %1630 = vmatprep.subr.mxu0 0.0
      %1631 = vmatpush1.msra.mxu0 %v1614
      %1632 = vmatprep.subr.mxu0 0.0
      %1633 = vmatpush1.msra.mxu0 %v1615
      %1634 = vmatprep.subr.mxu0 0.0
      %1635 = vmatpush1.msra.mxu0 0.0
      %1636 = vmatprep.subr.mxu0 0.0
      %1637 = vmatpush1.msra.mxu0 0.0
      %1638 = vmatprep.subr.mxu0 0.0
      %1639 = vmatpush1.msra.mxu0 0.0
      %1640 = vmatprep.subr.mxu0 0.0
      %1641 = vmatpush1.msra.mxu0 0.0
      %1642 = vmatprep.subr.mxu0 0.0
      %1643 = vmatpush1.msra.mxu0 0.0
      %1644 = vmatprep.subr.mxu0 0.0
      %1645 = vmatpush1.msra.mxu0 0.0
      %1646 = vmatprep.subr.mxu0 0.0
      %1647 = vmatpush1.msra.mxu0 0.0
      %1648 = vmatprep.subr.mxu0 0.0
      %1649 = vmatpush1.msra.mxu0 0.0
      %1650 = vmatprep.subr.mxu0 0.0
      %1651 = vmatpush1.msra.mxu0 0.0
      %1652 = vmatprep.subr.mxu0 0.0
      %1653 = vmatpush1.msra.mxu0 0.0
      %1654 = vmatprep.subr.mxu0 0.0
      %1655 = vmatpush1.msra.mxu0 0.0
      %1656 = vmatprep.subr.mxu0 0.0
      %1657 = vmatpush1.msra.mxu0 0.0
      %1658 = vmatprep.subr.mxu0 0.0
      %1659 = vmatpush1.msra.mxu0 0.0
      %1660 = vmatprep.subr.mxu0 0.0
      %1661 = vmatpush1.msra.mxu0 0.0
      %1662 = vmatprep.subr.mxu0 0.0
      %1663 = vmatpush1.msra.mxu0 0.0
      %1664 = vmatprep.subr.mxu0 0.0
      %1665 = vmatpush1.msra.mxu0 0.0
      %1666 = vmatprep.subr.mxu0 0.0
      %1667 = vmatpush1.msra.mxu0 0.0
      %1668 = vmatprep.subr.mxu0 0.0
      %1669 = vmatpush1.msra.mxu0 0.0
      %1670 = vmatprep.subr.mxu0 0.0
      %1671 = vmatpush1.msra.mxu0 0.0
      %1672 = vmatprep.subr.mxu0 0.0
      %1673 = vmatpush1.msra.mxu0 0.0
      %1674 = vmatprep.subr.mxu0 0.0
      %1675 = vmatpush1.msra.mxu0 0.0
      %1676 = vmatprep.subr.mxu0 0.0
      %1677 = vmatpush1.msra.mxu0 0.0
      %1678 = vmatprep.subr.mxu0 0.0
      %1679 = vmatpush1.msra.mxu0 0.0
      %1680 = vmatprep.subr.mxu0 0.0
      %1681 = vmatpush1.msra.mxu0 0.0
      %1682 = vmatprep.subr.mxu0 0.0
      %1683 = vmatpush1.msra.mxu0 0.0
      %1684 = vmatprep.subr.mxu0 0.0
      %1685 = vmatpush1.msra.mxu0 0.0
      %1686 = vmatprep.subr.mxu0 0.0
      %1687 = vmatpush1.msra.mxu0 0.0
      %1688 = vmatprep.subr.mxu0 0.0
      %1689 = vmatpush1.msra.mxu0 0.0
      %1690 = vmatprep.mubr.f32.mxu0 0.0
      %1691 = vmatmul.mubr.f32.gmra.mrb[0].mxu0 %v1624
      %v1692 = vpop.f32.mrb[0].mxu0
      %v1693 = vadd.f32 %v1621, %v1692
      %v1694 = vpop.f32.mrb[0].mxu0
      %1695 = vdwg.mxu0
      %v1696 = vmax.f32 %v1693, 0.0
      %v1697 = vld [vmem:[%s12] sm:$0xff]
      %v1698 = vld [vmem:[%s12 + $0x8] sm:$0xff]
      %v1699 = vld [vmem:[%s12 + $0x10] sm:$0xff]
      %v1700 = vld [vmem:[%s12 + $0x18] sm:$0xff]
      %v1701 = vld [vmem:[%s12 + $0x20] sm:$0xff]
      %v1702 = vld [vmem:[%s12 + $0x28] sm:$0xff]
      %v1703 = vld [vmem:[%s12 + $0x30] sm:$0xff]
      %v1704 = vld [vmem:[%s12 + $0x38] sm:$0xff]
      %vm1705 = vcmask 523264
      %v1707 = vsel %vm1705, %v1696, 0
      %1709 = vmatprep.subr.mxu0 0.0
      %1710 = vmatpush1.msra.mxu0 %v1697
      %1711 = vmatprep.subr.mxu0 0.0
      %1712 = vmatpush1.msra.mxu0 %v1698
      %1713 = vmatprep.subr.mxu0 0.0
      %1714 = vmatpush1.msra.mxu0 %v1699
      %1715 = vmatprep.subr.mxu0 0.0
      %1716 = vmatpush1.msra.mxu0 %v1700
      %1717 = vmatprep.subr.mxu0 0.0
      %1718 = vmatpush1.msra.mxu0 %v1701
      %1719 = vmatprep.subr.mxu0 0.0
      %1720 = vmatpush1.msra.mxu0 %v1702
      %1721 = vmatprep.subr.mxu0 0.0
      %1722 = vmatpush1.msra.mxu0 %v1703
      %1723 = vmatprep.subr.mxu0 0.0
      %1724 = vmatpush1.msra.mxu0 %v1704
      %1725 = vmatprep.subr.mxu0 0.0
      %1726 = vmatpush1.msra.mxu0 0.0
      %1727 = vmatprep.subr.mxu0 0.0
      %1728 = vmatpush1.msra.mxu0 0.0
      %1729 = vmatprep.subr.mxu0 0.0
      %1730 = vmatpush1.msra.mxu0 0.0
      %1731 = vmatprep.subr.mxu0 0.0
      %1732 = vmatpush1.msra.mxu0 0.0
      %1733 = vmatprep.subr.mxu0 0.0
      %1734 = vmatpush1.msra.mxu0 0.0
      %1735 = vmatprep.subr.mxu0 0.0
      %1736 = vmatpush1.msra.mxu0 0.0
      %1737 = vmatprep.subr.mxu0 0.0
      %1738 = vmatpush1.msra.mxu0 0.0
      %1739 = vmatprep.subr.mxu0 0.0
      %1740 = vmatpush1.msra.mxu0 0.0
      %1741 = vmatprep.subr.mxu0 0.0
      %1742 = vmatpush1.msra.mxu0 0.0
      %1743 = vmatprep.subr.mxu0 0.0
      %1744 = vmatpush1.msra.mxu0 0.0
      %1745 = vmatprep.subr.mxu0 0.0
      %1746 = vmatpush1.msra.mxu0 0.0
      %1747 = vmatprep.subr.mxu0 0.0
      %1748 = vmatpush1.msra.mxu0 0.0
      %1749 = vmatprep.subr.mxu0 0.0
      %1750 = vmatpush1.msra.mxu0 0.0
      %1751 = vmatprep.subr.mxu0 0.0
      %1752 = vmatpush1.msra.mxu0 0.0
      %1753 = vmatprep.subr.mxu0 0.0
      %1754 = vmatpush1.msra.mxu0 0.0
      %1755 = vmatprep.subr.mxu0 0.0
      %1756 = vmatpush1.msra.mxu0 0.0
      %1757 = vmatprep.subr.mxu0 0.0
      %1758 = vmatpush1.msra.mxu0 0.0
      %1759 = vmatprep.subr.mxu0 0.0
      %1760 = vmatpush1.msra.mxu0 0.0
      %1761 = vmatprep.subr.mxu0 0.0
      %1762 = vmatpush1.msra.mxu0 0.0
      %1763 = vmatprep.subr.mxu0 0.0
      %1764 = vmatpush1.msra.mxu0 0.0
      %1765 = vmatprep.subr.mxu0 0.0
      %1766 = vmatpush1.msra.mxu0 0.0
      %1767 = vmatprep.subr.mxu0 0.0
      %1768 = vmatpush1.msra.mxu0 0.0
      %1769 = vmatprep.subr.mxu0 0.0
      %1770 = vmatpush1.msra.mxu0 0.0
      %1771 = vmatprep.subr.mxu0 0.0
      %1772 = vmatpush1.msra.mxu0 0.0
      %1773 = vmatprep.mubr.f32.mxu0 0.0
      %1774 = vmatmul.mubr.f32.gmra.mrb[0].mxu0 %v1707
      %v1775 = vpop.f32.mrb[0].mxu0
      %v1776 = vadd.f32 0.0, %v1775
      %v1777 = vpop.f32.mrb[0].mxu0
      %1778 = vdwg.mxu0
      %v1779 = vadd.f32 %v1582, %v1776
      %v1780 = vld [vmem:[%s13] sm:$0x1]
      %v1782 = vlaneseq
      %v1783 = vshrl.u32 %v1782, 7
      %v1784 = vsub.s32 0, %v1783
      %v1785 = vrot.slane %v1780, %v1784
      %v1787 = vadd.f32 %v1779, %v1785
      %1788 = vst.msk [vmem:[%s476] sm:$0x7f] %vm479, %v1787
      %p1789 = scmp.lt.s32.totalorder %s25, 1
      %s1790 = scalar_select %p1789, %s25, 1
      %s1791 = smul.addr %s1790, 8
      %s1792 = scalar_lea.vmem %s14, %s1791
      // Predicated region
      $region77: #{onnx_model_forward.9} parent=75 // pred_check
        %p1793 = pneg %p347
      $region78: #{onnx_model_forward.9} parent=75 // pred_check_branch
        %1795 = sbr.rel (%p1793) target = $region80
      $region79: #{onnx_model_forward.9} parent=75 // pred_region
        _
      $region80: #{onnx_model_forward.9} parent=75 // pred_fallthru
        _
    $region76: #{onnx_model_forward.9} parent=5 // pred_fallthru
      _
    %p1796 = scmp.le.s32.totalorder 2, %s20
    // Predicated region
    $region81: #{onnx_model_forward.9} parent=5 // pred_check
      %p1797 = pneg %p1796
    $region82: #{onnx_model_forward.9} parent=5 // pred_check_branch
      %1799 = sbr.rel (%p1797) target = $region84
    $region83: #{onnx_model_forward.9} parent=5 // pred_region
      %s1800 = ssub.s32 %s20, 2
      // Predicated region
      $region85: #{onnx_model_forward.9} parent=83 // pred_check
        %p1801 = pneg %p353
      $region86: #{onnx_model_forward.9} parent=83 // pred_check_branch
        %1803 = sbr.rel (%p1801) target = $region88
      $region87: #{onnx_model_forward.9} parent=83 // pred_region
        %p1804 = scmp.lt.s32.totalorder %s26, 1
        %s1805 = scalar_select %p1804, %s26, 1
        %s1806 = smul.addr %s1805, 8
        %s1807 = scalar_lea.vmem %s14, %s1806
      $region88: #{onnx_model_forward.9} parent=83 // pred_fallthru
        _
    $region84: #{onnx_model_forward.9} parent=5 // pred_fallthru
      _
  $region6: #{onnx_model_forward.9} parent=0 // loop_footer
    %s24 = sadd.s32 1, %s20
  $region7: #{onnx_model_forward.9} parent=0 // loop_footer_branch
    %19 = sbr.rel target = $region3
  $region8: #{onnx_model_forward.9} parent=0 // loop_exit
    _

</llo_original>
